<compile_context>
chip_gen: v7x
topology: tpu7x:2x2x1
jax: 0.10.0
libtpu: 0.0.40
codegen_flags: <defaults>
</compile_context>

<pallas_src>
import functools

import jax
import jax.numpy as jnp
from jax import lax
from jax.experimental import pallas as pl
from jax.experimental.pallas import tpu as pltpu


# ----------------------------------------------------------------------------
# Kernel helpers
# ----------------------------------------------------------------------------
def _layer_norm(v, gamma, beta, eps=1e-5):
    # Two-pass (centered) variance: avoids E[x^2]-E[x]^2 cancellation.
    mu = jnp.mean(v, axis=-1, keepdims=True)
    c = v - mu
    var = jnp.mean(c * c, axis=-1, keepdims=True)
    return c * lax.rsqrt(var + eps) * gamma + beta


# ----------------------------------------------------------------------------
# Fused encoder kernel (all layers, Bt batch rows per grid step)
# ----------------------------------------------------------------------------
def bert_encoder_kernel(valid_lens_ref,           # SMEM (B,) int32 (scalar prefetch)
                        x_ref,                    # (Bt, S, H) bf16 embeddings (aliased to out)
                        wq_ref,                   # (1, H, H) bf16, pre-transposed (in,out)
                        wo_ref,                   # (1, H, H) bf16, pre-transposed (in,out)
                        w1_ref,                   # (1, H, F) bf16
                        w2_ref,                   # (1, F, H) bf16
                        vec_ref,                  # (1, 7, H) f32: bq,bo,g1,be1,b2,g2,be2
                        b1_ref,                   # (1, 1, F) f32
                        out_ref,                  # (Bt, S, H) bf16 carry (layer-resident)
                        kv_scr,                   # VMEM (Bt*nh, S, hd) bf16 scratch
                        *, num_heads, block_b, k_tile, bf16_softmax):
    layer = pl.program_id(1)

    # Layer 0: seed the resident activation block from the embeddings.  The
    # output block index only depends on the batch axis, so it stays in VMEM
    # across the whole layer loop and is flushed to HBM once per batch block.
    @pl.when(layer == 0)
    def _():
        out_ref[...] = x_ref[...]

    x = out_ref[...].astype(jnp.float32)          # (Bt, S, H)
    Bt, S, H = x.shape
    nh = num_heads
    hd = H // nh
    Tk = k_tile
    num_kb = S // Tk
    scale = float(hd) ** -0.5

    wq = wq_ref[0]                                # (H, H)  bf16
    wo = wo_ref[0]                                # (H, H)  bf16
    w1 = w1_ref[0]                                # (H, F)  bf16
    w2 = w2_ref[0]                                # (F, H)  bf16
    bq, bo = vec_ref[0, 0], vec_ref[0, 1]         # (H,) f32 each
    g1, be1 = vec_ref[0, 2], vec_ref[0, 3]
    b2 = vec_ref[0, 4]
    g2, be2 = vec_ref[0, 5], vec_ref[0, 6]
    b1 = b1_ref[0, 0]                             # (F,)

    # --- Multi-head self attention (reference applies W_q to Q, K and V) ----
    xb = x.astype(jnp.bfloat16).reshape(Bt * S, H)
    qkv = jnp.dot(xb, wq, preferred_element_type=jnp.float32) + bq       # (Bt*S, H)
    qkv = qkv.reshape(Bt, S, H)

    # Head-major layout (Bt*nh, S, hd), staged once in VMEM scratch so key/value
    # tiles can be sliced with pl.ds inside the online-softmax loop.
    qkv_h = jnp.stack([qkv[:, :, h * hd:(h + 1) * hd] for h in range(nh)],
                      axis=1).reshape(Bt * nh, S, hd).astype(jnp.bfloat16)
    kv_scr[...] = qkv_h
    q = qkv_h

    # Per-batch valid lengths as traced scalars (hoisted out of the key loop).
    # TODO(synk): only 1-D per-sequence valid_lens supported (not per-query 2-D).
    b0 = pl.program_id(0) * block_b
    vl_scalars = [valid_lens_ref[b0 + r] for r in range(block_b)]

    # Flash-style online softmax over key tiles: live intermediates are
    # (Bt*nh, S, Tk) instead of the full (Bt*nh, S, S) score/prob matrix.
    # NOTE: the scores / PV matmuls are inherently hd-wide (hd < MXU tile on
    # v6e/v7x); all other matmuls (Wq, Wo, FFN) run at full H / F width.
    m0 = jnp.full((Bt * nh, S, 1), -jnp.inf, jnp.float32)
    l0 = jnp.zeros((Bt * nh, S, 1), jnp.float32)
    a0 = jnp.zeros((Bt * nh, S, hd), jnp.float32)

    def kv_step(kb, carry):
        m, l, acc = carry
        start = pl.multiple_of(kb * Tk, Tk)
        kv_t = kv_scr[:, pl.ds(start, Tk), :]                             # (Bt*nh, Tk, hd)
        s = jnp.einsum('bqd,bkd->bqk', q, kv_t,
                       preferred_element_type=jnp.float32) * scale        # (Bt*nh, S, Tk)

        # d2l masked_softmax semantics: masked key positions replaced by -1e6.
        # Small bool mask broadcast over queries; no replicated int32 mask.
        col = lax.broadcasted_iota(jnp.int32, (1, Tk), 1) + start         # (1, Tk)
        mask = jnp.stack([col < v for v in vl_scalars], axis=0)           # (Bt, 1, Tk)
        mask = jnp.broadcast_to(mask[:, None], (Bt, nh, 1, Tk)).reshape(Bt * nh, 1, Tk)
        s = jnp.where(mask, s, jnp.float32(-1e6))

        m_new = jnp.maximum(m, jnp.max(s, axis=-1, keepdims=True))
        alpha = jnp.exp(m - m_new)
        sm = s - m_new
        if bf16_softmax:        # bf16 EUP on v6e/v7x; disabled on v5 (no bf16 EUP)
            p = jnp.exp(sm.astype(jnp.bfloat16))
            l_new = alpha * l + jnp.sum(p.astype(jnp.float32), axis=-1, keepdims=True)
        else:
            p = jnp.exp(sm)
            l_new = alpha * l + jnp.sum(p, axis=-1, keepdims=True)
        acc_new = alpha * acc + jnp.einsum(
            'bqk,bkd->bqd', p.astype(jnp.bfloat16), kv_t,
            preferred_element_type=jnp.float32)
        return m_new, l_new, acc_new

    _, l, acc = lax.fori_loop(0, num_kb, kv_step, (m0, l0, a0))
    ctx = acc * pl.reciprocal(l, approx=True)                             # (Bt*nh, S, hd)

    # Concatenate heads back to (Bt, S, H) (reference transpose_output order)
    # and apply W_o as ONE full-width (Bt*S,H)x(H,H) MXU matmul with a
    # stationary RHS — no per-batch Wo copy / per-head projection / head sum.
    ctx_r = ctx.reshape(Bt, nh, S, hd)
    ctx_cat = jnp.concatenate([ctx_r[:, h] for h in range(nh)], axis=-1)  # (Bt, S, H)
    attn = jnp.dot(ctx_cat.reshape(Bt * S, H).astype(jnp.bfloat16), wo,
                   preferred_element_type=jnp.float32) + bo
    attn = attn.reshape(Bt, S, H)

    # --- AddNorm 1 (dropout = identity) --------------------------------------
    y = _layer_norm(attn + x, g1, be1)

    # --- Position-wise FFN ----------------------------------------------------
    yb = y.astype(jnp.bfloat16).reshape(Bt * S, H)
    h1 = jnp.maximum(jnp.dot(yb, w1, preferred_element_type=jnp.float32) + b1, 0.0)
    h2 = jnp.dot(h1.astype(jnp.bfloat16), w2, preferred_element_type=jnp.float32) + b2
    ffn = h2.reshape(Bt, S, H)

    # --- AddNorm 2 ------------------------------------------------------------
    z = _layer_norm(ffn + y, g2, be2)
    out_ref[...] = z.astype(out_ref.dtype)


# ----------------------------------------------------------------------------
# Wrappers
# ----------------------------------------------------------------------------
def _chip_info():
    """Best-effort hardware query: (VMEM bytes, dual-TensorCore?, v5-gen?)."""
    vmem_bytes = 64 * 1024 * 1024
    try:
        vmem_bytes = int(pltpu.get_tpu_info().vmem_capacity_bytes)
    except Exception:
        pass
    kind = ""
    try:
        kind = jax.devices()[0].device_kind.lower()
    except Exception:
        pass
    two_tc = "v7" in kind        # v7x: 2 TensorCores / chip, 64 MiB VMEM each
    is_v5 = "v5" in kind         # v5: no bf16 EUP
    return vmem_bytes, two_tc, is_v5


def _pick_block_b(B, S, vmem_bytes, two_tc):
    # v5e/v6e (128 MiB VMEM): bigger blocks amortize per-step overhead and cut
    # per-layer weight re-DMA.  v7x (64 MiB, 2 TCs): smaller blocks, and keep
    # >= 2 batch blocks so the 'parallel' batch axis shards across both cores.
    target_rows = 2048 if vmem_bytes >= 96 * 1024 * 1024 else 512
    bt = max(1, min(B, target_rows // max(S, 1)))
    if two_tc and B >= 2:
        bt = min(bt, max(1, B // 2))
    while B % bt:
        bt -= 1
    return bt


def _pick_k_tile(S):
    if S <= 256:
        return S
    for t in (256, 128):
        if S % t == 0:
            return t
    return S   # TODO(synk): pad ragged S to a multiple of 128 to enable key tiling.


def bert_encoder_layers(x, valid_lens, pp, num_heads, block_b=None):
    """Run all encoder blocks in one pallas_call: grid = (batch blocks, layers)."""
    B, S, H = x.shape
    L = pp["wq_t"].shape[0]
    F = pp["w1_t"].shape[2]
    nh = num_heads
    hd = H // nh
    assert H % nh == 0

    vmem_bytes, two_tc, is_v5 = _chip_info()
    Bt = _pick_block_b(B, S, vmem_bytes, two_tc) if block_b is None else block_b
    assert B % Bt == 0
    Tk = _pick_k_tile(S)
    assert S % Tk == 0
    vmem_limit = int(min(vmem_bytes * 3 // 4, 100 * 1024 * 1024))

    def wspec(*shape):
        zeros = (0,) * len(shape)
        return pl.BlockSpec((1,) + tuple(shape),
                            lambda b, l, vl, _z=zeros: (l,) + _z)

    grid_spec = pltpu.PrefetchScalarGridSpec(
        num_scalar_prefetch=1,
        grid=(B // Bt, L),
        in_specs=[
            pl.BlockSpec((Bt, S, H), lambda b, l, vl: (b, 0, 0)),   # embeddings
            wspec(H, H),            # Wq^T
            wspec(H, H),            # Wo^T
            wspec(H, F),            # W1^T
            wspec(F, H),            # W2^T
            wspec(7, H),            # packed biases / LN vectors
            wspec(1, F),            # b1
        ],
        out_specs=pl.BlockSpec((Bt, S, H), lambda b, l, vl: (b, 0, 0)),
        scratch_shapes=[pltpu.VMEM((Bt * nh, S, hd), jnp.bfloat16)],
    )
    kernel = functools.partial(bert_encoder_kernel, num_heads=nh, block_b=Bt,
                               k_tile=Tk, bf16_softmax=not is_v5)
    args = (valid_lens.astype(jnp.int32), x.astype(jnp.bfloat16),
            pp["wq_t"], pp["wo_t"], pp["w1_t"], pp["w2_t"], pp["vecs"], pp["b1"])

    def call(aliases):
        return pl.pallas_call(
            kernel,
            grid_spec=grid_spec,
            out_shape=jax.ShapeDtypeStruct((B, S, H), jnp.bfloat16),
            input_output_aliases=aliases,
            compiler_params=pltpu.CompilerParams(
                dimension_semantics=("parallel", "arbitrary"),
                vmem_limit_bytes=vmem_limit,
            ),
        )(*args)

    try:
        # Alias the bf16 embedding input to the bf16 output carry: shares the
        # HBM buffer (donation) and drops the extra output allocation.  Index 1
        # counts the scalar-prefetch operand (valid_lens) in the flattened args.
        return call({1: 0})
    except Exception:
        # Fallback for jax versions with a different alias-index convention.
        return call({})


def init_params(key, vocab_size, num_hiddens, ffn_num_hiddens, num_layers, max_len):
    keys = jax.random.split(key, 3 + num_layers)
    params = {
        "token_embedding": jax.random.normal(keys[0], (vocab_size, num_hiddens), jnp.float32) * 0.02,
        "segment_embedding": jax.random.normal(keys[1], (3, num_hiddens), jnp.float32) * 0.02,
        "position_embedding": jax.random.uniform(keys[2], (1, max_len, num_hiddens), jnp.float32),
        "layers": [],
    }
    H, F = num_hiddens, ffn_num_hiddens
    for i in range(num_layers):
        lk = jax.random.split(keys[3 + i], 4)
        params["layers"].append({
            "wq": jax.random.normal(lk[0], (H, H), jnp.float32) * 0.02,   # torch layout (out, in)
            "bq": jnp.zeros((H,), jnp.float32),
            "wo": jax.random.normal(lk[1], (H, H), jnp.float32) * 0.02,
            "bo": jnp.zeros((H,), jnp.float32),
            "gamma1": jnp.ones((H,), jnp.float32),
            "beta1": jnp.zeros((H,), jnp.float32),
            "w1": jax.random.normal(lk[2], (F, H), jnp.float32) * 0.02,
            "b1": jnp.zeros((F,), jnp.float32),
            "w2": jax.random.normal(lk[3], (H, F), jnp.float32) * 0.02,
            "b2": jnp.zeros((H,), jnp.float32),
            "gamma2": jnp.ones((H,), jnp.float32),
            "beta2": jnp.zeros((H,), jnp.float32),
        })
    return params


def pack_layer_params(layers):
    """Wrapper-side layout plumbing: stack layers, pre-transpose weights to
    (in, out), cast matmul weights to bf16, and pack the seven small H-wide
    per-layer vectors into one (L, 7, H) array (single BlockSpec / DMA)."""
    def stack(name):
        return jnp.stack([l[name] for l in layers], axis=0)

    wq_t = jnp.swapaxes(stack("wq"), 1, 2).astype(jnp.bfloat16)           # (L, H, H)
    wo_t = jnp.swapaxes(stack("wo"), 1, 2).astype(jnp.bfloat16)           # (L, H, H)
    w1_t = jnp.swapaxes(stack("w1"), 1, 2).astype(jnp.bfloat16)           # (L, H, F)
    w2_t = jnp.swapaxes(stack("w2"), 1, 2).astype(jnp.bfloat16)           # (L, F, H)

    vecs = jnp.stack(
        [jnp.stack([l["bq"], l["bo"], l["gamma1"], l["beta1"],
                    l["b2"], l["gamma2"], l["beta2"]], axis=0)
         for l in layers], axis=0).astype(jnp.float32)                    # (L, 7, H)
    b1 = stack("b1")[:, None, :].astype(jnp.float32)                      # (L, 1, F)

    return {"wq_t": wq_t, "wo_t": wo_t, "w1_t": w1_t, "w2_t": w2_t,
            "vecs": vecs, "b1": b1}


def bert_encoder_forward(params, tokens, segments, valid_lens, num_heads):
    B, S = tokens.shape
    # Embedding lookups are data-dependent gathers and the 3-way add is
    # trivially fusible — kept as plain-JAX glue (no extra pallas_call).
    tok_emb = jnp.take(params["token_embedding"], tokens, axis=0)        # (B, S, H)
    seg_emb = jnp.take(params["segment_embedding"], segments, axis=0)    # (B, S, H)
    pos_emb = params["position_embedding"][:, :S, :]                     # (1, S, H)
    x = (tok_emb + seg_emb + pos_emb).astype(jnp.float32)
    packed = pack_layer_params(params["layers"])
    out = bert_encoder_layers(x, valid_lens, packed, num_heads)
    return out.astype(jnp.float32)   # kernel carries / writes bf16; keep f32 API


# ----------------------------------------------------------------------------
if __name__ == "__main__":
    # Small synthetic config
    vocab_size = 100
    num_hiddens = 32
    ffn_num_hiddens = 64
    num_heads = 2
    num_layers = 2
    max_len = 16
    B, S = 2, 8

    key = jax.random.PRNGKey(0)
    pkey, tkey, skey = jax.random.split(key, 3)
    params = init_params(pkey, vocab_size, num_hiddens, ffn_num_hiddens,
                         num_layers, max_len)

    tokens = jax.random.randint(tkey, (B, S), 0, vocab_size, dtype=jnp.int32)
    segments = jax.random.randint(skey, (B, S), 0, 2, dtype=jnp.int32)
    valid_lens = jnp.array([8, 5], dtype=jnp.int32)

    out = bert_encoder_forward(params, tokens, segments, valid_lens, num_heads)
    out = jax.block_until_ready(out)
    assert out.shape == (B, S, num_hiddens)
    assert bool(jnp.all(jnp.isfinite(out)))
    print("KERNEL_OK")
</pallas_src>

<mosaic_0001>
module attributes {stable_mosaic.version = 11 : i64} {
  func.func @bert_encoder_kernel(%arg0: i32, %arg1: i32, %arg2: memref<2xi32, #tpu.memory_space<smem>>, %arg3: memref<2x8x32xbf16, #tpu.memory_space<vmem>>, %arg4: memref<1x32x32xbf16, #tpu.memory_space<vmem>>, %arg5: memref<1x32x32xbf16, #tpu.memory_space<vmem>>, %arg6: memref<1x32x64xbf16, #tpu.memory_space<vmem>>, %arg7: memref<1x64x32xbf16, #tpu.memory_space<vmem>>, %arg8: memref<1x7x32xf32, #tpu.memory_space<vmem>>, %arg9: memref<1x1x64xf32, #tpu.memory_space<vmem>>, %arg10: memref<2x8x32xbf16, #tpu.memory_space<vmem>>, %arg11: memref<4x8x16xbf16, #tpu.memory_space<vmem>>) attributes {dimension_semantics = [#tpu.dimension_semantics<parallel>, #tpu.dimension_semantics<arbitrary>], iteration_bounds = array<i64: 1, 2>, scalar_prefetch = 1 : i64, scratch_operands = 1 : i64, tpu.core_type = #tpu.core_type<tc>, window_params = [{transform_indices = @transform_0, window_bounds = array<i64: 2, 8, 32>}, {transform_indices = @transform_1, window_bounds = array<i64: 1, 32, 32>}, {transform_indices = @transform_2, window_bounds = array<i64: 1, 32, 32>}, {transform_indices = @transform_3, window_bounds = array<i64: 1, 32, 64>}, {transform_indices = @transform_4, window_bounds = array<i64: 1, 64, 32>}, {transform_indices = @transform_5, window_bounds = array<i64: 1, 7, 32>}, {transform_indices = @transform_6, window_bounds = array<i64: 1, 1, 64>}, {transform_indices = @transform_7, window_bounds = array<i64: 2, 8, 32>}]} {
    %c0_i32 = arith.constant 0 : i32
    %0 = arith.cmpi eq, %arg1, %c0_i32 : i32
    %1 = arith.extui %0 : i1 to i32
    %c0_i32_0 = arith.constant 0 : i32
    %2 = arith.cmpi ne, %1, %c0_i32_0 : i32
    scf.if %2 {
      %c0_67 = arith.constant 0 : index
      %c0_68 = arith.constant 0 : index
      %c0_69 = arith.constant 0 : index
      %175 = vector.load %arg3[%c0_67, %c0_68, %c0_69] : memref<2x8x32xbf16, #tpu.memory_space<vmem>>, vector<2x8x32xbf16>
      %c0_70 = arith.constant 0 : index
      %c0_71 = arith.constant 0 : index
      %c0_72 = arith.constant 0 : index
      %176 = vector.load %arg10[%c0_70, %c0_71, %c0_72] : memref<2x8x32xbf16, #tpu.memory_space<vmem>>, vector<2x8x32xbf16>
      tpu.vector_store %arg10[%c0_70, %c0_71, %c0_72], %175 {strides = array<i32>} : memref<2x8x32xbf16, #tpu.memory_space<vmem>>, vector<2x8x32xbf16>,
    } else {
    }
    %c0 = arith.constant 0 : index
    %c0_1 = arith.constant 0 : index
    %c0_2 = arith.constant 0 : index
    %3 = vector.load %arg10[%c0, %c0_1, %c0_2] : memref<2x8x32xbf16, #tpu.memory_space<vmem>>, vector<2x8x32xbf16>
    %4 = arith.extf %3 : vector<2x8x32xbf16> to vector<2x8x32xf32>
    %c0_3 = arith.constant 0 : index
    %c0_4 = arith.constant 0 : index
    %c0_5 = arith.constant 0 : index
    %5 = vector.load %arg4[%c0_3, %c0_4, %c0_5] : memref<1x32x32xbf16, #tpu.memory_space<vmem>>, vector<1x32x32xbf16>
    %6 = vector.shape_cast %5 : vector<1x32x32xbf16> to vector<32x32xbf16>
    %c0_6 = arith.constant 0 : index
    %c0_7 = arith.constant 0 : index
    %c0_8 = arith.constant 0 : index
    %7 = vector.load %arg5[%c0_6, %c0_7, %c0_8] : memref<1x32x32xbf16, #tpu.memory_space<vmem>>, vector<1x32x32xbf16>
    %8 = vector.shape_cast %7 : vector<1x32x32xbf16> to vector<32x32xbf16>
    %c0_9 = arith.constant 0 : index
    %c0_10 = arith.constant 0 : index
    %c0_11 = arith.constant 0 : index
    %9 = vector.load %arg6[%c0_9, %c0_10, %c0_11] : memref<1x32x64xbf16, #tpu.memory_space<vmem>>, vector<1x32x64xbf16>
    %10 = vector.shape_cast %9 : vector<1x32x64xbf16> to vector<32x64xbf16>
    %c0_12 = arith.constant 0 : index
    %c0_13 = arith.constant 0 : index
    %c0_14 = arith.constant 0 : index
    %11 = vector.load %arg7[%c0_12, %c0_13, %c0_14] : memref<1x64x32xbf16, #tpu.memory_space<vmem>>, vector<1x64x32xbf16>
    %12 = vector.shape_cast %11 : vector<1x64x32xbf16> to vector<64x32xbf16>
    %c0_15 = arith.constant 0 : index
    %c0_16 = arith.constant 0 : index
    %c0_17 = arith.constant 0 : index
    %13 = vector.load %arg8[%c0_15, %c0_16, %c0_17] : memref<1x7x32xf32, #tpu.memory_space<vmem>>, vector<1x1x32xf32>
    %14 = vector.shape_cast %13 : vector<1x1x32xf32> to vector<32xf32>
    %c0_18 = arith.constant 0 : index
    %c1 = arith.constant 1 : index
    %c0_19 = arith.constant 0 : index
    %15 = vector.load %arg8[%c0_18, %c1, %c0_19] : memref<1x7x32xf32, #tpu.memory_space<vmem>>, vector<1x1x32xf32>
    %16 = vector.shape_cast %15 : vector<1x1x32xf32> to vector<32xf32>
    %c0_20 = arith.constant 0 : index
    %c2 = arith.constant 2 : index
    %c0_21 = arith.constant 0 : index
    %17 = vector.load %arg8[%c0_20, %c2, %c0_21] : memref<1x7x32xf32, #tpu.memory_space<vmem>>, vector<1x1x32xf32>
    %18 = vector.shape_cast %17 : vector<1x1x32xf32> to vector<32xf32>
    %c0_22 = arith.constant 0 : index
    %c3 = arith.constant 3 : index
    %c0_23 = arith.constant 0 : index
    %19 = vector.load %arg8[%c0_22, %c3, %c0_23] : memref<1x7x32xf32, #tpu.memory_space<vmem>>, vector<1x1x32xf32>
    %20 = vector.shape_cast %19 : vector<1x1x32xf32> to vector<32xf32>
    %c0_24 = arith.constant 0 : index
    %c4 = arith.constant 4 : index
    %c0_25 = arith.constant 0 : index
    %21 = vector.load %arg8[%c0_24, %c4, %c0_25] : memref<1x7x32xf32, #tpu.memory_space<vmem>>, vector<1x1x32xf32>
    %22 = vector.shape_cast %21 : vector<1x1x32xf32> to vector<32xf32>
    %c0_26 = arith.constant 0 : index
    %c5 = arith.constant 5 : index
    %c0_27 = arith.constant 0 : index
    %23 = vector.load %arg8[%c0_26, %c5, %c0_27] : memref<1x7x32xf32, #tpu.memory_space<vmem>>, vector<1x1x32xf32>
    %24 = vector.shape_cast %23 : vector<1x1x32xf32> to vector<32xf32>
    %c0_28 = arith.constant 0 : index
    %c6 = arith.constant 6 : index
    %c0_29 = arith.constant 0 : index
    %25 = vector.load %arg8[%c0_28, %c6, %c0_29] : memref<1x7x32xf32, #tpu.memory_space<vmem>>, vector<1x1x32xf32>
    %26 = vector.shape_cast %25 : vector<1x1x32xf32> to vector<32xf32>
    %c0_30 = arith.constant 0 : index
    %c0_31 = arith.constant 0 : index
    %c0_32 = arith.constant 0 : index
    %27 = vector.load %arg9[%c0_30, %c0_31, %c0_32] : memref<1x1x64xf32, #tpu.memory_space<vmem>>, vector<1x1x64xf32>
    %28 = vector.shape_cast %27 : vector<1x1x64xf32> to vector<64xf32>
    %29 = arith.truncf %4 : vector<2x8x32xf32> to vector<2x8x32xbf16>
    %30 = vector.shape_cast %29 : vector<2x8x32xbf16> to vector<16x32xbf16>
    %cst = arith.constant dense<0.000000e+00> : vector<16x32xf32>
    %31 = tpu.matmul %30, %6, %cst {dimension_numbers = #tpu.dot_dimension_numbers<[1], [0], [0], [1], [0, 0, 1, 1], [], []>} : vector<16x32xbf16>, vector<32x32xbf16>, vector<16x32xf32> -> vector<16x32xf32>
    %32 = vector.shape_cast %14 : vector<32xf32> to vector<1x32xf32>
    %33 = vector.broadcast %32 : vector<1x32xf32> to vector<16x32xf32>
    %34 = arith.addf %31, %33 : vector<16x32xf32>
    %35 = vector.shape_cast %34 : vector<16x32xf32> to vector<2x8x32xf32>
    %36 = vector.extract_strided_slice %35 {offsets = [0, 0, 0], sizes = [2, 8, 16], strides = [1, 1, 1]} : vector<2x8x32xf32> to vector<2x8x16xf32>
    %37 = vector.extract_strided_slice %35 {offsets = [0, 0, 16], sizes = [2, 8, 16], strides = [1, 1, 1]} : vector<2x8x32xf32> to vector<2x8x16xf32>
    %38 = vector.shape_cast %36 : vector<2x8x16xf32> to vector<2x1x8x16xf32>
    %39 = vector.shape_cast %37 : vector<2x8x16xf32> to vector<2x1x8x16xf32>
    %40 = tpu.concatenate %38, %39 in 1 : vector<2x1x8x16xf32>, vector<2x1x8x16xf32> -> vector<2x2x8x16xf32>
    %41 = vector.shape_cast %40 : vector<2x2x8x16xf32> to vector<4x8x16xf32>
    %42 = arith.truncf %41 : vector<4x8x16xf32> to vector<4x8x16xbf16>
    %c0_33 = arith.constant 0 : index
    %c0_34 = arith.constant 0 : index
    %c0_35 = arith.constant 0 : index
    %43 = vector.load %arg11[%c0_33, %c0_34, %c0_35] : memref<4x8x16xbf16, #tpu.memory_space<vmem>>, vector<4x8x16xbf16>
    tpu.vector_store %arg11[%c0_33, %c0_34, %c0_35], %42 {strides = array<i32>} : memref<4x8x16xbf16, #tpu.memory_space<vmem>>, vector<4x8x16xbf16>,
    %c2_i32 = arith.constant 2 : i32
    %44 = arith.muli %arg0, %c2_i32 : i32
    %c0_i32_36 = arith.constant 0 : i32
    %45 = arith.addi %44, %c0_i32_36 : i32
    %46 = arith.index_cast %45 : i32 to index
    %47 = memref.load %arg2[%46] : memref<2xi32, #tpu.memory_space<smem>>
    %c1_i32 = arith.constant 1 : i32
    %48 = arith.addi %44, %c1_i32 : i32
    %49 = arith.index_cast %48 : i32 to index
    %50 = memref.load %arg2[%49] : memref<2xi32, #tpu.memory_space<smem>>
    %cst_37 = arith.constant 0xFF800000 : f32
    %51 = vector.broadcast %cst_37 : f32 to vector<4x8x1xf32>
    %cst_38 = arith.constant 0.000000e+00 : f32
    %52 = vector.broadcast %cst_38 : f32 to vector<4x8x1xf32>
    %cst_39 = arith.constant 0.000000e+00 : f32
    %53 = vector.broadcast %cst_39 : f32 to vector<4x8x16xf32>
    %c0_i32_40 = arith.constant 0 : i32
    %c8_i32 = arith.constant 8 : i32
    %54 = arith.muli %c0_i32_40, %c8_i32 : i32
    %55 = tpu.assume_multiple %54, 8 : i32
    %c0_41 = arith.constant 0 : index
    %56 = arith.index_cast %55 : i32 to index
    %c0_42 = arith.constant 0 : index
    %57 = vector.load %arg11[%c0_41, %56, %c0_42] : memref<4x8x16xbf16, #tpu.memory_space<vmem>>, vector<4x8x16xbf16>
    "tpu.trace_start"() <{level = 10 : i32, message = "bqd,bkd->bqk"}> : () -> ()
    %cst_43 = arith.constant dense<0.000000e+00> : vector<4x8x8xf32>
    %58 = tpu.matmul %42, %57, %cst_43 {dimension_numbers = #tpu.dot_dimension_numbers<[2], [2], [1], [1], [0, 0, 0, 1, 1, 1], [0], [0]>} : vector<4x8x16xbf16>, vector<4x8x16xbf16>, vector<4x8x8xf32> -> vector<4x8x8xf32>
    "tpu.trace_stop"() : () -> ()
    %cst_44 = arith.constant 2.500000e-01 : f32
    %59 = vector.broadcast %cst_44 : f32 to vector<4x8x8xf32>
    %60 = arith.mulf %58, %59 : vector<4x8x8xf32>
    %61 = tpu.iota {dimensions = array<i32: 1>} : vector<1x8xi32>
    %62 = vector.broadcast %55 : i32 to vector<1x8xi32>
    %63 = arith.addi %61, %62 : vector<1x8xi32>
    %64 = vector.broadcast %47 : i32 to vector<1x8xi32>
    %65 = arith.cmpi slt, %63, %64 : vector<1x8xi32>
    %66 = vector.broadcast %50 : i32 to vector<1x8xi32>
    %67 = arith.cmpi slt, %63, %66 : vector<1x8xi32>
    %68 = vector.shape_cast %65 : vector<1x8xi1> to vector<1x1x8xi1>
    %69 = vector.shape_cast %67 : vector<1x8xi1> to vector<1x1x8xi1>
    %70 = tpu.concatenate %68, %69 in 0 : vector<1x1x8xi1>, vector<1x1x8xi1> -> vector<2x1x8xi1>
    %71 = vector.shape_cast %70 : vector<2x1x8xi1> to vector<2x1x1x8xi1>
    %72 = vector.shape_cast %71 : vector<2x1x1x8xi1> to vector<2x1x1x8xi1>
    %73 = vector.broadcast %72 : vector<2x1x1x8xi1> to vector<2x2x1x8xi1>
    %74 = vector.shape_cast %73 : vector<2x2x1x8xi1> to vector<4x1x8xi1>
    %cst_45 = arith.constant -1.000000e+06 : f32
    %75 = vector.shape_cast %74 : vector<4x1x8xi1> to vector<4x1x8xi1>
    %76 = vector.broadcast %75 : vector<4x1x8xi1> to vector<4x8x8xi1>
    %77 = vector.broadcast %cst_45 : f32 to vector<4x8x8xf32>
    %78 = arith.select %76, %60, %77 : vector<4x8x8xi1>, vector<4x8x8xf32>
    %cst_46 = arith.constant dense<0xFF800000> : vector<4x8xf32>
    %79 = vector.multi_reduction <maximumf>, %78, %cst_46 [2] : vector<4x8x8xf32> to vector<4x8xf32>
    %80 = vector.shape_cast %79 : vector<4x8xf32> to vector<4x8x1xf32>
    %81 = arith.maximumf %51, %80 : vector<4x8x1xf32>
    %82 = arith.subf %51, %81 : vector<4x8x1xf32>
    %83 = math.exp %82 : vector<4x8x1xf32>
    %84 = vector.broadcast %81 : vector<4x8x1xf32> to vector<4x8x8xf32>
    %85 = arith.subf %78, %84 : vector<4x8x8xf32>
    %86 = arith.truncf %85 : vector<4x8x8xf32> to vector<4x8x8xbf16>
    %87 = math.exp %86 : vector<4x8x8xbf16>
    %88 = arith.mulf %83, %52 : vector<4x8x1xf32>
    %89 = arith.extf %87 : vector<4x8x8xbf16> to vector<4x8x8xf32>
    %cst_47 = arith.constant dense<0.000000e+00> : vector<4x8xf32>
    %90 = vector.multi_reduction <add>, %89, %cst_47 [2] : vector<4x8x8xf32> to vector<4x8xf32>
    %91 = vector.shape_cast %90 : vector<4x8xf32> to vector<4x8x1xf32>
    %92 = arith.addf %88, %91 : vector<4x8x1xf32>
    %93 = vector.broadcast %83 : vector<4x8x1xf32> to vector<4x8x16xf32>
    %94 = arith.mulf %93, %53 : vector<4x8x16xf32>
    "tpu.trace_start"() <{level = 10 : i32, message = "bqk,bkd->bqd"}> : () -> ()
    %cst_48 = arith.constant dense<0.000000e+00> : vector<4x8x16xf32>
    %95 = tpu.matmul %87, %57, %cst_48 {dimension_numbers = #tpu.dot_dimension_numbers<[2], [1], [1], [2], [0, 0, 0, 1, 1, 2], [0], [0]>} : vector<4x8x8xbf16>, vector<4x8x16xbf16>, vector<4x8x16xf32> -> vector<4x8x16xf32>
    "tpu.trace_stop"() : () -> ()
    %96 = arith.addf %94, %95 : vector<4x8x16xf32>
    %c1_i32_49 = arith.constant 1 : i32
    %97 = tpu.reciprocal %92 {approx = true} : vector<4x8x1xf32> -> vector<4x8x1xf32>
    %98 = vector.broadcast %97 : vector<4x8x1xf32> to vector<4x8x16xf32>
    %99 = arith.mulf %96, %98 : vector<4x8x16xf32>
    %100 = vector.shape_cast %99 : vector<4x8x16xf32> to vector<2x2x8x16xf32>
    %101 = vector.extract_strided_slice %100 {offsets = [0, 0, 0, 0], sizes = [2, 1, 8, 16], strides = [1, 1, 1, 1]} : vector<2x2x8x16xf32> to vector<2x1x8x16xf32>
    %102 = vector.shape_cast %101 : vector<2x1x8x16xf32> to vector<2x8x16xf32>
    %103 = vector.extract_strided_slice %100 {offsets = [0, 1, 0, 0], sizes = [2, 1, 8, 16], strides = [1, 1, 1, 1]} : vector<2x2x8x16xf32> to vector<2x1x8x16xf32>
    %104 = vector.shape_cast %103 : vector<2x1x8x16xf32> to vector<2x8x16xf32>
    %105 = tpu.concatenate %102, %104 in 2 : vector<2x8x16xf32>, vector<2x8x16xf32> -> vector<2x8x32xf32>
    %106 = vector.shape_cast %105 : vector<2x8x32xf32> to vector<16x32xf32>
    %107 = arith.truncf %106 : vector<16x32xf32> to vector<16x32xbf16>
    %cst_50 = arith.constant dense<0.000000e+00> : vector<16x32xf32>
    %108 = tpu.matmul %107, %8, %cst_50 {dimension_numbers = #tpu.dot_dimension_numbers<[1], [0], [0], [1], [0, 0, 1, 1], [], []>} : vector<16x32xbf16>, vector<32x32xbf16>, vector<16x32xf32> -> vector<16x32xf32>
    %109 = vector.shape_cast %16 : vector<32xf32> to vector<1x32xf32>
    %110 = vector.broadcast %109 : vector<1x32xf32> to vector<16x32xf32>
    %111 = arith.addf %108, %110 : vector<16x32xf32>
    %112 = vector.shape_cast %111 : vector<16x32xf32> to vector<2x8x32xf32>
    %113 = arith.addf %112, %4 : vector<2x8x32xf32>
    %cst_51 = arith.constant dense<0.000000e+00> : vector<2x8xf32>
    %114 = vector.multi_reduction <add>, %113, %cst_51 [2] : vector<2x8x32xf32> to vector<2x8xf32>
    %115 = vector.shape_cast %114 : vector<2x8xf32> to vector<2x8x1xf32>
    %cst_52 = arith.constant 3.200000e+01 : f32
    %116 = vector.broadcast %cst_52 : f32 to vector<2x8x1xf32>
    %117 = arith.divf %115, %116 : vector<2x8x1xf32>
    %118 = vector.broadcast %117 : vector<2x8x1xf32> to vector<2x8x32xf32>
    %119 = arith.subf %113, %118 : vector<2x8x32xf32>
    %120 = arith.mulf %119, %119 : vector<2x8x32xf32>
    %cst_53 = arith.constant dense<0.000000e+00> : vector<2x8xf32>
    %121 = vector.multi_reduction <add>, %120, %cst_53 [2] : vector<2x8x32xf32> to vector<2x8xf32>
    %122 = vector.shape_cast %121 : vector<2x8xf32> to vector<2x8x1xf32>
    %cst_54 = arith.constant 3.200000e+01 : f32
    %123 = vector.broadcast %cst_54 : f32 to vector<2x8x1xf32>
    %124 = arith.divf %122, %123 : vector<2x8x1xf32>
    %cst_55 = arith.constant 9.99999974E-6 : f32
    %125 = vector.broadcast %cst_55 : f32 to vector<2x8x1xf32>
    %126 = arith.addf %124, %125 : vector<2x8x1xf32>
    %127 = math.rsqrt %126 : vector<2x8x1xf32>
    %128 = vector.broadcast %127 : vector<2x8x1xf32> to vector<2x8x32xf32>
    %129 = arith.mulf %119, %128 : vector<2x8x32xf32>
    %130 = vector.shape_cast %18 : vector<32xf32> to vector<1x1x32xf32>
    %131 = vector.broadcast %130 : vector<1x1x32xf32> to vector<2x8x32xf32>
    %132 = arith.mulf %129, %131 : vector<2x8x32xf32>
    %133 = vector.shape_cast %20 : vector<32xf32> to vector<1x1x32xf32>
    %134 = vector.broadcast %133 : vector<1x1x32xf32> to vector<2x8x32xf32>
    %135 = arith.addf %132, %134 : vector<2x8x32xf32>
    %136 = arith.truncf %135 : vector<2x8x32xf32> to vector<2x8x32xbf16>
    %137 = vector.shape_cast %136 : vector<2x8x32xbf16> to vector<16x32xbf16>
    %cst_56 = arith.constant dense<0.000000e+00> : vector<16x64xf32>
    %138 = tpu.matmul %137, %10, %cst_56 {dimension_numbers = #tpu.dot_dimension_numbers<[1], [0], [0], [1], [0, 0, 1, 1], [], []>} : vector<16x32xbf16>, vector<32x64xbf16>, vector<16x64xf32> -> vector<16x64xf32>
    %139 = vector.shape_cast %28 : vector<64xf32> to vector<1x64xf32>
    %140 = vector.broadcast %139 : vector<1x64xf32> to vector<16x64xf32>
    %141 = arith.addf %138, %140 : vector<16x64xf32>
    %cst_57 = arith.constant 0.000000e+00 : f32
    %142 = vector.broadcast %cst_57 : f32 to vector<16x64xf32>
    %143 = arith.maximumf %141, %142 : vector<16x64xf32>
    %144 = arith.truncf %143 : vector<16x64xf32> to vector<16x64xbf16>
    %cst_58 = arith.constant dense<0.000000e+00> : vector<16x32xf32>
    %145 = tpu.matmul %144, %12, %cst_58 {dimension_numbers = #tpu.dot_dimension_numbers<[1], [0], [0], [1], [0, 0, 1, 1], [], []>} : vector<16x64xbf16>, vector<64x32xbf16>, vector<16x32xf32> -> vector<16x32xf32>
    %146 = vector.shape_cast %22 : vector<32xf32> to vector<1x32xf32>
    %147 = vector.broadcast %146 : vector<1x32xf32> to vector<16x32xf32>
    %148 = arith.addf %145, %147 : vector<16x32xf32>
    %149 = vector.shape_cast %148 : vector<16x32xf32> to vector<2x8x32xf32>
    %150 = arith.addf %149, %135 : vector<2x8x32xf32>
    %cst_59 = arith.constant dense<0.000000e+00> : vector<2x8xf32>
    %151 = vector.multi_reduction <add>, %150, %cst_59 [2] : vector<2x8x32xf32> to vector<2x8xf32>
    %152 = vector.shape_cast %151 : vector<2x8xf32> to vector<2x8x1xf32>
    %cst_60 = arith.constant 3.200000e+01 : f32
    %153 = vector.broadcast %cst_60 : f32 to vector<2x8x1xf32>
    %154 = arith.divf %152, %153 : vector<2x8x1xf32>
    %155 = vector.broadcast %154 : vector<2x8x1xf32> to vector<2x8x32xf32>
    %156 = arith.subf %150, %155 : vector<2x8x32xf32>
    %157 = arith.mulf %156, %156 : vector<2x8x32xf32>
    %cst_61 = arith.constant dense<0.000000e+00> : vector<2x8xf32>
    %158 = vector.multi_reduction <add>, %157, %cst_61 [2] : vector<2x8x32xf32> to vector<2x8xf32>
    %159 = vector.shape_cast %158 : vector<2x8xf32> to vector<2x8x1xf32>
    %cst_62 = arith.constant 3.200000e+01 : f32
    %160 = vector.broadcast %cst_62 : f32 to vector<2x8x1xf32>
    %161 = arith.divf %159, %160 : vector<2x8x1xf32>
    %cst_63 = arith.constant 9.99999974E-6 : f32
    %162 = vector.broadcast %cst_63 : f32 to vector<2x8x1xf32>
    %163 = arith.addf %161, %162 : vector<2x8x1xf32>
    %164 = math.rsqrt %163 : vector<2x8x1xf32>
    %165 = vector.broadcast %164 : vector<2x8x1xf32> to vector<2x8x32xf32>
    %166 = arith.mulf %156, %165 : vector<2x8x32xf32>
    %167 = vector.shape_cast %24 : vector<32xf32> to vector<1x1x32xf32>
    %168 = vector.broadcast %167 : vector<1x1x32xf32> to vector<2x8x32xf32>
    %169 = arith.mulf %166, %168 : vector<2x8x32xf32>
    %170 = vector.shape_cast %26 : vector<32xf32> to vector<1x1x32xf32>
    %171 = vector.broadcast %170 : vector<1x1x32xf32> to vector<2x8x32xf32>
    %172 = arith.addf %169, %171 : vector<2x8x32xf32>
    %173 = arith.truncf %172 : vector<2x8x32xf32> to vector<2x8x32xbf16>
    %c0_64 = arith.constant 0 : index
    %c0_65 = arith.constant 0 : index
    %c0_66 = arith.constant 0 : index
    %174 = vector.load %arg10[%c0_64, %c0_65, %c0_66] : memref<2x8x32xbf16, #tpu.memory_space<vmem>>, vector<2x8x32xbf16>
    tpu.vector_store %arg10[%c0_64, %c0_65, %c0_66], %173 {strides = array<i32>} : memref<2x8x32xbf16, #tpu.memory_space<vmem>>, vector<2x8x32xbf16>,
    return
  }
  func.func @transform_0(%arg0: i32, %arg1: i32, %arg2: memref<2xi32, #tpu.memory_space<smem>>) -> (i32, i32, i32) {
    %c0_i32 = arith.constant 0 : i32
    %c0_i32_0 = arith.constant 0 : i32
    %c0_i32_1 = arith.constant 0 : i32
    return %arg0, %c0_i32, %c0_i32_0 : i32, i32, i32
  }
  func.func @transform_1(%arg0: i32, %arg1: i32, %arg2: memref<2xi32, #tpu.memory_space<smem>>) -> (i32, i32, i32) {
    %c0_i32 = arith.constant 0 : i32
    %c0_i32_0 = arith.constant 0 : i32
    %c0_i32_1 = arith.constant 0 : i32
    return %arg1, %c0_i32, %c0_i32_0 : i32, i32, i32
  }
  func.func @transform_2(%arg0: i32, %arg1: i32, %arg2: memref<2xi32, #tpu.memory_space<smem>>) -> (i32, i32, i32) {
    %c0_i32 = arith.constant 0 : i32
    %c0_i32_0 = arith.constant 0 : i32
    %c0_i32_1 = arith.constant 0 : i32
    return %arg1, %c0_i32, %c0_i32_0 : i32, i32, i32
  }
  func.func @transform_3(%arg0: i32, %arg1: i32, %arg2: memref<2xi32, #tpu.memory_space<smem>>) -> (i32, i32, i32) {
    %c0_i32 = arith.constant 0 : i32
    %c0_i32_0 = arith.constant 0 : i32
    %c0_i32_1 = arith.constant 0 : i32
    return %arg1, %c0_i32, %c0_i32_0 : i32, i32, i32
  }
  func.func @transform_4(%arg0: i32, %arg1: i32, %arg2: memref<2xi32, #tpu.memory_space<smem>>) -> (i32, i32, i32) {
    %c0_i32 = arith.constant 0 : i32
    %c0_i32_0 = arith.constant 0 : i32
    %c0_i32_1 = arith.constant 0 : i32
    return %arg1, %c0_i32, %c0_i32_0 : i32, i32, i32
  }
  func.func @transform_5(%arg0: i32, %arg1: i32, %arg2: memref<2xi32, #tpu.memory_space<smem>>) -> (i32, i32, i32) {
    %c0_i32 = arith.constant 0 : i32
    %c0_i32_0 = arith.constant 0 : i32
    %c0_i32_1 = arith.constant 0 : i32
    return %arg1, %c0_i32, %c0_i32_0 : i32, i32, i32
  }
  func.func @transform_6(%arg0: i32, %arg1: i32, %arg2: memref<2xi32, #tpu.memory_space<smem>>) -> (i32, i32, i32) {
    %c0_i32 = arith.constant 0 : i32
    %c0_i32_0 = arith.constant 0 : i32
    %c0_i32_1 = arith.constant 0 : i32
    return %arg1, %c0_i32, %c0_i32_0 : i32, i32, i32
  }
  func.func @transform_7(%arg0: i32, %arg1: i32, %arg2: memref<2xi32, #tpu.memory_space<smem>>) -> (i32, i32, i32) {
    %c0_i32 = arith.constant 0 : i32
    %c0_i32_0 = arith.constant 0 : i32
    %c0_i32_1 = arith.constant 0 : i32
    return %arg0, %c0_i32, %c0_i32_0 : i32, i32, i32
  }
}

module attributes {stable_mosaic.version = 11 : i64} {
  func.func @bert_encoder_kernel(%arg0: i32, %arg1: i32, %arg2: memref<2xi32, #tpu.memory_space<smem>>, %arg3: memref<2x8x32xbf16, #tpu.memory_space<vmem>>, %arg4: memref<1x32x32xbf16, #tpu.memory_space<vmem>>, %arg5: memref<1x32x32xbf16, #tpu.memory_space<vmem>>, %arg6: memref<1x32x64xbf16, #tpu.memory_space<vmem>>, %arg7: memref<1x64x32xbf16, #tpu.memory_space<vmem>>, %arg8: memref<1x7x32xf32, #tpu.memory_space<vmem>>, %arg9: memref<1x1x64xf32, #tpu.memory_space<vmem>>, %arg10: memref<2x8x32xbf16, #tpu.memory_space<vmem>>, %arg11: memref<4x8x16xbf16, #tpu.memory_space<vmem>>) attributes {dimension_semantics = [#tpu.dimension_semantics<parallel>, #tpu.dimension_semantics<arbitrary>], iteration_bounds = array<i64: 1, 2>, scalar_prefetch = 1 : i64, scratch_operands = 1 : i64, tpu.core_type = #tpu.core_type<tc>, window_params = [{transform_indices = @transform_0, window_bounds = array<i64: 2, 8, 32>}, {transform_indices = @transform_1, window_bounds = array<i64: 1, 32, 32>}, {transform_indices = @transform_2, window_bounds = array<i64: 1, 32, 32>}, {transform_indices = @transform_3, window_bounds = array<i64: 1, 32, 64>}, {transform_indices = @transform_4, window_bounds = array<i64: 1, 64, 32>}, {transform_indices = @transform_5, window_bounds = array<i64: 1, 7, 32>}, {transform_indices = @transform_6, window_bounds = array<i64: 1, 1, 64>}, {transform_indices = @transform_7, window_bounds = array<i64: 2, 8, 32>}]} {
    %c0_i32 = arith.constant 0 : i32
    %0 = arith.cmpi eq, %arg1, %c0_i32 : i32
    %1 = arith.extui %0 : i1 to i32
    %c0_i32_0 = arith.constant 0 : i32
    %2 = arith.cmpi ne, %1, %c0_i32_0 : i32
    scf.if %2 {
      %c0_67 = arith.constant 0 : index
      %c0_68 = arith.constant 0 : index
      %c0_69 = arith.constant 0 : index
      %175 = vector.load %arg3[%c0_67, %c0_68, %c0_69] : memref<2x8x32xbf16, #tpu.memory_space<vmem>>, vector<2x8x32xbf16>
      %c0_70 = arith.constant 0 : index
      %c0_71 = arith.constant 0 : index
      %c0_72 = arith.constant 0 : index
      %176 = vector.load %arg10[%c0_70, %c0_71, %c0_72] : memref<2x8x32xbf16, #tpu.memory_space<vmem>>, vector<2x8x32xbf16>
      tpu.vector_store %arg10[%c0_70, %c0_71, %c0_72], %175 {strides = array<i32>} : memref<2x8x32xbf16, #tpu.memory_space<vmem>>, vector<2x8x32xbf16>,
    } else {
    }
    %c0 = arith.constant 0 : index
    %c0_1 = arith.constant 0 : index
    %c0_2 = arith.constant 0 : index
    %3 = vector.load %arg10[%c0, %c0_1, %c0_2] : memref<2x8x32xbf16, #tpu.memory_space<vmem>>, vector<2x8x32xbf16>
    %4 = arith.extf %3 : vector<2x8x32xbf16> to vector<2x8x32xf32>
    %c0_3 = arith.constant 0 : index
    %c0_4 = arith.constant 0 : index
    %c0_5 = arith.constant 0 : index
    %5 = vector.load %arg4[%c0_3, %c0_4, %c0_5] : memref<1x32x32xbf16, #tpu.memory_space<vmem>>, vector<1x32x32xbf16>
    %6 = vector.shape_cast %5 : vector<1x32x32xbf16> to vector<32x32xbf16>
    %c0_6 = arith.constant 0 : index
    %c0_7 = arith.constant 0 : index
    %c0_8 = arith.constant 0 : index
    %7 = vector.load %arg5[%c0_6, %c0_7, %c0_8] : memref<1x32x32xbf16, #tpu.memory_space<vmem>>, vector<1x32x32xbf16>
    %8 = vector.shape_cast %7 : vector<1x32x32xbf16> to vector<32x32xbf16>
    %c0_9 = arith.constant 0 : index
    %c0_10 = arith.constant 0 : index
    %c0_11 = arith.constant 0 : index
    %9 = vector.load %arg6[%c0_9, %c0_10, %c0_11] : memref<1x32x64xbf16, #tpu.memory_space<vmem>>, vector<1x32x64xbf16>
    %10 = vector.shape_cast %9 : vector<1x32x64xbf16> to vector<32x64xbf16>
    %c0_12 = arith.constant 0 : index
    %c0_13 = arith.constant 0 : index
    %c0_14 = arith.constant 0 : index
    %11 = vector.load %arg7[%c0_12, %c0_13, %c0_14] : memref<1x64x32xbf16, #tpu.memory_space<vmem>>, vector<1x64x32xbf16>
    %12 = vector.shape_cast %11 : vector<1x64x32xbf16> to vector<64x32xbf16>
    %c0_15 = arith.constant 0 : index
    %c0_16 = arith.constant 0 : index
    %c0_17 = arith.constant 0 : index
    %13 = vector.load %arg8[%c0_15, %c0_16, %c0_17] : memref<1x7x32xf32, #tpu.memory_space<vmem>>, vector<1x1x32xf32>
    %14 = vector.shape_cast %13 : vector<1x1x32xf32> to vector<32xf32>
    %c0_18 = arith.constant 0 : index
    %c1 = arith.constant 1 : index
    %c0_19 = arith.constant 0 : index
    %15 = vector.load %arg8[%c0_18, %c1, %c0_19] : memref<1x7x32xf32, #tpu.memory_space<vmem>>, vector<1x1x32xf32>
    %16 = vector.shape_cast %15 : vector<1x1x32xf32> to vector<32xf32>
    %c0_20 = arith.constant 0 : index
    %c2 = arith.constant 2 : index
    %c0_21 = arith.constant 0 : index
    %17 = vector.load %arg8[%c0_20, %c2, %c0_21] : memref<1x7x32xf32, #tpu.memory_space<vmem>>, vector<1x1x32xf32>
    %18 = vector.shape_cast %17 : vector<1x1x32xf32> to vector<32xf32>
    %c0_22 = arith.constant 0 : index
    %c3 = arith.constant 3 : index
    %c0_23 = arith.constant 0 : index
    %19 = vector.load %arg8[%c0_22, %c3, %c0_23] : memref<1x7x32xf32, #tpu.memory_space<vmem>>, vector<1x1x32xf32>
    %20 = vector.shape_cast %19 : vector<1x1x32xf32> to vector<32xf32>
    %c0_24 = arith.constant 0 : index
    %c4 = arith.constant 4 : index
    %c0_25 = arith.constant 0 : index
    %21 = vector.load %arg8[%c0_24, %c4, %c0_25] : memref<1x7x32xf32, #tpu.memory_space<vmem>>, vector<1x1x32xf32>
    %22 = vector.shape_cast %21 : vector<1x1x32xf32> to vector<32xf32>
    %c0_26 = arith.constant 0 : index
    %c5 = arith.constant 5 : index
    %c0_27 = arith.constant 0 : index
    %23 = vector.load %arg8[%c0_26, %c5, %c0_27] : memref<1x7x32xf32, #tpu.memory_space<vmem>>, vector<1x1x32xf32>
    %24 = vector.shape_cast %23 : vector<1x1x32xf32> to vector<32xf32>
    %c0_28 = arith.constant 0 : index
    %c6 = arith.constant 6 : index
    %c0_29 = arith.constant 0 : index
    %25 = vector.load %arg8[%c0_28, %c6, %c0_29] : memref<1x7x32xf32, #tpu.memory_space<vmem>>, vector<1x1x32xf32>
    %26 = vector.shape_cast %25 : vector<1x1x32xf32> to vector<32xf32>
    %c0_30 = arith.constant 0 : index
    %c0_31 = arith.constant 0 : index
    %c0_32 = arith.constant 0 : index
    %27 = vector.load %arg9[%c0_30, %c0_31, %c0_32] : memref<1x1x64xf32, #tpu.memory_space<vmem>>, vector<1x1x64xf32>
    %28 = vector.shape_cast %27 : vector<1x1x64xf32> to vector<64xf32>
    %29 = arith.truncf %4 : vector<2x8x32xf32> to vector<2x8x32xbf16>
    %30 = vector.shape_cast %29 : vector<2x8x32xbf16> to vector<16x32xbf16>
    %cst = arith.constant dense<0.000000e+00> : vector<16x32xf32>
    %31 = tpu.matmul %30, %6, %cst {dimension_numbers = #tpu.dot_dimension_numbers<[1], [0], [0], [1], [0, 0, 1, 1], [], []>} : vector<16x32xbf16>, vector<32x32xbf16>, vector<16x32xf32> -> vector<16x32xf32>
    %32 = vector.shape_cast %14 : vector<32xf32> to vector<1x32xf32>
    %33 = vector.broadcast %32 : vector<1x32xf32> to vector<16x32xf32>
    %34 = arith.addf %31, %33 : vector<16x32xf32>
    %35 = vector.shape_cast %34 : vector<16x32xf32> to vector<2x8x32xf32>
    %36 = vector.extract_strided_slice %35 {offsets = [0, 0, 0], sizes = [2, 8, 16], strides = [1, 1, 1]} : vector<2x8x32xf32> to vector<2x8x16xf32>
    %37 = vector.extract_strided_slice %35 {offsets = [0, 0, 16], sizes = [2, 8, 16], strides = [1, 1, 1]} : vector<2x8x32xf32> to vector<2x8x16xf32>
    %38 = vector.shape_cast %36 : vector<2x8x16xf32> to vector<2x1x8x16xf32>
    %39 = vector.shape_cast %37 : vector<2x8x16xf32> to vector<2x1x8x16xf32>
    %40 = tpu.concatenate %38, %39 in 1 : vector<2x1x8x16xf32>, vector<2x1x8x16xf32> -> vector<2x2x8x16xf32>
    %41 = vector.shape_cast %40 : vector<2x2x8x16xf32> to vector<4x8x16xf32>
    %42 = arith.truncf %41 : vector<4x8x16xf32> to vector<4x8x16xbf16>
    %c0_33 = arith.constant 0 : index
    %c0_34 = arith.constant 0 : index
    %c0_35 = arith.constant 0 : index
    %43 = vector.load %arg11[%c0_33, %c0_34, %c0_35] : memref<4x8x16xbf16, #tpu.memory_space<vmem>>, vector<4x8x16xbf16>
    tpu.vector_store %arg11[%c0_33, %c0_34, %c0_35], %42 {strides = array<i32>} : memref<4x8x16xbf16, #tpu.memory_space<vmem>>, vector<4x8x16xbf16>,
    %c2_i32 = arith.constant 2 : i32
    %44 = arith.muli %arg0, %c2_i32 : i32
    %c0_i32_36 = arith.constant 0 : i32
    %45 = arith.addi %44, %c0_i32_36 : i32
    %46 = arith.index_cast %45 : i32 to index
    %47 = memref.load %arg2[%46] : memref<2xi32, #tpu.memory_space<smem>>
    %c1_i32 = arith.constant 1 : i32
    %48 = arith.addi %44, %c1_i32 : i32
    %49 = arith.index_cast %48 : i32 to index
    %50 = memref.load %arg2[%49] : memref<2xi32, #tpu.memory_space<smem>>
    %cst_37 = arith.constant 0xFF800000 : f32
    %51 = vector.broadcast %cst_37 : f32 to vector<4x8x1xf32>
    %cst_38 = arith.constant 0.000000e+00 : f32
    %52 = vector.broadcast %cst_38 : f32 to vector<4x8x1xf32>
    %cst_39 = arith.constant 0.000000e+00 : f32
    %53 = vector.broadcast %cst_39 : f32 to vector<4x8x16xf32>
    %c0_i32_40 = arith.constant 0 : i32
    %c8_i32 = arith.constant 8 : i32
    %54 = arith.muli %c0_i32_40, %c8_i32 : i32
    %55 = tpu.assume_multiple %54, 8 : i32
    %c0_41 = arith.constant 0 : index
    %56 = arith.index_cast %55 : i32 to index
    %c0_42 = arith.constant 0 : index
    %57 = vector.load %arg11[%c0_41, %56, %c0_42] : memref<4x8x16xbf16, #tpu.memory_space<vmem>>, vector<4x8x16xbf16>
    "tpu.trace_start"() <{level = 10 : i32, message = "bqd,bkd->bqk"}> : () -> ()
    %cst_43 = arith.constant dense<0.000000e+00> : vector<4x8x8xf32>
    %58 = tpu.matmul %42, %57, %cst_43 {dimension_numbers = #tpu.dot_dimension_numbers<[2], [2], [1], [1], [0, 0, 0, 1, 1, 1], [0], [0]>} : vector<4x8x16xbf16>, vector<4x8x16xbf16>, vector<4x8x8xf32> -> vector<4x8x8xf32>
    "tpu.trace_stop"() : () -> ()
    %cst_44 = arith.constant 2.500000e-01 : f32
    %59 = vector.broadcast %cst_44 : f32 to vector<4x8x8xf32>
    %60 = arith.mulf %58, %59 : vector<4x8x8xf32>
    %61 = tpu.iota {dimensions = array<i32: 1>} : vector<1x8xi32>
    %62 = vector.broadcast %55 : i32 to vector<1x8xi32>
    %63 = arith.addi %61, %62 : vector<1x8xi32>
    %64 = vector.broadcast %47 : i32 to vector<1x8xi32>
    %65 = arith.cmpi slt, %63, %64 : vector<1x8xi32>
    %66 = vector.broadcast %50 : i32 to vector<1x8xi32>
    %67 = arith.cmpi slt, %63, %66 : vector<1x8xi32>
    %68 = vector.shape_cast %65 : vector<1x8xi1> to vector<1x1x8xi1>
    %69 = vector.shape_cast %67 : vector<1x8xi1> to vector<1x1x8xi1>
    %70 = tpu.concatenate %68, %69 in 0 : vector<1x1x8xi1>, vector<1x1x8xi1> -> vector<2x1x8xi1>
    %71 = vector.shape_cast %70 : vector<2x1x8xi1> to vector<2x1x1x8xi1>
    %72 = vector.shape_cast %71 : vector<2x1x1x8xi1> to vector<2x1x1x8xi1>
    %73 = vector.broadcast %72 : vector<2x1x1x8xi1> to vector<2x2x1x8xi1>
    %74 = vector.shape_cast %73 : vector<2x2x1x8xi1> to vector<4x1x8xi1>
    %cst_45 = arith.constant -1.000000e+06 : f32
    %75 = vector.shape_cast %74 : vector<4x1x8xi1> to vector<4x1x8xi1>
    %76 = vector.broadcast %75 : vector<4x1x8xi1> to vector<4x8x8xi1>
    %77 = vector.broadcast %cst_45 : f32 to vector<4x8x8xf32>
    %78 = arith.select %76, %60, %77 : vector<4x8x8xi1>, vector<4x8x8xf32>
    %cst_46 = arith.constant dense<0xFF800000> : vector<4x8xf32>
    %79 = vector.multi_reduction <maximumf>, %78, %cst_46 [2] : vector<4x8x8xf32> to vector<4x8xf32>
    %80 = vector.shape_cast %79 : vector<4x8xf32> to vector<4x8x1xf32>
    %81 = arith.maximumf %51, %80 : vector<4x8x1xf32>
    %82 = arith.subf %51, %81 : vector<4x8x1xf32>
    %83 = math.exp %82 : vector<4x8x1xf32>
    %84 = vector.broadcast %81 : vector<4x8x1xf32> to vector<4x8x8xf32>
    %85 = arith.subf %78, %84 : vector<4x8x8xf32>
    %86 = arith.truncf %85 : vector<4x8x8xf32> to vector<4x8x8xbf16>
    %87 = math.exp %86 : vector<4x8x8xbf16>
    %88 = arith.mulf %83, %52 : vector<4x8x1xf32>
    %89 = arith.extf %87 : vector<4x8x8xbf16> to vector<4x8x8xf32>
    %cst_47 = arith.constant dense<0.000000e+00> : vector<4x8xf32>
    %90 = vector.multi_reduction <add>, %89, %cst_47 [2] : vector<4x8x8xf32> to vector<4x8xf32>
    %91 = vector.shape_cast %90 : vector<4x8xf32> to vector<4x8x1xf32>
    %92 = arith.addf %88, %91 : vector<4x8x1xf32>
    %93 = vector.broadcast %83 : vector<4x8x1xf32> to vector<4x8x16xf32>
    %94 = arith.mulf %93, %53 : vector<4x8x16xf32>
    "tpu.trace_start"() <{level = 10 : i32, message = "bqk,bkd->bqd"}> : () -> ()
    %cst_48 = arith.constant dense<0.000000e+00> : vector<4x8x16xf32>
    %95 = tpu.matmul %87, %57, %cst_48 {dimension_numbers = #tpu.dot_dimension_numbers<[2], [1], [1], [2], [0, 0, 0, 1, 1, 2], [0], [0]>} : vector<4x8x8xbf16>, vector<4x8x16xbf16>, vector<4x8x16xf32> -> vector<4x8x16xf32>
    "tpu.trace_stop"() : () -> ()
    %96 = arith.addf %94, %95 : vector<4x8x16xf32>
    %c1_i32_49 = arith.constant 1 : i32
    %97 = tpu.reciprocal %92 {approx = true} : vector<4x8x1xf32> -> vector<4x8x1xf32>
    %98 = vector.broadcast %97 : vector<4x8x1xf32> to vector<4x8x16xf32>
    %99 = arith.mulf %96, %98 : vector<4x8x16xf32>
    %100 = vector.shape_cast %99 : vector<4x8x16xf32> to vector<2x2x8x16xf32>
    %101 = vector.extract_strided_slice %100 {offsets = [0, 0, 0, 0], sizes = [2, 1, 8, 16], strides = [1, 1, 1, 1]} : vector<2x2x8x16xf32> to vector<2x1x8x16xf32>
    %102 = vector.shape_cast %101 : vector<2x1x8x16xf32> to vector<2x8x16xf32>
    %103 = vector.extract_strided_slice %100 {offsets = [0, 1, 0, 0], sizes = [2, 1, 8, 16], strides = [1, 1, 1, 1]} : vector<2x2x8x16xf32> to vector<2x1x8x16xf32>
    %104 = vector.shape_cast %103 : vector<2x1x8x16xf32> to vector<2x8x16xf32>
    %105 = tpu.concatenate %102, %104 in 2 : vector<2x8x16xf32>, vector<2x8x16xf32> -> vector<2x8x32xf32>
    %106 = vector.shape_cast %105 : vector<2x8x32xf32> to vector<16x32xf32>
    %107 = arith.truncf %106 : vector<16x32xf32> to vector<16x32xbf16>
    %cst_50 = arith.constant dense<0.000000e+00> : vector<16x32xf32>
    %108 = tpu.matmul %107, %8, %cst_50 {dimension_numbers = #tpu.dot_dimension_numbers<[1], [0], [0], [1], [0, 0, 1, 1], [], []>} : vector<16x32xbf16>, vector<32x32xbf16>, vector<16x32xf32> -> vector<16x32xf32>
    %109 = vector.shape_cast %16 : vector<32xf32> to vector<1x32xf32>
    %110 = vector.broadcast %109 : vector<1x32xf32> to vector<16x32xf32>
    %111 = arith.addf %108, %110 : vector<16x32xf32>
    %112 = vector.shape_cast %111 : vector<16x32xf32> to vector<2x8x32xf32>
    %113 = arith.addf %112, %4 : vector<2x8x32xf32>
    %cst_51 = arith.constant dense<0.000000e+00> : vector<2x8xf32>
    %114 = vector.multi_reduction <add>, %113, %cst_51 [2] : vector<2x8x32xf32> to vector<2x8xf32>
    %115 = vector.shape_cast %114 : vector<2x8xf32> to vector<2x8x1xf32>
    %cst_52 = arith.constant 3.200000e+01 : f32
    %116 = vector.broadcast %cst_52 : f32 to vector<2x8x1xf32>
    %117 = arith.divf %115, %116 : vector<2x8x1xf32>
    %118 = vector.broadcast %117 : vector<2x8x1xf32> to vector<2x8x32xf32>
    %119 = arith.subf %113, %118 : vector<2x8x32xf32>
    %120 = arith.mulf %119, %119 : vector<2x8x32xf32>
    %cst_53 = arith.constant dense<0.000000e+00> : vector<2x8xf32>
    %121 = vector.multi_reduction <add>, %120, %cst_53 [2] : vector<2x8x32xf32> to vector<2x8xf32>
    %122 = vector.shape_cast %121 : vector<2x8xf32> to vector<2x8x1xf32>
    %cst_54 = arith.constant 3.200000e+01 : f32
    %123 = vector.broadcast %cst_54 : f32 to vector<2x8x1xf32>
    %124 = arith.divf %122, %123 : vector<2x8x1xf32>
    %cst_55 = arith.constant 9.99999974E-6 : f32
    %125 = vector.broadcast %cst_55 : f32 to vector<2x8x1xf32>
    %126 = arith.addf %124, %125 : vector<2x8x1xf32>
    %127 = math.rsqrt %126 : vector<2x8x1xf32>
    %128 = vector.broadcast %127 : vector<2x8x1xf32> to vector<2x8x32xf32>
    %129 = arith.mulf %119, %128 : vector<2x8x32xf32>
    %130 = vector.shape_cast %18 : vector<32xf32> to vector<1x1x32xf32>
    %131 = vector.broadcast %130 : vector<1x1x32xf32> to vector<2x8x32xf32>
    %132 = arith.mulf %129, %131 : vector<2x8x32xf32>
    %133 = vector.shape_cast %20 : vector<32xf32> to vector<1x1x32xf32>
    %134 = vector.broadcast %133 : vector<1x1x32xf32> to vector<2x8x32xf32>
    %135 = arith.addf %132, %134 : vector<2x8x32xf32>
    %136 = arith.truncf %135 : vector<2x8x32xf32> to vector<2x8x32xbf16>
    %137 = vector.shape_cast %136 : vector<2x8x32xbf16> to vector<16x32xbf16>
    %cst_56 = arith.constant dense<0.000000e+00> : vector<16x64xf32>
    %138 = tpu.matmul %137, %10, %cst_56 {dimension_numbers = #tpu.dot_dimension_numbers<[1], [0], [0], [1], [0, 0, 1, 1], [], []>} : vector<16x32xbf16>, vector<32x64xbf16>, vector<16x64xf32> -> vector<16x64xf32>
    %139 = vector.shape_cast %28 : vector<64xf32> to vector<1x64xf32>
    %140 = vector.broadcast %139 : vector<1x64xf32> to vector<16x64xf32>
    %141 = arith.addf %138, %140 : vector<16x64xf32>
    %cst_57 = arith.constant 0.000000e+00 : f32
    %142 = vector.broadcast %cst_57 : f32 to vector<16x64xf32>
    %143 = arith.maximumf %141, %142 : vector<16x64xf32>
    %144 = arith.truncf %143 : vector<16x64xf32> to vector<16x64xbf16>
    %cst_58 = arith.constant dense<0.000000e+00> : vector<16x32xf32>
    %145 = tpu.matmul %144, %12, %cst_58 {dimension_numbers = #tpu.dot_dimension_numbers<[1], [0], [0], [1], [0, 0, 1, 1], [], []>} : vector<16x64xbf16>, vector<64x32xbf16>, vector<16x32xf32> -> vector<16x32xf32>
    %146 = vector.shape_cast %22 : vector<32xf32> to vector<1x32xf32>
    %147 = vector.broadcast %146 : vector<1x32xf32> to vector<16x32xf32>
    %148 = arith.addf %145, %147 : vector<16x32xf32>
    %149 = vector.shape_cast %148 : vector<16x32xf32> to vector<2x8x32xf32>
    %150 = arith.addf %149, %135 : vector<2x8x32xf32>
    %cst_59 = arith.constant dense<0.000000e+00> : vector<2x8xf32>
    %151 = vector.multi_reduction <add>, %150, %cst_59 [2] : vector<2x8x32xf32> to vector<2x8xf32>
    %152 = vector.shape_cast %151 : vector<2x8xf32> to vector<2x8x1xf32>
    %cst_60 = arith.constant 3.200000e+01 : f32
    %153 = vector.broadcast %cst_60 : f32 to vector<2x8x1xf32>
    %154 = arith.divf %152, %153 : vector<2x8x1xf32>
    %155 = vector.broadcast %154 : vector<2x8x1xf32> to vector<2x8x32xf32>
    %156 = arith.subf %150, %155 : vector<2x8x32xf32>
    %157 = arith.mulf %156, %156 : vector<2x8x32xf32>
    %cst_61 = arith.constant dense<0.000000e+00> : vector<2x8xf32>
    %158 = vector.multi_reduction <add>, %157, %cst_61 [2] : vector<2x8x32xf32> to vector<2x8xf32>
    %159 = vector.shape_cast %158 : vector<2x8xf32> to vector<2x8x1xf32>
    %cst_62 = arith.constant 3.200000e+01 : f32
    %160 = vector.broadcast %cst_62 : f32 to vector<2x8x1xf32>
    %161 = arith.divf %159, %160 : vector<2x8x1xf32>
    %cst_63 = arith.constant 9.99999974E-6 : f32
    %162 = vector.broadcast %cst_63 : f32 to vector<2x8x1xf32>
    %163 = arith.addf %161, %162 : vector<2x8x1xf32>
    %164 = math.rsqrt %163 : vector<2x8x1xf32>
    %165 = vector.broadcast %164 : vector<2x8x1xf32> to vector<2x8x32xf32>
    %166 = arith.mulf %156, %165 : vector<2x8x32xf32>
    %167 = vector.shape_cast %24 : vector<32xf32> to vector<1x1x32xf32>
    %168 = vector.broadcast %167 : vector<1x1x32xf32> to vector<2x8x32xf32>
    %169 = arith.mulf %166, %168 : vector<2x8x32xf32>
    %170 = vector.shape_cast %26 : vector<32xf32> to vector<1x1x32xf32>
    %171 = vector.broadcast %170 : vector<1x1x32xf32> to vector<2x8x32xf32>
    %172 = arith.addf %169, %171 : vector<2x8x32xf32>
    %173 = arith.truncf %172 : vector<2x8x32xf32> to vector<2x8x32xbf16>
    %c0_64 = arith.constant 0 : index
    %c0_65 = arith.constant 0 : index
    %c0_66 = arith.constant 0 : index
    %174 = vector.load %arg10[%c0_64, %c0_65, %c0_66] : memref<2x8x32xbf16, #tpu.memory_space<vmem>>, vector<2x8x32xbf16>
    tpu.vector_store %arg10[%c0_64, %c0_65, %c0_66], %173 {strides = array<i32>} : memref<2x8x32xbf16, #tpu.memory_space<vmem>>, vector<2x8x32xbf16>,
    return
  }
  func.func @transform_0(%arg0: i32, %arg1: i32, %arg2: memref<2xi32, #tpu.memory_space<smem>>) -> (i32, i32, i32) {
    %c0_i32 = arith.constant 0 : i32
    %c0_i32_0 = arith.constant 0 : i32
    %c0_i32_1 = arith.constant 0 : i32
    return %arg0, %c0_i32, %c0_i32_0 : i32, i32, i32
  }
  func.func @transform_1(%arg0: i32, %arg1: i32, %arg2: memref<2xi32, #tpu.memory_space<smem>>) -> (i32, i32, i32) {
    %c0_i32 = arith.constant 0 : i32
    %c0_i32_0 = arith.constant 0 : i32
    %c0_i32_1 = arith.constant 0 : i32
    return %arg1, %c0_i32, %c0_i32_0 : i32, i32, i32
  }
  func.func @transform_2(%arg0: i32, %arg1: i32, %arg2: memref<2xi32, #tpu.memory_space<smem>>) -> (i32, i32, i32) {
    %c0_i32 = arith.constant 0 : i32
    %c0_i32_0 = arith.constant 0 : i32
    %c0_i32_1 = arith.constant 0 : i32
    return %arg1, %c0_i32, %c0_i32_0 : i32, i32, i32
  }
  func.func @transform_3(%arg0: i32, %arg1: i32, %arg2: memref<2xi32, #tpu.memory_space<smem>>) -> (i32, i32, i32) {
    %c0_i32 = arith.constant 0 : i32
    %c0_i32_0 = arith.constant 0 : i32
    %c0_i32_1 = arith.constant 0 : i32
    return %arg1, %c0_i32, %c0_i32_0 : i32, i32, i32
  }
  func.func @transform_4(%arg0: i32, %arg1: i32, %arg2: memref<2xi32, #tpu.memory_space<smem>>) -> (i32, i32, i32) {
    %c0_i32 = arith.constant 0 : i32
    %c0_i32_0 = arith.constant 0 : i32
    %c0_i32_1 = arith.constant 0 : i32
    return %arg1, %c0_i32, %c0_i32_0 : i32, i32, i32
  }
  func.func @transform_5(%arg0: i32, %arg1: i32, %arg2: memref<2xi32, #tpu.memory_space<smem>>) -> (i32, i32, i32) {
    %c0_i32 = arith.constant 0 : i32
    %c0_i32_0 = arith.constant 0 : i32
    %c0_i32_1 = arith.constant 0 : i32
    return %arg1, %c0_i32, %c0_i32_0 : i32, i32, i32
  }
  func.func @transform_6(%arg0: i32, %arg1: i32, %arg2: memref<2xi32, #tpu.memory_space<smem>>) -> (i32, i32, i32) {
    %c0_i32 = arith.constant 0 : i32
    %c0_i32_0 = arith.constant 0 : i32
    %c0_i32_1 = arith.constant 0 : i32
    return %arg1, %c0_i32, %c0_i32_0 : i32, i32, i32
  }
  func.func @transform_7(%arg0: i32, %arg1: i32, %arg2: memref<2xi32, #tpu.memory_space<smem>>) -> (i32, i32, i32) {
    %c0_i32 = arith.constant 0 : i32
    %c0_i32_0 = arith.constant 0 : i32
    %c0_i32_1 = arith.constant 0 : i32
    return %arg0, %c0_i32, %c0_i32_0 : i32, i32, i32
  }
}

</mosaic_0001>

<llo_original>
// kernel: tpu_custom_call.1
$region0: #{tpu_custom_call.1}
  #allocation0 [shape = 'u32[]', space=smem, size = 0x4, offset = 0x4, fixed_abs, tag = 'smem constant byte address 0x4 - core index']
  #allocation1 [shape = 'u32[144,128]{1,0:T(1,128)}', space=vmem, size = 0x12000, scoped, tag = 'internal scratch']
  #allocation2 [shape = 'bf16[4,8,16]{2,1,0:T(8,128)(2,1)}', space=vmem, size = 0x2000, scoped, tag = 'scratch operand']
  #allocation3 [shape = 's32[1]{0}', space=sflag, size = 0x4, scoped, tag = 'scoped memory for tpu_custom_call.1']
  #allocation4 [shape = 'u8[512]{0}', space=smem, size = 0x200, scoped, tag = 'prefetched SMEM operand 0']
  %s0 = inlined_call_operand.vmem [shape: s32[2], index: 0, kind: input, shape index: {}]
  %s1 = inlined_call_operand.hbm [shape: bf16[2,8,32], index: 1, kind: input, shape index: {}, may-alias: {1,8}]
  %s2 = inlined_call_operand.vmem [shape: bf16[2,32,32], index: 2, kind: input, shape index: {}]
  %s3 = inlined_call_operand.vmem [shape: bf16[2,32,32], index: 3, kind: input, shape index: {}]
  %s4 = inlined_call_operand.vmem [shape: bf16[2,32,64], index: 4, kind: input, shape index: {}]
  %s5 = inlined_call_operand.vmem [shape: bf16[2,64,32], index: 5, kind: input, shape index: {}]
  %s6 = inlined_call_operand.vmem [shape: f32[2,7,32], index: 6, kind: input, shape index: {}]
  %s7 = inlined_call_operand.vmem [shape: f32[2,1,64], index: 7, kind: input, shape index: {}]
  %s8 = inlined_call_operand.hbm [shape: bf16[2,8,32], index: 8, kind: output, shape index: {}, may-alias: {1,8}]
  %s9 = sld [smem:[#allocation0]]
  $region69: #{tpu_custom_call.1} parent=0
    _
  %s11 = ssub.s32 1, %s9
  %s12 = scalar_select 0, %s11, %s9
  %s13 = sshll.u32 %s0, 4
  %s14 = int_to_ptr.vmem [resolvable:$true] %s13
  %16 = dma.vmem_to_smem %s14, 16, [#allocation4], [#allocation3]
  %17 = dma.done [#allocation3], 16
  %18 = sfence
  $region1: #{tpu_custom_call.1} parent=0
    #allocation5 [shape = 'u8[4096]{0}', space=vmem, size = 0x1000, scoped, tag = 'input window, operand 1, single buffered']
    #allocation6 [shape = 's32[2]{0}', space=sflag, size = 0x8, scoped, tag = 'scoped memory for tpu_custom_call.1']
    #allocation7 [shape = 's32[2]{0}', space=sflag, size = 0x8, scoped, tag = 'scoped memory for tpu_custom_call.1']
    #allocation8 [shape = 'u8[4096]{0}', space=vmem, size = 0x1000, scoped, tag = 'output window, operand 0, single buffered']
    %19 = vsyncpa [#allocation6], 0
    %20 = vsyncpa [#allocation7], 0
    loop: start=0, step=1, limit=4
    $region2: #{tpu_custom_call.1} parent=1 // loop_pre_header
      _
    $region3: #{tpu_custom_call.1} parent=1 // loop_header
      %s22 = sphi 0, %s26
      %p23 = scmp.ge.s32.totalorder %s22, 4
      %s29 = sphi 0, %s41
      %s30 = sphi 0, %s37
      %s31 = sphi 0, %s29
      %s32 = sphi 0, %s30
      %s33 = sphi 0, %s31
      %s34 = sphi 0, %s32
      %s44 = sphi 0, %s46
      %s47 = sphi 0, %s44
      %s48 = sphi 0, %s47
      %s64 = sphi 0, %s48
      %s70 = sphi 0, %s72
      %s73 = sphi 0, %s70
      %s74 = sphi 0, %s73
      %s90 = sphi 0, %s74
      %s96 = sphi 0, %s98
      %s99 = sphi 0, %s96
      %s100 = sphi 0, %s99
      %s116 = sphi 0, %s100
      %s122 = sphi 0, %s124
      %s125 = sphi 0, %s122
      %s126 = sphi 0, %s125
      %s142 = sphi 0, %s126
      %s148 = sphi 0, %s150
      %s151 = sphi 0, %s148
      %s152 = sphi 0, %s151
      %s168 = sphi 0, %s152
      %s174 = sphi 0, %s176
      %s177 = sphi 0, %s174
      %s178 = sphi 0, %s177
      %s194 = sphi 0, %s178
      %s200 = sphi 0, %s202
      %s203 = sphi 0, %s200
      %s204 = sphi 0, %s203
      %s220 = sphi 0, %s204
      %s226 = sphi 0, %s228
      %s229 = sphi 0, %s226
      %s230 = sphi 0, %s229
      %s246 = sphi 0, %s230
    $region4: #{tpu_custom_call.1} parent=1 // loop_header_branch
      %25 = sbr.rel (%p23) target = $region8
    $region5: #{tpu_custom_call.1} parent=1 // loop_body
      %s27 = ssub.s32 %s22, 1
      %s28 = ssub.s32 %s22, 2
      %s35 = sadd.s32 1, %s30
      %p36 = scmp.ge.s32.totalorder %s35, 2
      %s37 = scalar_select %p36, 0, %s35
      %s38 = sadd.s32 1, %s29
      %s39 = scalar_select %p36, %s38, %s29
      %p40 = scmp.ge.s32.totalorder %s39, 1
      %s41 = scalar_select %p40, 0, %s39
      %s42 = ssub.s32 %s29, %s41
      %p43 = scmp.eq.s32.totalorder %s42, 0
      %s45 = sadd.s32 %s44, 1
      %s46 = scalar_select %p43, %s44, %s45
      %p49 = pneg %p43
      %p50 = scmp.eq.s32.totalorder %s22, 1
      %p51 = por %p49, %p50
      %p52 = scmp.ne.s32.totalorder %s44, %s47
      %p53 = scmp.eq.s32.totalorder %s22, 0
      %p54 = por %p52, %p53
      %p55 = scmp.ne.s32.totalorder %s44, %s47
      %p56 = scmp.eq.s32.totalorder %s27, 1
      %p57 = por %p55, %p56
      %p58 = scmp.ne.s32.totalorder %s47, %s48
      %p59 = scmp.eq.s32.totalorder %s27, 0
      %p60 = por %p58, %p59
      %p61 = scmp.ne.s32.totalorder %s47, %s48
      %p62 = scmp.eq.s32.totalorder %s28, 1
      %p63 = por %p61, %p62
      %p65 = scmp.ne.s32.totalorder %s48, %s64
      %p66 = scmp.eq.s32.totalorder %s28, 0
      %p67 = por %p65, %p66
      %s68 = ssub.s32 %s30, %s37
      %p69 = scmp.eq.s32.totalorder %s68, 0
      %s71 = sadd.s32 %s70, 1
      %s72 = scalar_select %p69, %s70, %s71
      %p75 = pneg %p69
      %p76 = scmp.eq.s32.totalorder %s22, 1
      %p77 = por %p75, %p76
      %p78 = scmp.ne.s32.totalorder %s70, %s73
      %p79 = scmp.eq.s32.totalorder %s22, 0
      %p80 = por %p78, %p79
      %p81 = scmp.ne.s32.totalorder %s70, %s73
      %p82 = scmp.eq.s32.totalorder %s27, 1
      %p83 = por %p81, %p82
      %p84 = scmp.ne.s32.totalorder %s73, %s74
      %p85 = scmp.eq.s32.totalorder %s27, 0
      %p86 = por %p84, %p85
      %p87 = scmp.ne.s32.totalorder %s73, %s74
      %p88 = scmp.eq.s32.totalorder %s28, 1
      %p89 = por %p87, %p88
      %p91 = scmp.ne.s32.totalorder %s74, %s90
      %p92 = scmp.eq.s32.totalorder %s28, 0
      %p93 = por %p91, %p92
      %s94 = ssub.s32 %s30, %s37
      %p95 = scmp.eq.s32.totalorder %s94, 0
      %s97 = sadd.s32 %s96, 1
      %s98 = scalar_select %p95, %s96, %s97
      %p101 = pneg %p95
      %p102 = scmp.eq.s32.totalorder %s22, 1
      %p103 = por %p101, %p102
      %p104 = scmp.ne.s32.totalorder %s96, %s99
      %p105 = scmp.eq.s32.totalorder %s22, 0
      %p106 = por %p104, %p105
      %p107 = scmp.ne.s32.totalorder %s96, %s99
      %p108 = scmp.eq.s32.totalorder %s27, 1
      %p109 = por %p107, %p108
      %p110 = scmp.ne.s32.totalorder %s99, %s100
      %p111 = scmp.eq.s32.totalorder %s27, 0
      %p112 = por %p110, %p111
      %p113 = scmp.ne.s32.totalorder %s99, %s100
      %p114 = scmp.eq.s32.totalorder %s28, 1
      %p115 = por %p113, %p114
      %p117 = scmp.ne.s32.totalorder %s100, %s116
      %p118 = scmp.eq.s32.totalorder %s28, 0
      %p119 = por %p117, %p118
      %s120 = ssub.s32 %s30, %s37
      %p121 = scmp.eq.s32.totalorder %s120, 0
      %s123 = sadd.s32 %s122, 1
      %s124 = scalar_select %p121, %s122, %s123
      %p127 = pneg %p121
      %p128 = scmp.eq.s32.totalorder %s22, 1
      %p129 = por %p127, %p128
      %p130 = scmp.ne.s32.totalorder %s122, %s125
      %p131 = scmp.eq.s32.totalorder %s22, 0
      %p132 = por %p130, %p131
      %p133 = scmp.ne.s32.totalorder %s122, %s125
      %p134 = scmp.eq.s32.totalorder %s27, 1
      %p135 = por %p133, %p134
      %p136 = scmp.ne.s32.totalorder %s125, %s126
      %p137 = scmp.eq.s32.totalorder %s27, 0
      %p138 = por %p136, %p137
      %p139 = scmp.ne.s32.totalorder %s125, %s126
      %p140 = scmp.eq.s32.totalorder %s28, 1
      %p141 = por %p139, %p140
      %p143 = scmp.ne.s32.totalorder %s126, %s142
      %p144 = scmp.eq.s32.totalorder %s28, 0
      %p145 = por %p143, %p144
      %s146 = ssub.s32 %s30, %s37
      %p147 = scmp.eq.s32.totalorder %s146, 0
      %s149 = sadd.s32 %s148, 1
      %s150 = scalar_select %p147, %s148, %s149
      %p153 = pneg %p147
      %p154 = scmp.eq.s32.totalorder %s22, 1
      %p155 = por %p153, %p154
      %p156 = scmp.ne.s32.totalorder %s148, %s151
      %p157 = scmp.eq.s32.totalorder %s22, 0
      %p158 = por %p156, %p157
      %p159 = scmp.ne.s32.totalorder %s148, %s151
      %p160 = scmp.eq.s32.totalorder %s27, 1
      %p161 = por %p159, %p160
      %p162 = scmp.ne.s32.totalorder %s151, %s152
      %p163 = scmp.eq.s32.totalorder %s27, 0
      %p164 = por %p162, %p163
      %p165 = scmp.ne.s32.totalorder %s151, %s152
      %p166 = scmp.eq.s32.totalorder %s28, 1
      %p167 = por %p165, %p166
      %p169 = scmp.ne.s32.totalorder %s152, %s168
      %p170 = scmp.eq.s32.totalorder %s28, 0
      %p171 = por %p169, %p170
      %s172 = ssub.s32 %s30, %s37
      %p173 = scmp.eq.s32.totalorder %s172, 0
      %s175 = sadd.s32 %s174, 1
      %s176 = scalar_select %p173, %s174, %s175
      %p179 = pneg %p173
      %p180 = scmp.eq.s32.totalorder %s22, 1
      %p181 = por %p179, %p180
      %p182 = scmp.ne.s32.totalorder %s174, %s177
      %p183 = scmp.eq.s32.totalorder %s22, 0
      %p184 = por %p182, %p183
      %p185 = scmp.ne.s32.totalorder %s174, %s177
      %p186 = scmp.eq.s32.totalorder %s27, 1
      %p187 = por %p185, %p186
      %p188 = scmp.ne.s32.totalorder %s177, %s178
      %p189 = scmp.eq.s32.totalorder %s27, 0
      %p190 = por %p188, %p189
      %p191 = scmp.ne.s32.totalorder %s177, %s178
      %p192 = scmp.eq.s32.totalorder %s28, 1
      %p193 = por %p191, %p192
      %p195 = scmp.ne.s32.totalorder %s178, %s194
      %p196 = scmp.eq.s32.totalorder %s28, 0
      %p197 = por %p195, %p196
      %s198 = ssub.s32 %s30, %s37
      %p199 = scmp.eq.s32.totalorder %s198, 0
      %s201 = sadd.s32 %s200, 1
      %s202 = scalar_select %p199, %s200, %s201
      %p205 = pneg %p199
      %p206 = scmp.eq.s32.totalorder %s22, 1
      %p207 = por %p205, %p206
      %p208 = scmp.ne.s32.totalorder %s200, %s203
      %p209 = scmp.eq.s32.totalorder %s22, 0
      %p210 = por %p208, %p209
      %p211 = scmp.ne.s32.totalorder %s200, %s203
      %p212 = scmp.eq.s32.totalorder %s27, 1
      %p213 = por %p211, %p212
      %p214 = scmp.ne.s32.totalorder %s203, %s204
      %p215 = scmp.eq.s32.totalorder %s27, 0
      %p216 = por %p214, %p215
      %p217 = scmp.ne.s32.totalorder %s203, %s204
      %p218 = scmp.eq.s32.totalorder %s28, 1
      %p219 = por %p217, %p218
      %p221 = scmp.ne.s32.totalorder %s204, %s220
      %p222 = scmp.eq.s32.totalorder %s28, 0
      %p223 = por %p221, %p222
      %s224 = ssub.s32 %s29, %s41
      %p225 = scmp.eq.s32.totalorder %s224, 0
      %s227 = sadd.s32 %s226, 1
      %s228 = scalar_select %p225, %s226, %s227
      %p231 = pneg %p225
      %p232 = scmp.eq.s32.totalorder %s22, 1
      %p233 = por %p231, %p232
      %p234 = scmp.ne.s32.totalorder %s226, %s229
      %p235 = scmp.eq.s32.totalorder %s22, 0
      %p236 = por %p234, %p235
      %p237 = scmp.ne.s32.totalorder %s226, %s229
      %p238 = scmp.eq.s32.totalorder %s27, 1
      %p239 = por %p237, %p238
      %p240 = scmp.ne.s32.totalorder %s229, %s230
      %p241 = scmp.eq.s32.totalorder %s27, 0
      %p242 = por %p240, %p241
      %p243 = scmp.ne.s32.totalorder %s229, %s230
      %p244 = scmp.eq.s32.totalorder %s28, 1
      %p245 = por %p243, %p244
      %p247 = scmp.ne.s32.totalorder %s230, %s246
      %p248 = scmp.eq.s32.totalorder %s28, 0
      %p249 = por %p247, %p248
      %p250 = scmp.le.s32.totalorder 1, %s22
      %p251 = scmp.lt.s32.totalorder %s22, 3
      %p252 = pnand %p250, %p251
      %p253 = pneg %p252
      // Predicated region
      $region9: #{tpu_custom_call.1} parent=5 // pred_check
        _
      $region10: #{tpu_custom_call.1} parent=5 // pred_check_branch
        %255 = sbr.rel (%p252) target = $region12
      $region11: #{tpu_custom_call.1} parent=5 // pred_region
        %s256 = ssub.s32 %s22, 1
        // Predicated region
        $region13: #{tpu_custom_call.1} parent=11 // pred_check
          %p257 = pneg %p60
        $region14: #{tpu_custom_call.1} parent=11 // pred_check_branch
          %259 = sbr.rel (%p257) target = $region16
        $region15: #{tpu_custom_call.1} parent=11 // pred_region
          %s260 = smul.u32 2, %s31
          %s262 = ssub.s32 128, 128
          %263 = vsyncadd [#allocation6], %s262
          %s264 = smul.addr %s260, 64
          %s265 = scalar_lea.hbm %s1, %s264
          %s266 = sshll.u32 [#allocation5], 4
          %s267 = int_to_ptr.vmem [resolvable:$true] %s266
          %272 = dma.hbm_to_vmem [thread:$0]  %s265, 128, %s267, [#allocation6], 64, 64, 4
        $region16: #{tpu_custom_call.1} parent=11 // pred_fallthru
          _
      $region12: #{tpu_custom_call.1} parent=5 // pred_fallthru
        _
      %p273 = scmp.lt.s32.totalorder %s22, 2
      // Predicated region
      $region17: #{tpu_custom_call.1} parent=5 // pred_check
        %p274 = pneg %p273
      $region18: #{tpu_custom_call.1} parent=5 // pred_check_branch
        %276 = sbr.rel (%p274) target = $region20
      $region19: #{tpu_custom_call.1} parent=5 // pred_region
        // Predicated region
        $region21: #{tpu_custom_call.1} parent=19 // pred_check
          %p277 = pneg %p80
        $region22: #{tpu_custom_call.1} parent=19 // pred_check_branch
          %279 = sbr.rel (%p277) target = $region24
        $region23: #{tpu_custom_call.1} parent=19 // pred_region
          %p280 = scmp.lt.s32.totalorder %s30, 1
          %s281 = scalar_select %p280, %s30, 1
          %s282 = smul.addr %s281, 4
          %s283 = smul.addr %s282, 4
          %s284 = scalar_lea.vmem %s2, %s283
        $region24: #{tpu_custom_call.1} parent=19 // pred_fallthru
          _
        // Predicated region
        $region25: #{tpu_custom_call.1} parent=19 // pred_check
          %p285 = pneg %p106
        $region26: #{tpu_custom_call.1} parent=19 // pred_check_branch
          %287 = sbr.rel (%p285) target = $region28
        $region27: #{tpu_custom_call.1} parent=19 // pred_region
          %p288 = scmp.lt.s32.totalorder %s30, 1
          %s289 = scalar_select %p288, %s30, 1
          %s290 = smul.addr %s289, 4
          %s291 = smul.addr %s290, 4
          %s292 = scalar_lea.vmem %s3, %s291
        $region28: #{tpu_custom_call.1} parent=19 // pred_fallthru
          _
        // Predicated region
        $region29: #{tpu_custom_call.1} parent=19 // pred_check
          %p293 = pneg %p132
        $region30: #{tpu_custom_call.1} parent=19 // pred_check_branch
          %295 = sbr.rel (%p293) target = $region32
        $region31: #{tpu_custom_call.1} parent=19 // pred_region
          %p296 = scmp.lt.s32.totalorder %s30, 1
          %s297 = scalar_select %p296, %s30, 1
          %s298 = smul.addr %s297, 4
          %s299 = smul.addr %s298, 4
          %s300 = scalar_lea.vmem %s4, %s299
        $region32: #{tpu_custom_call.1} parent=19 // pred_fallthru
          _
        // Predicated region
        $region33: #{tpu_custom_call.1} parent=19 // pred_check
          %p301 = pneg %p158
        $region34: #{tpu_custom_call.1} parent=19 // pred_check_branch
          %303 = sbr.rel (%p301) target = $region36
        $region35: #{tpu_custom_call.1} parent=19 // pred_region
          %p304 = scmp.lt.s32.totalorder %s30, 1
          %s305 = scalar_select %p304, %s30, 1
          %s306 = smul.addr %s305, 8
          %s307 = smul.addr %s306, 4
          %s308 = scalar_lea.vmem %s5, %s307
        $region36: #{tpu_custom_call.1} parent=19 // pred_fallthru
          _
        // Predicated region
        $region37: #{tpu_custom_call.1} parent=19 // pred_check
          %p309 = pneg %p184
        $region38: #{tpu_custom_call.1} parent=19 // pred_check_branch
          %311 = sbr.rel (%p309) target = $region40
        $region39: #{tpu_custom_call.1} parent=19 // pred_region
          %p312 = scmp.lt.s32.totalorder %s30, 1
          %s313 = scalar_select %p312, %s30, 1
          %s314 = smul.addr %s313, 8
          %s315 = scalar_lea.vmem %s6, %s314
        $region40: #{tpu_custom_call.1} parent=19 // pred_fallthru
          _
        // Predicated region
        $region41: #{tpu_custom_call.1} parent=19 // pred_check
          %p316 = pneg %p210
        $region42: #{tpu_custom_call.1} parent=19 // pred_check_branch
          %318 = sbr.rel (%p316) target = $region44
        $region43: #{tpu_custom_call.1} parent=19 // pred_region
          %p319 = scmp.lt.s32.totalorder %s30, 1
          %s320 = scalar_select %p319, %s30, 1
          %s321 = scalar_lea.vmem %s7, %s320
        $region44: #{tpu_custom_call.1} parent=19 // pred_fallthru
          _
      $region20: #{tpu_custom_call.1} parent=5 // pred_fallthru
        _
      %p322 = scmp.le.s32.totalorder 1, %s22
      %p323 = scmp.lt.s32.totalorder %s22, 3
      %p324 = pnand %p322, %p323
      %p325 = pneg %p324
      // Predicated region
      $region45: #{tpu_custom_call.1} parent=5 // pred_check
        _
      $region46: #{tpu_custom_call.1} parent=5 // pred_check_branch
        %327 = sbr.rel (%p324) target = $region48
      $region47: #{tpu_custom_call.1} parent=5 // pred_region
        %s328 = ssub.s32 %s22, 1
        // Predicated region
        $region49: #{tpu_custom_call.1} parent=47 // pred_check
          %p329 = pneg %p60
        $region50: #{tpu_custom_call.1} parent=47 // pred_check_branch
          %331 = sbr.rel (%p329) target = $region52
        $region51: #{tpu_custom_call.1} parent=47 // pred_region
          %332 = dma.done [#allocation6], 128
        $region52: #{tpu_custom_call.1} parent=47 // pred_fallthru
          _
        %p333 = pneg %p60
        %p334 = pneg %p57
        %p335 = scmp.lt.s32.totalorder %s32, 1
        %s336 = scalar_select %p335, %s32, 1
        %s337 = smul.addr %s336, 4
        %s338 = smul.addr %s337, 4
        %s339 = scalar_lea.vmem %s2, %s338
        %p340 = pneg %p86
        %p341 = pneg %p83
        %p342 = scmp.lt.s32.totalorder %s32, 1
        %s343 = scalar_select %p342, %s32, 1
        %s344 = smul.addr %s343, 4
        %s345 = smul.addr %s344, 4
        %s346 = scalar_lea.vmem %s3, %s345
        %p347 = pneg %p112
        %p348 = pneg %p109
        %p349 = scmp.lt.s32.totalorder %s32, 1
        %s350 = scalar_select %p349, %s32, 1
        %s351 = smul.addr %s350, 4
        %s352 = smul.addr %s351, 4
        %s353 = scalar_lea.vmem %s4, %s352
        %p354 = pneg %p138
        %p355 = pneg %p135
        %p356 = scmp.lt.s32.totalorder %s32, 1
        %s357 = scalar_select %p356, %s32, 1
        %s358 = smul.addr %s357, 8
        %s359 = smul.addr %s358, 4
        %s360 = scalar_lea.vmem %s5, %s359
        %p361 = pneg %p164
        %p362 = pneg %p161
        %p363 = scmp.lt.s32.totalorder %s32, 1
        %s364 = scalar_select %p363, %s32, 1
        %s365 = smul.addr %s364, 8
        %s366 = scalar_lea.vmem %s6, %s365
        %p367 = pneg %p190
        %p368 = pneg %p187
        %p369 = scmp.lt.s32.totalorder %s32, 1
        %s370 = scalar_select %p369, %s32, 1
        %s371 = scalar_lea.vmem %s7, %s370
        %p372 = pneg %p216
        %p373 = pneg %p213
        %p374 = pneg %p242
        %p375 = pneg %p239
        %s376 = smul.u32 2, %s31
        %p377 = scmp.lt.s32.totalorder %s32, 1
        %s378 = scalar_select %p377, %s32, 1
        %s379 = smul.addr %s378, 4
        %s380 = smul.addr %s379, 4
        %s381 = scalar_lea.vmem %s2, %s380
        %p382 = scmp.lt.s32.totalorder %s32, 1
        %s383 = scalar_select %p382, %s32, 1
        %s384 = smul.addr %s383, 4
        %s385 = smul.addr %s384, 4
        %s386 = scalar_lea.vmem %s3, %s385
        %p387 = scmp.lt.s32.totalorder %s32, 1
        %s388 = scalar_select %p387, %s32, 1
        %s389 = smul.addr %s388, 4
        %s390 = smul.addr %s389, 4
        %s391 = scalar_lea.vmem %s4, %s390
        %p392 = scmp.lt.s32.totalorder %s32, 1
        %s393 = scalar_select %p392, %s32, 1
        %s394 = smul.addr %s393, 8
        %s395 = smul.addr %s394, 4
        %s396 = scalar_lea.vmem %s5, %s395
        %p397 = scmp.lt.s32.totalorder %s32, 1
        %s398 = scalar_select %p397, %s32, 1
        %s399 = smul.addr %s398, 8
        %s400 = scalar_lea.vmem %s6, %s399
        %p401 = scmp.lt.s32.totalorder %s32, 1
        %s402 = scalar_select %p401, %s32, 1
        %s403 = scalar_lea.vmem %s7, %s402
        %s404 = smul.u32 2, %s31
        %p406 = scmp.eq.s32.totalorder %s32, 0
        // Predicated region
        $region53: #{tpu_custom_call.1} parent=47 // pred_check
          %p407 = pneg %p406
        $region54: #{tpu_custom_call.1} parent=47 // pred_check_branch
          %409 = sbr.rel (%p407) target = $region56
        $region55: #{tpu_custom_call.1} parent=47 // pred_region
          %v410 = vld [vmem:[#allocation5] sm:$0xf]
          %v411 = vld [vmem:[#allocation5 + $0x4] sm:$0xf]
          %vm412 = vcmask 257024
          %413 = vst.msk [vmem:[#allocation8] sm:$0xf] %vm412, %v410
          %414 = vst.msk [vmem:[#allocation8 + $0x4] sm:$0xf] %vm412, %v411
        $region56: #{tpu_custom_call.1} parent=47 // pred_fallthru
          _
        %v415 = vld [vmem:[#allocation8] sm:$0xf]
        %v416 = vld [vmem:[#allocation8 + $0x4] sm:$0xf]
        %v417 = vunpack.c.l.bf16 %v415
        %v418 = vunpack.c.l.bf16 %v416
        %v419 = vld [vmem:[%s381] sm:$0xf]
        %v420 = vld [vmem:[%s381 + $0x4] sm:$0xf]
        %v421 = vld [vmem:[%s381 + $0x8] sm:$0xf]
        %v422 = vld [vmem:[%s381 + $0xc] sm:$0xf]
        %v423 = vld [vmem:[%s386] sm:$0xf]
        %v424 = vld [vmem:[%s386 + $0x4] sm:$0xf]
        %v425 = vld [vmem:[%s386 + $0x8] sm:$0xf]
        %v426 = vld [vmem:[%s386 + $0xc] sm:$0xf]
        %v427 = vld [vmem:[%s391] sm:$0xf]
        %v428 = vld [vmem:[%s391 + $0x4] sm:$0xf]
        %v429 = vld [vmem:[%s391 + $0x8] sm:$0xf]
        %v430 = vld [vmem:[%s391 + $0xc] sm:$0xf]
        %v431 = vld [vmem:[%s396] sm:$0xf]
        %v432 = vld [vmem:[%s396 + $0x4] sm:$0xf]
        %v433 = vld [vmem:[%s396 + $0x8] sm:$0xf]
        %v434 = vld [vmem:[%s396 + $0xc] sm:$0xf]
        %v435 = vld [vmem:[%s396 + $0x10] sm:$0xf]
        %v436 = vld [vmem:[%s396 + $0x14] sm:$0xf]
        %v437 = vld [vmem:[%s396 + $0x18] sm:$0xf]
        %v438 = vld [vmem:[%s396 + $0x1c] sm:$0xf]
        %v439 = vld [vmem:[%s400] sm:$0x1]
        %v440 = vld [vmem:[%s400 + $0x1] sm:$0x1]
        %v441 = vld [vmem:[%s400 + $0x2] sm:$0x1]
        %v442 = vld [vmem:[%s400 + $0x3] sm:$0x1]
        %v443 = vld [vmem:[%s400 + $0x4] sm:$0x1]
        %v444 = vld [vmem:[%s400 + $0x5] sm:$0x1]
        %v445 = vld [vmem:[%s400 + $0x6] sm:$0x1]
        %v446 = vld [vmem:[%s403] sm:$0x1]
        %v447 = vlaneseq
        %v448 = vshrl.u32 %v447, 7
        %v449 = vsub.s32 0, %v448
        %v450 = vrot.slane %v439, %v449
        %v453 = vunpack.c.l.b16 %v415
        %v454 = vunpack.c.l.b16 %v416
        %v455 = vpack.c.b16 %v454, %v453
        %v460 = vunpack.c.l.b16 %v419
        %v461 = vunpack.c.l.b16 %v420
        %v462 = vunpack.c.l.b16 %v421
        %v463 = vunpack.c.l.b16 %v422
        %v464 = vpack.c.b16 %v461, %v460
        %v465 = vpack.c.b16 %v463, %v462
        %vm468 = vcmask 261120
        %v470 = vsel %vm468, %v455, 0
        %472 = vmatprep.subr.bf16.mxu0 0
        %473 = vmatpush1.bf16.msra.mxu0 %v464
        %474 = vmatprep.subr.bf16.mxu0 0
        %475 = vmatpush1.bf16.msra.mxu0 %v465
        %476 = vmatprep.subr.bf16.mxu0 0
        %477 = vmatpush1.bf16.msra.mxu0 0
        %478 = vmatprep.subr.bf16.mxu0 0
        %479 = vmatpush1.bf16.msra.mxu0 0
        %480 = vmatprep.subr.bf16.mxu0 0
        %481 = vmatpush1.bf16.msra.mxu0 0
        %482 = vmatprep.subr.bf16.mxu0 0
        %483 = vmatpush1.bf16.msra.mxu0 0
        %484 = vmatprep.subr.bf16.mxu0 0
        %485 = vmatpush1.bf16.msra.mxu0 0
        %486 = vmatprep.subr.bf16.mxu0 0
        %487 = vmatpush1.bf16.msra.mxu0 0
        %488 = vmatprep.subr.bf16.mxu0 0
        %489 = vmatpush1.bf16.msra.mxu0 0
        %490 = vmatprep.subr.bf16.mxu0 0
        %491 = vmatpush1.bf16.msra.mxu0 0
        %492 = vmatprep.subr.bf16.mxu0 0
        %493 = vmatpush1.bf16.msra.mxu0 0
        %494 = vmatprep.subr.bf16.mxu0 0
        %495 = vmatpush1.bf16.msra.mxu0 0
        %496 = vmatprep.subr.bf16.mxu0 0
        %497 = vmatpush1.bf16.msra.mxu0 0
        %498 = vmatprep.subr.bf16.mxu0 0
        %499 = vmatpush1.bf16.msra.mxu0 0
        %500 = vmatprep.subr.bf16.mxu0 0
        %501 = vmatpush1.bf16.msra.mxu0 0
        %502 = vmatprep.subr.bf16.mxu0 0
        %503 = vmatpush1.bf16.msra.mxu0 0
        %504 = vmatprep.mubr.bf16.mxu0 0
        %505 = vmatmul.mubr.bf16.gmra.mrb[0].mxu0 %v470
        %v506 = vpop.f32.mrb[0].mxu0
        %v507 = vadd.f32 %v450, %v506
        %v508 = vpop.f32.mrb[0].mxu0
        %v509 = vpop.f32.mrb[0].mxu0
        %v510 = vadd.f32 %v450, %v509
        %v511 = vpop.f32.mrb[0].mxu0
        %512 = vdwg.mxu0
        %515 = vrot.lane.b32.xlu0 %v507, 112
        %v516 = vpop.permute.xlu0 %515
        %517 = vrot.lane.b32.xlu0 %v510, 112
        %v518 = vpop.permute.xlu0 %517
        %v521 = vpack.c.bf16 %v507, %v507
        %v522 = vpack.c.bf16 %v516, %v516
        %v523 = vpack.c.bf16 %v510, %v510
        %v524 = vpack.c.bf16 %v518, %v518
        %vm525 = vcmask 125952
        %526 = vst.msk [vmem:[#allocation2] sm:$0xf] %vm525, %v521
        %527 = vst.msk [vmem:[#allocation2 + $0x4] sm:$0xf] %vm525, %v522
        %528 = vst.msk [vmem:[#allocation2 + $0x8] sm:$0xf] %vm525, %v523
        %529 = vst.msk [vmem:[#allocation2 + $0xc] sm:$0xf] %vm525, %v524
        %s530 = smul.u32 %s31, 2
        %s531 = sld [smem:[#allocation4 + %s530]]
        %s532 = sadd.s32 %s530, 1
        %s533 = sld [smem:[#allocation4 + %s532]]
        %v534 = vld [vmem:[#allocation2] sm:$0xf]
        %v535 = vld [vmem:[#allocation2 + $0x4] sm:$0xf]
        %v536 = vld [vmem:[#allocation2 + $0x8] sm:$0xf]
        %v537 = vld [vmem:[#allocation2 + $0xc] sm:$0xf]
        %vm538 = vcmask 130048
        %v540 = vsel %vm538, %v521, 0
        %v543 = vsel %vm538, %v534, 0
        %545 = vmatprep.subr.bf16.mxu0 0
        %546 = vmatpush1.bf16.xpose.msra.mxu0 %v543
        %547 = vmatprep.subr.bf16.mxu0 0
        %548 = vmatpush1.bf16.xpose.msra.mxu0 0
        %549 = vmatprep.subr.bf16.mxu0 0
        %550 = vmatpush1.bf16.xpose.msra.mxu0 0
        %551 = vmatprep.subr.bf16.mxu0 0
        %552 = vmatpush1.bf16.xpose.msra.mxu0 0
        %553 = vmatprep.subr.bf16.mxu0 0
        %554 = vmatpush1.bf16.xpose.msra.mxu0 0
        %555 = vmatprep.subr.bf16.mxu0 0
        %556 = vmatpush1.bf16.xpose.msra.mxu0 0
        %557 = vmatprep.subr.bf16.mxu0 0
        %558 = vmatpush1.bf16.xpose.msra.mxu0 0
        %559 = vmatprep.subr.bf16.mxu0 0
        %560 = vmatpush1.bf16.xpose.msra.mxu0 0
        %561 = vmatprep.subr.bf16.mxu0 0
        %562 = vmatpush1.bf16.xpose.msra.mxu0 0
        %563 = vmatprep.subr.bf16.mxu0 0
        %564 = vmatpush1.bf16.xpose.msra.mxu0 0
        %565 = vmatprep.subr.bf16.mxu0 0
        %566 = vmatpush1.bf16.xpose.msra.mxu0 0
        %567 = vmatprep.subr.bf16.mxu0 0
        %568 = vmatpush1.bf16.xpose.msra.mxu0 0
        %569 = vmatprep.subr.bf16.mxu0 0
        %570 = vmatpush1.bf16.xpose.msra.mxu0 0
        %571 = vmatprep.subr.bf16.mxu0 0
        %572 = vmatpush1.bf16.xpose.msra.mxu0 0
        %573 = vmatprep.subr.bf16.mxu0 0
        %574 = vmatpush1.bf16.xpose.msra.mxu0 0
        %575 = vmatprep.subr.bf16.mxu0 0
        %576 = vmatpush1.bf16.xpose.msra.mxu0 0
        %577 = vmatprep.mubr.bf16.mxu0 0
        %578 = vmatmul.mubr.bf16.gmra.mrb[0].mxu0 %v540
        %v579 = vpop.f32.mrb[0].mxu0
        %v580 = vadd.f32 0.0, %v579
        %v581 = vpop.f32.mrb[0].mxu0
        %v582 = vpop.f32.mrb[0].mxu0
        %v583 = vpop.f32.mrb[0].mxu0
        %584 = vdwg.mxu0
        %v586 = vsel %vm538, %v522, 0
        %v589 = vsel %vm538, %v535, 0
        %591 = vmatprep.subr.bf16.mxu0 0
        %592 = vmatpush1.bf16.xpose.msra.mxu0 %v589
        %593 = vmatprep.subr.bf16.mxu0 0
        %594 = vmatpush1.bf16.xpose.msra.mxu0 0
        %595 = vmatprep.subr.bf16.mxu0 0
        %596 = vmatpush1.bf16.xpose.msra.mxu0 0
        %597 = vmatprep.subr.bf16.mxu0 0
        %598 = vmatpush1.bf16.xpose.msra.mxu0 0
        %599 = vmatprep.subr.bf16.mxu0 0
        %600 = vmatpush1.bf16.xpose.msra.mxu0 0
        %601 = vmatprep.subr.bf16.mxu0 0
        %602 = vmatpush1.bf16.xpose.msra.mxu0 0
        %603 = vmatprep.subr.bf16.mxu0 0
        %604 = vmatpush1.bf16.xpose.msra.mxu0 0
        %605 = vmatprep.subr.bf16.mxu0 0
        %606 = vmatpush1.bf16.xpose.msra.mxu0 0
        %607 = vmatprep.subr.bf16.mxu0 0
        %608 = vmatpush1.bf16.xpose.msra.mxu0 0
        %609 = vmatprep.subr.bf16.mxu0 0
        %610 = vmatpush1.bf16.xpose.msra.mxu0 0
        %611 = vmatprep.subr.bf16.mxu0 0
        %612 = vmatpush1.bf16.xpose.msra.mxu0 0
        %613 = vmatprep.subr.bf16.mxu0 0
        %614 = vmatpush1.bf16.xpose.msra.mxu0 0
        %615 = vmatprep.subr.bf16.mxu0 0
        %616 = vmatpush1.bf16.xpose.msra.mxu0 0
        %617 = vmatprep.subr.bf16.mxu0 0
        %618 = vmatpush1.bf16.xpose.msra.mxu0 0
        %619 = vmatprep.subr.bf16.mxu0 0
        %620 = vmatpush1.bf16.xpose.msra.mxu0 0
        %621 = vmatprep.subr.bf16.mxu0 0
        %622 = vmatpush1.bf16.xpose.msra.mxu0 0
        %623 = vmatprep.mubr.bf16.mxu0 0
        %624 = vmatmul.mubr.bf16.gmra.mrb[0].mxu0 %v586
        %v625 = vpop.f32.mrb[0].mxu0
        %v626 = vadd.f32 0.0, %v625
        %v627 = vpop.f32.mrb[0].mxu0
        %v628 = vpop.f32.mrb[0].mxu0
        %v629 = vpop.f32.mrb[0].mxu0
        %630 = vdwg.mxu0
        %v632 = vsel %vm538, %v523, 0
        %v635 = vsel %vm538, %v536, 0
        %637 = vmatprep.subr.bf16.mxu0 0
        %638 = vmatpush1.bf16.xpose.msra.mxu0 %v635
        %639 = vmatprep.subr.bf16.mxu0 0
        %640 = vmatpush1.bf16.xpose.msra.mxu0 0
        %641 = vmatprep.subr.bf16.mxu0 0
        %642 = vmatpush1.bf16.xpose.msra.mxu0 0
        %643 = vmatprep.subr.bf16.mxu0 0
        %644 = vmatpush1.bf16.xpose.msra.mxu0 0
        %645 = vmatprep.subr.bf16.mxu0 0
        %646 = vmatpush1.bf16.xpose.msra.mxu0 0
        %647 = vmatprep.subr.bf16.mxu0 0
        %648 = vmatpush1.bf16.xpose.msra.mxu0 0
        %649 = vmatprep.subr.bf16.mxu0 0
        %650 = vmatpush1.bf16.xpose.msra.mxu0 0
        %651 = vmatprep.subr.bf16.mxu0 0
        %652 = vmatpush1.bf16.xpose.msra.mxu0 0
        %653 = vmatprep.subr.bf16.mxu0 0
        %654 = vmatpush1.bf16.xpose.msra.mxu0 0
        %655 = vmatprep.subr.bf16.mxu0 0
        %656 = vmatpush1.bf16.xpose.msra.mxu0 0
        %657 = vmatprep.subr.bf16.mxu0 0
        %658 = vmatpush1.bf16.xpose.msra.mxu0 0
        %659 = vmatprep.subr.bf16.mxu0 0
        %660 = vmatpush1.bf16.xpose.msra.mxu0 0
        %661 = vmatprep.subr.bf16.mxu0 0
        %662 = vmatpush1.bf16.xpose.msra.mxu0 0
        %663 = vmatprep.subr.bf16.mxu0 0
        %664 = vmatpush1.bf16.xpose.msra.mxu0 0
        %665 = vmatprep.subr.bf16.mxu0 0
        %666 = vmatpush1.bf16.xpose.msra.mxu0 0
        %667 = vmatprep.subr.bf16.mxu0 0
        %668 = vmatpush1.bf16.xpose.msra.mxu0 0
        %669 = vmatprep.mubr.bf16.mxu0 0
        %670 = vmatmul.mubr.bf16.gmra.mrb[0].mxu0 %v632
        %v671 = vpop.f32.mrb[0].mxu0
        %v672 = vadd.f32 0.0, %v671
        %v673 = vpop.f32.mrb[0].mxu0
        %v674 = vpop.f32.mrb[0].mxu0
        %v675 = vpop.f32.mrb[0].mxu0
        %676 = vdwg.mxu0
        %v678 = vsel %vm538, %v524, 0
        %v681 = vsel %vm538, %v537, 0
        %683 = vmatprep.subr.bf16.mxu0 0
        %684 = vmatpush1.bf16.xpose.msra.mxu0 %v681
        %685 = vmatprep.subr.bf16.mxu0 0
        %686 = vmatpush1.bf16.xpose.msra.mxu0 0
        %687 = vmatprep.subr.bf16.mxu0 0
        %688 = vmatpush1.bf16.xpose.msra.mxu0 0
        %689 = vmatprep.subr.bf16.mxu0 0
        %690 = vmatpush1.bf16.xpose.msra.mxu0 0
        %691 = vmatprep.subr.bf16.mxu0 0
        %692 = vmatpush1.bf16.xpose.msra.mxu0 0
        %693 = vmatprep.subr.bf16.mxu0 0
        %694 = vmatpush1.bf16.xpose.msra.mxu0 0
        %695 = vmatprep.subr.bf16.mxu0 0
        %696 = vmatpush1.bf16.xpose.msra.mxu0 0
        %697 = vmatprep.subr.bf16.mxu0 0
        %698 = vmatpush1.bf16.xpose.msra.mxu0 0
        %699 = vmatprep.subr.bf16.mxu0 0
        %700 = vmatpush1.bf16.xpose.msra.mxu0 0
        %701 = vmatprep.subr.bf16.mxu0 0
        %702 = vmatpush1.bf16.xpose.msra.mxu0 0
        %703 = vmatprep.subr.bf16.mxu0 0
        %704 = vmatpush1.bf16.xpose.msra.mxu0 0
        %705 = vmatprep.subr.bf16.mxu0 0
        %706 = vmatpush1.bf16.xpose.msra.mxu0 0
        %707 = vmatprep.subr.bf16.mxu0 0
        %708 = vmatpush1.bf16.xpose.msra.mxu0 0
        %709 = vmatprep.subr.bf16.mxu0 0
        %710 = vmatpush1.bf16.xpose.msra.mxu0 0
        %711 = vmatprep.subr.bf16.mxu0 0
        %712 = vmatpush1.bf16.xpose.msra.mxu0 0
        %713 = vmatprep.subr.bf16.mxu0 0
        %714 = vmatpush1.bf16.xpose.msra.mxu0 0
        %715 = vmatprep.mubr.bf16.mxu0 0
        %716 = vmatmul.mubr.bf16.gmra.mrb[0].mxu0 %v678
        %v717 = vpop.f32.mrb[0].mxu0
        %v718 = vadd.f32 0.0, %v717
        %v719 = vpop.f32.mrb[0].mxu0
        %v720 = vpop.f32.mrb[0].mxu0
        %v721 = vpop.f32.mrb[0].mxu0
        %722 = vdwg.mxu0
        %v723 = vmul.f32 %v580, 0.25
        %v724 = vmul.f32 %v626, 0.25
        %v725 = vmul.f32 %v672, 0.25
        %v726 = vmul.f32 %v718, 0.25
        %v727 = vlaneseq
        %v728 = vand.u32 %v727, 127
        %v729 = vstv 0
        %v730 = vadd.s32 %v728, %v729
        %v731 = vstv %s531
        %vm732 = vcmp.lt.s32.totalorder %v730, %v731
        %v733 = vstv %s533
        %vm734 = vcmp.lt.s32.totalorder %v730, %v733
        %v735 = vsel %vm732, 1, 0
        %v736 = vsel %vm734, 1, 0
        %vm737 = vcmp.eq.s32.totalorder %v735, 1
        %vm738 = vcmp.eq.s32.totalorder %v736, 1
        %v739 = vsel %vm737, 1, 0
        %v740 = vsel %vm738, 1, 0
        %v741 = vlaneseq
        %v742 = vshrl.u32 %v741, 7
        %v743 = vsub.s32 0, %v742
        %v744 = vrot.slane %v739, %v743
        %v745 = vlaneseq
        %v746 = vshrl.u32 %v745, 7
        %v747 = vsub.s32 0, %v746
        %v748 = vrot.slane %v740, %v747
        %vm749 = vcmp.eq.s32.totalorder %v744, 1
        %vm750 = vcmp.eq.s32.totalorder %v748, 1
        %v751 = vsel %vm749, %v723, -1000000.0
        %v752 = vsel %vm749, %v724, -1000000.0
        %v753 = vsel %vm750, %v725, -1000000.0
        %v754 = vsel %vm750, %v726, -1000000.0
        %vm755 = vcmask 64512
        %v756 = vsel %vm755, %v751, -inf
        %757 = vmax.xlane.f32.xlu0 %v756
        %v758 = vpop.xlane.xlu0 %757
        %v759 = vsel %vm755, %v752, -inf
        %760 = vmax.xlane.f32.xlu0 %v759
        %v761 = vpop.xlane.xlu0 %760
        %v762 = vsel %vm755, %v753, -inf
        %763 = vmax.xlane.f32.xlu0 %v762
        %v764 = vpop.xlane.xlu0 %763
        %v765 = vsel %vm755, %v754, -inf
        %766 = vmax.xlane.f32.xlu0 %v765
        %v767 = vpop.xlane.xlu0 %766
        %v768 = vsub.f32 -inf, %v758
        %v769 = vsub.f32 -inf, %v761
        %v770 = vsub.f32 -inf, %v764
        %v771 = vsub.f32 -inf, %v767
        %v772 = vmul.f32 %v768, 1.442695
        %v773 = vpow.pop %v772
        %v774 = vmul.f32 %v769, 1.442695
        %v775 = vpow.pop %v774
        %v776 = vmul.f32 %v770, 1.442695
        %v777 = vpow.pop %v776
        %v778 = vmul.f32 %v771, 1.442695
        %v779 = vpow.pop %v778
        %v780 = vsub.f32 %v751, %v758
        %v781 = vsub.f32 %v752, %v761
        %v782 = vsub.f32 %v753, %v764
        %v783 = vsub.f32 %v754, %v767
        %v784 = vpack.c.bf16 %v780, %v780
        %v785 = vpack.c.bf16 %v781, %v781
        %v786 = vpack.c.bf16 %v782, %v782
        %v787 = vpack.c.bf16 %v783, %v783
        %v789 = vmul.bf16 %v784, 1069105081
        %v790 = vpow.bf16.pop %v789
        %v792 = vmul.bf16 %v785, 1069105081
        %v793 = vpow.bf16.pop %v792
        %v795 = vmul.bf16 %v786, 1069105081
        %v796 = vpow.bf16.pop %v795
        %v798 = vmul.bf16 %v787, 1069105081
        %v799 = vpow.bf16.pop %v798
        %v800 = vmul.f32 %v773, 0.0
        %v801 = vmul.f32 %v775, 0.0
        %v802 = vmul.f32 %v777, 0.0
        %v803 = vmul.f32 %v779, 0.0
        %v804 = vunpack.c.l.bf16 %v790
        %v805 = vunpack.c.l.bf16 %v793
        %v806 = vunpack.c.l.bf16 %v796
        %v807 = vunpack.c.l.bf16 %v799
        %v808 = vsel %vm755, %v804, 0.0
        %809 = vadd.xlane.f32.xlu0 %v808
        %v810 = vpop.xlane.xlu0 %809
        %v811 = vsel %vm755, %v805, 0.0
        %812 = vadd.xlane.f32.xlu0 %v811
        %v813 = vpop.xlane.xlu0 %812
        %v814 = vsel %vm755, %v806, 0.0
        %815 = vadd.xlane.f32.xlu0 %v814
        %v816 = vpop.xlane.xlu0 %815
        %v817 = vsel %vm755, %v807, 0.0
        %818 = vadd.xlane.f32.xlu0 %v817
        %v819 = vpop.xlane.xlu0 %818
        %v820 = vadd.f32 %v800, %v810
        %v821 = vadd.f32 %v801, %v813
        %v822 = vadd.f32 %v802, %v816
        %v823 = vadd.f32 %v803, %v819
        %v825 = vsel %vm755, %v790, 0
        %vm827 = vcmask 1043456
        %v828 = vsel %vm827, %v534, 0
        %830 = vmatprep.subr.bf16.mxu0 0
        %831 = vmatpush1.bf16.msra.mxu0 %v828
        %832 = vmatprep.subr.bf16.mxu0 0
        %833 = vmatpush1.bf16.msra.mxu0 0
        %834 = vmatprep.subr.bf16.mxu0 0
        %835 = vmatpush1.bf16.msra.mxu0 0
        %836 = vmatprep.subr.bf16.mxu0 0
        %837 = vmatpush1.bf16.msra.mxu0 0
        %838 = vmatprep.subr.bf16.mxu0 0
        %839 = vmatpush1.bf16.msra.mxu0 0
        %840 = vmatprep.subr.bf16.mxu0 0
        %841 = vmatpush1.bf16.msra.mxu0 0
        %842 = vmatprep.subr.bf16.mxu0 0
        %843 = vmatpush1.bf16.msra.mxu0 0
        %844 = vmatprep.subr.bf16.mxu0 0
        %845 = vmatpush1.bf16.msra.mxu0 0
        %846 = vmatprep.subr.bf16.mxu0 0
        %847 = vmatpush1.bf16.msra.mxu0 0
        %848 = vmatprep.subr.bf16.mxu0 0
        %849 = vmatpush1.bf16.msra.mxu0 0
        %850 = vmatprep.subr.bf16.mxu0 0
        %851 = vmatpush1.bf16.msra.mxu0 0
        %852 = vmatprep.subr.bf16.mxu0 0
        %853 = vmatpush1.bf16.msra.mxu0 0
        %854 = vmatprep.subr.bf16.mxu0 0
        %855 = vmatpush1.bf16.msra.mxu0 0
        %856 = vmatprep.subr.bf16.mxu0 0
        %857 = vmatpush1.bf16.msra.mxu0 0
        %858 = vmatprep.subr.bf16.mxu0 0
        %859 = vmatpush1.bf16.msra.mxu0 0
        %860 = vmatprep.subr.bf16.mxu0 0
        %861 = vmatpush1.bf16.msra.mxu0 0
        %862 = vmatprep.mubr.bf16.mxu0 0
        %863 = vmatmul.mubr.bf16.gmra.mrb[0].mxu0 %v825
        %v864 = vpop.f32.mrb[0].mxu0
        %v865 = vadd.f32 0.0, %v864
        %v866 = vpop.f32.mrb[0].mxu0
        %v867 = vpop.f32.mrb[0].mxu0
        %v868 = vpop.f32.mrb[0].mxu0
        %869 = vdwg.mxu0
        %v871 = vsel %vm755, %v793, 0
        %v873 = vsel %vm827, %v535, 0
        %875 = vmatprep.subr.bf16.mxu0 0
        %876 = vmatpush1.bf16.msra.mxu0 %v873
        %877 = vmatprep.subr.bf16.mxu0 0
        %878 = vmatpush1.bf16.msra.mxu0 0
        %879 = vmatprep.subr.bf16.mxu0 0
        %880 = vmatpush1.bf16.msra.mxu0 0
        %881 = vmatprep.subr.bf16.mxu0 0
        %882 = vmatpush1.bf16.msra.mxu0 0
        %883 = vmatprep.subr.bf16.mxu0 0
        %884 = vmatpush1.bf16.msra.mxu0 0
        %885 = vmatprep.subr.bf16.mxu0 0
        %886 = vmatpush1.bf16.msra.mxu0 0
        %887 = vmatprep.subr.bf16.mxu0 0
        %888 = vmatpush1.bf16.msra.mxu0 0
        %889 = vmatprep.subr.bf16.mxu0 0
        %890 = vmatpush1.bf16.msra.mxu0 0
        %891 = vmatprep.subr.bf16.mxu0 0
        %892 = vmatpush1.bf16.msra.mxu0 0
        %893 = vmatprep.subr.bf16.mxu0 0
        %894 = vmatpush1.bf16.msra.mxu0 0
        %895 = vmatprep.subr.bf16.mxu0 0
        %896 = vmatpush1.bf16.msra.mxu0 0
        %897 = vmatprep.subr.bf16.mxu0 0
        %898 = vmatpush1.bf16.msra.mxu0 0
        %899 = vmatprep.subr.bf16.mxu0 0
        %900 = vmatpush1.bf16.msra.mxu0 0
        %901 = vmatprep.subr.bf16.mxu0 0
        %902 = vmatpush1.bf16.msra.mxu0 0
        %903 = vmatprep.subr.bf16.mxu0 0
        %904 = vmatpush1.bf16.msra.mxu0 0
        %905 = vmatprep.subr.bf16.mxu0 0
        %906 = vmatpush1.bf16.msra.mxu0 0
        %907 = vmatprep.mubr.bf16.mxu0 0
        %908 = vmatmul.mubr.bf16.gmra.mrb[0].mxu0 %v871
        %v909 = vpop.f32.mrb[0].mxu0
        %v910 = vadd.f32 0.0, %v909
        %v911 = vpop.f32.mrb[0].mxu0
        %v912 = vpop.f32.mrb[0].mxu0
        %v913 = vpop.f32.mrb[0].mxu0
        %914 = vdwg.mxu0
        %v916 = vsel %vm755, %v796, 0
        %v918 = vsel %vm827, %v536, 0
        %920 = vmatprep.subr.bf16.mxu0 0
        %921 = vmatpush1.bf16.msra.mxu0 %v918
        %922 = vmatprep.subr.bf16.mxu0 0
        %923 = vmatpush1.bf16.msra.mxu0 0
        %924 = vmatprep.subr.bf16.mxu0 0
        %925 = vmatpush1.bf16.msra.mxu0 0
        %926 = vmatprep.subr.bf16.mxu0 0
        %927 = vmatpush1.bf16.msra.mxu0 0
        %928 = vmatprep.subr.bf16.mxu0 0
        %929 = vmatpush1.bf16.msra.mxu0 0
        %930 = vmatprep.subr.bf16.mxu0 0
        %931 = vmatpush1.bf16.msra.mxu0 0
        %932 = vmatprep.subr.bf16.mxu0 0
        %933 = vmatpush1.bf16.msra.mxu0 0
        %934 = vmatprep.subr.bf16.mxu0 0
        %935 = vmatpush1.bf16.msra.mxu0 0
        %936 = vmatprep.subr.bf16.mxu0 0
        %937 = vmatpush1.bf16.msra.mxu0 0
        %938 = vmatprep.subr.bf16.mxu0 0
        %939 = vmatpush1.bf16.msra.mxu0 0
        %940 = vmatprep.subr.bf16.mxu0 0
        %941 = vmatpush1.bf16.msra.mxu0 0
        %942 = vmatprep.subr.bf16.mxu0 0
        %943 = vmatpush1.bf16.msra.mxu0 0
        %944 = vmatprep.subr.bf16.mxu0 0
        %945 = vmatpush1.bf16.msra.mxu0 0
        %946 = vmatprep.subr.bf16.mxu0 0
        %947 = vmatpush1.bf16.msra.mxu0 0
        %948 = vmatprep.subr.bf16.mxu0 0
        %949 = vmatpush1.bf16.msra.mxu0 0
        %950 = vmatprep.subr.bf16.mxu0 0
        %951 = vmatpush1.bf16.msra.mxu0 0
        %952 = vmatprep.mubr.bf16.mxu0 0
        %953 = vmatmul.mubr.bf16.gmra.mrb[0].mxu0 %v916
        %v954 = vpop.f32.mrb[0].mxu0
        %v955 = vadd.f32 0.0, %v954
        %v956 = vpop.f32.mrb[0].mxu0
        %v957 = vpop.f32.mrb[0].mxu0
        %v958 = vpop.f32.mrb[0].mxu0
        %959 = vdwg.mxu0
        %v961 = vsel %vm755, %v799, 0
        %v963 = vsel %vm827, %v537, 0
        %965 = vmatprep.subr.bf16.mxu0 0
        %966 = vmatpush1.bf16.msra.mxu0 %v963
        %967 = vmatprep.subr.bf16.mxu0 0
        %968 = vmatpush1.bf16.msra.mxu0 0
        %969 = vmatprep.subr.bf16.mxu0 0
        %970 = vmatpush1.bf16.msra.mxu0 0
        %971 = vmatprep.subr.bf16.mxu0 0
        %972 = vmatpush1.bf16.msra.mxu0 0
        %973 = vmatprep.subr.bf16.mxu0 0
        %974 = vmatpush1.bf16.msra.mxu0 0
        %975 = vmatprep.subr.bf16.mxu0 0
        %976 = vmatpush1.bf16.msra.mxu0 0
        %977 = vmatprep.subr.bf16.mxu0 0
        %978 = vmatpush1.bf16.msra.mxu0 0
        %979 = vmatprep.subr.bf16.mxu0 0
        %980 = vmatpush1.bf16.msra.mxu0 0
        %981 = vmatprep.subr.bf16.mxu0 0
        %982 = vmatpush1.bf16.msra.mxu0 0
        %983 = vmatprep.subr.bf16.mxu0 0
        %984 = vmatpush1.bf16.msra.mxu0 0
        %985 = vmatprep.subr.bf16.mxu0 0
        %986 = vmatpush1.bf16.msra.mxu0 0
        %987 = vmatprep.subr.bf16.mxu0 0
        %988 = vmatpush1.bf16.msra.mxu0 0
        %989 = vmatprep.subr.bf16.mxu0 0
        %990 = vmatpush1.bf16.msra.mxu0 0
        %991 = vmatprep.subr.bf16.mxu0 0
        %992 = vmatpush1.bf16.msra.mxu0 0
        %993 = vmatprep.subr.bf16.mxu0 0
        %994 = vmatpush1.bf16.msra.mxu0 0
        %995 = vmatprep.subr.bf16.mxu0 0
        %996 = vmatpush1.bf16.msra.mxu0 0
        %997 = vmatprep.mubr.bf16.mxu0 0
        %998 = vmatmul.mubr.bf16.gmra.mrb[0].mxu0 %v961
        %v999 = vpop.f32.mrb[0].mxu0
        %v1000 = vadd.f32 0.0, %v999
        %v1001 = vpop.f32.mrb[0].mxu0
        %v1002 = vpop.f32.mrb[0].mxu0
        %v1003 = vpop.f32.mrb[0].mxu0
        %1004 = vdwg.mxu0
        %v1005 = vadd.f32 %v800, %v865
        %v1006 = vadd.f32 %v801, %v910
        %v1007 = vadd.f32 %v802, %v955
        %v1008 = vadd.f32 %v803, %v1000
        %v1009 = vrcp.pop %v820
        %v1010 = vrcp.pop %v821
        %v1011 = vrcp.pop %v822
        %v1012 = vrcp.pop %v823
        %v1013 = vmul.f32 %v1005, %v1009
        %v1014 = vmul.f32 %v1006, %v1010
        %v1015 = vmul.f32 %v1007, %v1011
        %v1016 = vmul.f32 %v1008, %v1012
        %1019 = vrot.lane.b32.xlu0 %v1014, 16
        %v1020 = vpop.permute.xlu0 %1019
        %1021 = vrot.lane.b32.xlu0 %v1016, 16
        %v1022 = vpop.permute.xlu0 %1021
        %v1025 = vsel %vm538, %v1013, %v1020
        %v1026 = vsel %vm538, %v1015, %v1022
        %v1027 = vpack.c.bf16 %v1026, %v1025
        %v1028 = vlaneseq
        %v1029 = vshrl.u32 %v1028, 7
        %v1030 = vsub.s32 0, %v1029
        %v1031 = vrot.slane %v440, %v1030
        %v1036 = vunpack.c.l.b16 %v423
        %v1037 = vunpack.c.l.b16 %v424
        %v1038 = vunpack.c.l.b16 %v425
        %v1039 = vunpack.c.l.b16 %v426
        %v1040 = vpack.c.b16 %v1037, %v1036
        %v1041 = vpack.c.b16 %v1039, %v1038
        %v1045 = vsel %vm468, %v1027, 0
        %1047 = vmatprep.subr.bf16.mxu0 0
        %1048 = vmatpush1.bf16.msra.mxu0 %v1040
        %1049 = vmatprep.subr.bf16.mxu0 0
        %1050 = vmatpush1.bf16.msra.mxu0 %v1041
        %1051 = vmatprep.subr.bf16.mxu0 0
        %1052 = vmatpush1.bf16.msra.mxu0 0
        %1053 = vmatprep.subr.bf16.mxu0 0
        %1054 = vmatpush1.bf16.msra.mxu0 0
        %1055 = vmatprep.subr.bf16.mxu0 0
        %1056 = vmatpush1.bf16.msra.mxu0 0
        %1057 = vmatprep.subr.bf16.mxu0 0
        %1058 = vmatpush1.bf16.msra.mxu0 0
        %1059 = vmatprep.subr.bf16.mxu0 0
        %1060 = vmatpush1.bf16.msra.mxu0 0
        %1061 = vmatprep.subr.bf16.mxu0 0
        %1062 = vmatpush1.bf16.msra.mxu0 0
        %1063 = vmatprep.subr.bf16.mxu0 0
        %1064 = vmatpush1.bf16.msra.mxu0 0
        %1065 = vmatprep.subr.bf16.mxu0 0
        %1066 = vmatpush1.bf16.msra.mxu0 0
        %1067 = vmatprep.subr.bf16.mxu0 0
        %1068 = vmatpush1.bf16.msra.mxu0 0
        %1069 = vmatprep.subr.bf16.mxu0 0
        %1070 = vmatpush1.bf16.msra.mxu0 0
        %1071 = vmatprep.subr.bf16.mxu0 0
        %1072 = vmatpush1.bf16.msra.mxu0 0
        %1073 = vmatprep.subr.bf16.mxu0 0
        %1074 = vmatpush1.bf16.msra.mxu0 0
        %1075 = vmatprep.subr.bf16.mxu0 0
        %1076 = vmatpush1.bf16.msra.mxu0 0
        %1077 = vmatprep.subr.bf16.mxu0 0
        %1078 = vmatpush1.bf16.msra.mxu0 0
        %1079 = vmatprep.mubr.bf16.mxu0 0
        %1080 = vmatmul.mubr.bf16.gmra.mrb[0].mxu0 %v1045
        %v1081 = vpop.f32.mrb[0].mxu0
        %v1082 = vadd.f32 %v1031, %v1081
        %v1083 = vpop.f32.mrb[0].mxu0
        %v1084 = vpop.f32.mrb[0].mxu0
        %v1085 = vadd.f32 %v1031, %v1084
        %v1086 = vpop.f32.mrb[0].mxu0
        %1087 = vdwg.mxu0
        %v1088 = vadd.f32 %v1082, %v417
        %v1089 = vadd.f32 %v1085, %v418
        %v1090 = vsel %vm468, %v1088, 0.0
        %1091 = vadd.xlane.f32.xlu0 %v1090
        %v1092 = vpop.xlane.xlu0 %1091
        %v1093 = vsel %vm468, %v1089, 0.0
        %1094 = vadd.xlane.f32.xlu0 %v1093
        %v1095 = vpop.xlane.xlu0 %1094
        %v1096 = vrcp.pop 32.0
        %v1097 = vmul.f32 %v1092, %v1096
        %v1098 = vmul.f32 %v1095, %v1096
        %v1099 = vsub.f32 %v1088, %v1097
        %v1100 = vsub.f32 %v1089, %v1098
        %v1101 = vmul.f32 %v1099, %v1099
        %v1102 = vmul.f32 %v1100, %v1100
        %v1103 = vsel %vm468, %v1101, 0.0
        %1104 = vadd.xlane.f32.xlu0 %v1103
        %v1105 = vpop.xlane.xlu0 %1104
        %v1106 = vsel %vm468, %v1102, 0.0
        %1107 = vadd.xlane.f32.xlu0 %v1106
        %v1108 = vpop.xlane.xlu0 %1107
        %v1109 = vmul.f32 %v1105, %v1096
        %v1110 = vmul.f32 %v1108, %v1096
        %v1111 = vadd.f32 %v1109, 1e-05
        %v1112 = vadd.f32 %v1110, 1e-05
        %v1113 = vrsqrt.pop %v1111
        %v1114 = vrsqrt.pop %v1112
        %v1115 = vmul.f32 %v1099, %v1113
        %v1116 = vmul.f32 %v1100, %v1114
        %v1117 = vlaneseq
        %v1118 = vshrl.u32 %v1117, 7
        %v1119 = vsub.s32 0, %v1118
        %v1120 = vrot.slane %v441, %v1119
        %v1121 = vmul.f32 %v1115, %v1120
        %v1122 = vmul.f32 %v1116, %v1120
        %v1123 = vlaneseq
        %v1124 = vshrl.u32 %v1123, 7
        %v1125 = vsub.s32 0, %v1124
        %v1126 = vrot.slane %v442, %v1125
        %v1127 = vadd.f32 %v1121, %v1126
        %v1128 = vadd.f32 %v1122, %v1126
        %v1129 = vpack.c.bf16 %v1127, %v1127
        %v1130 = vpack.c.bf16 %v1128, %v1128
        %v1132 = vlaneseq
        %v1133 = vshrl.u32 %v1132, 7
        %v1134 = vsub.s32 0, %v1133
        %v1135 = vrot.slane %v446, %v1134
        %v1139 = vunpack.c.l.b16 %v1129
        %v1140 = vunpack.c.l.b16 %v1130
        %v1141 = vpack.c.b16 %v1140, %v1139
        %v1146 = vunpack.c.l.b16 %v427
        %v1147 = vunpack.c.l.b16 %v428
        %v1148 = vunpack.c.l.b16 %v429
        %v1149 = vunpack.c.l.b16 %v430
        %v1150 = vpack.c.b16 %v1147, %v1146
        %v1151 = vpack.c.b16 %v1149, %v1148
        %v1155 = vsel %vm468, %v1141, 0
        %1157 = vmatprep.subr.bf16.mxu0 0
        %1158 = vmatpush1.bf16.msra.mxu0 %v1150
        %1159 = vmatprep.subr.bf16.mxu0 0
        %1160 = vmatpush1.bf16.msra.mxu0 %v1151
        %1161 = vmatprep.subr.bf16.mxu0 0
        %1162 = vmatpush1.bf16.msra.mxu0 0
        %1163 = vmatprep.subr.bf16.mxu0 0
        %1164 = vmatpush1.bf16.msra.mxu0 0
        %1165 = vmatprep.subr.bf16.mxu0 0
        %1166 = vmatpush1.bf16.msra.mxu0 0
        %1167 = vmatprep.subr.bf16.mxu0 0
        %1168 = vmatpush1.bf16.msra.mxu0 0
        %1169 = vmatprep.subr.bf16.mxu0 0
        %1170 = vmatpush1.bf16.msra.mxu0 0
        %1171 = vmatprep.subr.bf16.mxu0 0
        %1172 = vmatpush1.bf16.msra.mxu0 0
        %1173 = vmatprep.subr.bf16.mxu0 0
        %1174 = vmatpush1.bf16.msra.mxu0 0
        %1175 = vmatprep.subr.bf16.mxu0 0
        %1176 = vmatpush1.bf16.msra.mxu0 0
        %1177 = vmatprep.subr.bf16.mxu0 0
        %1178 = vmatpush1.bf16.msra.mxu0 0
        %1179 = vmatprep.subr.bf16.mxu0 0
        %1180 = vmatpush1.bf16.msra.mxu0 0
        %1181 = vmatprep.subr.bf16.mxu0 0
        %1182 = vmatpush1.bf16.msra.mxu0 0
        %1183 = vmatprep.subr.bf16.mxu0 0
        %1184 = vmatpush1.bf16.msra.mxu0 0
        %1185 = vmatprep.subr.bf16.mxu0 0
        %1186 = vmatpush1.bf16.msra.mxu0 0
        %1187 = vmatprep.subr.bf16.mxu0 0
        %1188 = vmatpush1.bf16.msra.mxu0 0
        %1189 = vmatprep.mubr.bf16.mxu0 0
        %1190 = vmatmul.mubr.bf16.gmra.mrb[0].mxu0 %v1155
        %v1191 = vpop.f32.mrb[0].mxu0
        %v1192 = vadd.f32 %v1135, %v1191
        %v1193 = vpop.f32.mrb[0].mxu0
        %v1194 = vpop.f32.mrb[0].mxu0
        %v1195 = vadd.f32 %v1135, %v1194
        %v1196 = vpop.f32.mrb[0].mxu0
        %1197 = vdwg.mxu0
        %v1198 = vmax.f32 %v1192, 0.0
        %v1199 = vmax.f32 %v1195, 0.0
        %v1200 = vpack.c.bf16 %v1199, %v1198
        %v1201 = vlaneseq
        %v1202 = vshrl.u32 %v1201, 7
        %v1203 = vsub.s32 0, %v1202
        %v1204 = vrot.slane %v443, %v1203
        %v1213 = vunpack.c.l.b16 %v431
        %v1214 = vunpack.c.l.b16 %v432
        %v1215 = vunpack.c.l.b16 %v433
        %v1216 = vunpack.c.l.b16 %v434
        %v1217 = vunpack.c.l.b16 %v435
        %v1218 = vunpack.c.l.b16 %v436
        %v1219 = vunpack.c.l.b16 %v437
        %v1220 = vunpack.c.l.b16 %v438
        %v1221 = vpack.c.b16 %v1214, %v1213
        %v1222 = vpack.c.b16 %v1216, %v1215
        %v1223 = vpack.c.b16 %v1218, %v1217
        %v1224 = vpack.c.b16 %v1220, %v1219
        %vm1229 = vcmask 523264
        %v1231 = vsel %vm1229, %v1200, 0
        %1233 = vmatprep.subr.bf16.mxu0 0
        %1234 = vmatpush1.bf16.msra.mxu0 %v1221
        %1235 = vmatprep.subr.bf16.mxu0 0
        %1236 = vmatpush1.bf16.msra.mxu0 %v1222
        %1237 = vmatprep.subr.bf16.mxu0 0
        %1238 = vmatpush1.bf16.msra.mxu0 %v1223
        %1239 = vmatprep.subr.bf16.mxu0 0
        %1240 = vmatpush1.bf16.msra.mxu0 %v1224
        %1241 = vmatprep.subr.bf16.mxu0 0
        %1242 = vmatpush1.bf16.msra.mxu0 0
        %1243 = vmatprep.subr.bf16.mxu0 0
        %1244 = vmatpush1.bf16.msra.mxu0 0
        %1245 = vmatprep.subr.bf16.mxu0 0
        %1246 = vmatpush1.bf16.msra.mxu0 0
        %1247 = vmatprep.subr.bf16.mxu0 0
        %1248 = vmatpush1.bf16.msra.mxu0 0
        %1249 = vmatprep.subr.bf16.mxu0 0
        %1250 = vmatpush1.bf16.msra.mxu0 0
        %1251 = vmatprep.subr.bf16.mxu0 0
        %1252 = vmatpush1.bf16.msra.mxu0 0
        %1253 = vmatprep.subr.bf16.mxu0 0
        %1254 = vmatpush1.bf16.msra.mxu0 0
        %1255 = vmatprep.subr.bf16.mxu0 0
        %1256 = vmatpush1.bf16.msra.mxu0 0
        %1257 = vmatprep.subr.bf16.mxu0 0
        %1258 = vmatpush1.bf16.msra.mxu0 0
        %1259 = vmatprep.subr.bf16.mxu0 0
        %1260 = vmatpush1.bf16.msra.mxu0 0
        %1261 = vmatprep.subr.bf16.mxu0 0
        %1262 = vmatpush1.bf16.msra.mxu0 0
        %1263 = vmatprep.subr.bf16.mxu0 0
        %1264 = vmatpush1.bf16.msra.mxu0 0
        %1265 = vmatprep.mubr.bf16.mxu0 0
        %1266 = vmatmul.mubr.bf16.gmra.mrb[0].mxu0 %v1231
        %v1267 = vpop.f32.mrb[0].mxu0
        %v1268 = vadd.f32 %v1204, %v1267
        %v1269 = vpop.f32.mrb[0].mxu0
        %v1270 = vpop.f32.mrb[0].mxu0
        %v1271 = vadd.f32 %v1204, %v1270
        %v1272 = vpop.f32.mrb[0].mxu0
        %1273 = vdwg.mxu0
        %v1274 = vadd.f32 %v1268, %v1127
        %v1275 = vadd.f32 %v1271, %v1128
        %v1276 = vsel %vm468, %v1274, 0.0
        %1277 = vadd.xlane.f32.xlu0 %v1276
        %v1278 = vpop.xlane.xlu0 %1277
        %v1279 = vsel %vm468, %v1275, 0.0
        %1280 = vadd.xlane.f32.xlu0 %v1279
        %v1281 = vpop.xlane.xlu0 %1280
        %v1282 = vmul.f32 %v1278, %v1096
        %v1283 = vmul.f32 %v1281, %v1096
        %v1284 = vsub.f32 %v1274, %v1282
        %v1285 = vsub.f32 %v1275, %v1283
        %v1286 = vmul.f32 %v1284, %v1284
        %v1287 = vmul.f32 %v1285, %v1285
        %v1288 = vsel %vm468, %v1286, 0.0
        %1289 = vadd.xlane.f32.xlu0 %v1288
        %v1290 = vpop.xlane.xlu0 %1289
        %v1291 = vsel %vm468, %v1287, 0.0
        %1292 = vadd.xlane.f32.xlu0 %v1291
        %v1293 = vpop.xlane.xlu0 %1292
        %v1294 = vmul.f32 %v1290, %v1096
        %v1295 = vmul.f32 %v1293, %v1096
        %v1296 = vadd.f32 %v1294, 1e-05
        %v1297 = vadd.f32 %v1295, 1e-05
        %v1298 = vrsqrt.pop %v1296
        %v1299 = vrsqrt.pop %v1297
        %v1300 = vmul.f32 %v1284, %v1298
        %v1301 = vmul.f32 %v1285, %v1299
        %v1302 = vlaneseq
        %v1303 = vshrl.u32 %v1302, 7
        %v1304 = vsub.s32 0, %v1303
        %v1305 = vrot.slane %v444, %v1304
        %v1306 = vmul.f32 %v1300, %v1305
        %v1307 = vmul.f32 %v1301, %v1305
        %v1308 = vlaneseq
        %v1309 = vshrl.u32 %v1308, 7
        %v1310 = vsub.s32 0, %v1309
        %v1311 = vrot.slane %v445, %v1310
        %v1312 = vadd.f32 %v1306, %v1311
        %v1313 = vadd.f32 %v1307, %v1311
        %v1314 = vpack.c.bf16 %v1312, %v1312
        %v1315 = vpack.c.bf16 %v1313, %v1313
        %vm1316 = vcmask 257024
        %1317 = vst.msk [vmem:[#allocation8] sm:$0xf] %vm1316, %v1314
        %1318 = vst.msk [vmem:[#allocation8 + $0x4] sm:$0xf] %vm1316, %v1315
        // Predicated region
        $region57: #{tpu_custom_call.1} parent=47 // pred_check
          %p1319 = pneg %p239
        $region58: #{tpu_custom_call.1} parent=47 // pred_check_branch
          %1321 = sbr.rel (%p1319) target = $region60
        $region59: #{tpu_custom_call.1} parent=47 // pred_region
          %s1322 = smul.u32 2, %s31
          %s1324 = ssub.s32 128, 128
          %1325 = vsyncadd [#allocation7], %s1324
          %s1326 = smul.addr %s1322, 64
          %s1327 = scalar_lea.hbm %s8, %s1326
          %s1328 = sshll.u32 [#allocation8], 4
          %s1329 = int_to_ptr.vmem [resolvable:$true] %s1328
          %1334 = dma.vmem_to_hbm [thread:$0]  %s1329, 128, %s1327, [#allocation7], 64, 64, 4
        $region60: #{tpu_custom_call.1} parent=47 // pred_fallthru
          _
        // Predicated region
        $region61: #{tpu_custom_call.1} parent=47 // pred_check
          %p1335 = pneg %p239
        $region62: #{tpu_custom_call.1} parent=47 // pred_check_branch
          %1337 = sbr.rel (%p1335) target = $region64
        $region63: #{tpu_custom_call.1} parent=47 // pred_region
          %1338 = dma.done [#allocation7], 128
        $region64: #{tpu_custom_call.1} parent=47 // pred_fallthru
          _
      $region48: #{tpu_custom_call.1} parent=5 // pred_fallthru
        _
      %p1339 = scmp.le.s32.totalorder 2, %s22
      // Predicated region
      $region65: #{tpu_custom_call.1} parent=5 // pred_check
        %p1340 = pneg %p1339
      $region66: #{tpu_custom_call.1} parent=5 // pred_check_branch
        %1342 = sbr.rel (%p1340) target = $region68
      $region67: #{tpu_custom_call.1} parent=5 // pred_region
        %s1343 = ssub.s32 %s22, 2
      $region68: #{tpu_custom_call.1} parent=5 // pred_fallthru
        _
    $region6: #{tpu_custom_call.1} parent=1 // loop_footer
      %s26 = sadd.s32 1, %s22
    $region7: #{tpu_custom_call.1} parent=1 // loop_footer_branch
      %21 = sbr.rel target = $region3
    $region8: #{tpu_custom_call.1} parent=1 // loop_exit
      _
    %1344 = vsyncpa [#allocation6], 1
    %s1345 = scalar_lea.sflag [#allocation6], 1
    %1346 = vsyncpa %s1345, 1
    %1347 = vsyncpa [#allocation7], 1
    %s1348 = scalar_lea.sflag [#allocation7], 1
    %1349 = vsyncpa %s1348, 1

// kernel: tpu_custom_call.1
$region0: #{tpu_custom_call.1}
  #allocation0 [shape = 'u32[]', space=smem, size = 0x4, offset = 0x4, fixed_abs, tag = 'smem constant byte address 0x4 - core index']
  #allocation1 [shape = 'u32[144,128]{1,0:T(1,128)}', space=vmem, size = 0x12000, scoped, tag = 'internal scratch']
  #allocation2 [shape = 'bf16[4,8,16]{2,1,0:T(8,128)(2,1)}', space=vmem, size = 0x2000, scoped, tag = 'scratch operand']
  #allocation3 [shape = 's32[1]{0}', space=sflag, size = 0x4, scoped, tag = 'scoped memory for tpu_custom_call.1']
  #allocation4 [shape = 'u8[512]{0}', space=smem, size = 0x200, scoped, tag = 'prefetched SMEM operand 0']
  %s0 = inlined_call_operand.vmem [shape: s32[2], index: 0, kind: input, shape index: {}]
  %s1 = inlined_call_operand.hbm [shape: bf16[2,8,32], index: 1, kind: input, shape index: {}]
  %s2 = inlined_call_operand.vmem [shape: bf16[2,32,32], index: 2, kind: input, shape index: {}]
  %s3 = inlined_call_operand.vmem [shape: bf16[2,32,32], index: 3, kind: input, shape index: {}]
  %s4 = inlined_call_operand.vmem [shape: bf16[2,32,64], index: 4, kind: input, shape index: {}]
  %s5 = inlined_call_operand.vmem [shape: bf16[2,64,32], index: 5, kind: input, shape index: {}]
  %s6 = inlined_call_operand.vmem [shape: f32[2,7,32], index: 6, kind: input, shape index: {}]
  %s7 = inlined_call_operand.vmem [shape: f32[2,1,64], index: 7, kind: input, shape index: {}]
  %s8 = inlined_call_operand.hbm [shape: bf16[2,8,32], index: 8, kind: output, shape index: {}]
  %s9 = sld [smem:[#allocation0]]
  $region69: #{tpu_custom_call.1} parent=0
    _
  %s11 = ssub.s32 1, %s9
  %s12 = scalar_select 0, %s11, %s9
  %s13 = sshll.u32 %s0, 4
  %s14 = int_to_ptr.vmem [resolvable:$true] %s13
  %16 = dma.vmem_to_smem %s14, 16, [#allocation4], [#allocation3]
  %17 = dma.done [#allocation3], 16
  %18 = sfence
  $region1: #{tpu_custom_call.1} parent=0
    #allocation5 [shape = 'u8[4096]{0}', space=vmem, size = 0x1000, scoped, tag = 'input window, operand 1, single buffered']
    #allocation6 [shape = 's32[2]{0}', space=sflag, size = 0x8, scoped, tag = 'scoped memory for tpu_custom_call.1']
    #allocation7 [shape = 's32[2]{0}', space=sflag, size = 0x8, scoped, tag = 'scoped memory for tpu_custom_call.1']
    #allocation8 [shape = 'u8[4096]{0}', space=vmem, size = 0x1000, scoped, tag = 'output window, operand 0, single buffered']
    %19 = vsyncpa [#allocation6], 0
    %20 = vsyncpa [#allocation7], 0
    loop: start=0, step=1, limit=4
    $region2: #{tpu_custom_call.1} parent=1 // loop_pre_header
      _
    $region3: #{tpu_custom_call.1} parent=1 // loop_header
      %s22 = sphi 0, %s26
      %p23 = scmp.ge.s32.totalorder %s22, 4
      %s29 = sphi 0, %s41
      %s30 = sphi 0, %s37
      %s31 = sphi 0, %s29
      %s32 = sphi 0, %s30
      %s33 = sphi 0, %s31
      %s34 = sphi 0, %s32
      %s44 = sphi 0, %s46
      %s47 = sphi 0, %s44
      %s48 = sphi 0, %s47
      %s64 = sphi 0, %s48
      %s70 = sphi 0, %s72
      %s73 = sphi 0, %s70
      %s74 = sphi 0, %s73
      %s90 = sphi 0, %s74
      %s96 = sphi 0, %s98
      %s99 = sphi 0, %s96
      %s100 = sphi 0, %s99
      %s116 = sphi 0, %s100
      %s122 = sphi 0, %s124
      %s125 = sphi 0, %s122
      %s126 = sphi 0, %s125
      %s142 = sphi 0, %s126
      %s148 = sphi 0, %s150
      %s151 = sphi 0, %s148
      %s152 = sphi 0, %s151
      %s168 = sphi 0, %s152
      %s174 = sphi 0, %s176
      %s177 = sphi 0, %s174
      %s178 = sphi 0, %s177
      %s194 = sphi 0, %s178
      %s200 = sphi 0, %s202
      %s203 = sphi 0, %s200
      %s204 = sphi 0, %s203
      %s220 = sphi 0, %s204
      %s226 = sphi 0, %s228
      %s229 = sphi 0, %s226
      %s230 = sphi 0, %s229
      %s246 = sphi 0, %s230
    $region4: #{tpu_custom_call.1} parent=1 // loop_header_branch
      %25 = sbr.rel (%p23) target = $region8
    $region5: #{tpu_custom_call.1} parent=1 // loop_body
      %s27 = ssub.s32 %s22, 1
      %s28 = ssub.s32 %s22, 2
      %s35 = sadd.s32 1, %s30
      %p36 = scmp.ge.s32.totalorder %s35, 2
      %s37 = scalar_select %p36, 0, %s35
      %s38 = sadd.s32 1, %s29
      %s39 = scalar_select %p36, %s38, %s29
      %p40 = scmp.ge.s32.totalorder %s39, 1
      %s41 = scalar_select %p40, 0, %s39
      %s42 = ssub.s32 %s29, %s41
      %p43 = scmp.eq.s32.totalorder %s42, 0
      %s45 = sadd.s32 %s44, 1
      %s46 = scalar_select %p43, %s44, %s45
      %p49 = pneg %p43
      %p50 = scmp.eq.s32.totalorder %s22, 1
      %p51 = por %p49, %p50
      %p52 = scmp.ne.s32.totalorder %s44, %s47
      %p53 = scmp.eq.s32.totalorder %s22, 0
      %p54 = por %p52, %p53
      %p55 = scmp.ne.s32.totalorder %s44, %s47
      %p56 = scmp.eq.s32.totalorder %s27, 1
      %p57 = por %p55, %p56
      %p58 = scmp.ne.s32.totalorder %s47, %s48
      %p59 = scmp.eq.s32.totalorder %s27, 0
      %p60 = por %p58, %p59
      %p61 = scmp.ne.s32.totalorder %s47, %s48
      %p62 = scmp.eq.s32.totalorder %s28, 1
      %p63 = por %p61, %p62
      %p65 = scmp.ne.s32.totalorder %s48, %s64
      %p66 = scmp.eq.s32.totalorder %s28, 0
      %p67 = por %p65, %p66
      %s68 = ssub.s32 %s30, %s37
      %p69 = scmp.eq.s32.totalorder %s68, 0
      %s71 = sadd.s32 %s70, 1
      %s72 = scalar_select %p69, %s70, %s71
      %p75 = pneg %p69
      %p76 = scmp.eq.s32.totalorder %s22, 1
      %p77 = por %p75, %p76
      %p78 = scmp.ne.s32.totalorder %s70, %s73
      %p79 = scmp.eq.s32.totalorder %s22, 0
      %p80 = por %p78, %p79
      %p81 = scmp.ne.s32.totalorder %s70, %s73
      %p82 = scmp.eq.s32.totalorder %s27, 1
      %p83 = por %p81, %p82
      %p84 = scmp.ne.s32.totalorder %s73, %s74
      %p85 = scmp.eq.s32.totalorder %s27, 0
      %p86 = por %p84, %p85
      %p87 = scmp.ne.s32.totalorder %s73, %s74
      %p88 = scmp.eq.s32.totalorder %s28, 1
      %p89 = por %p87, %p88
      %p91 = scmp.ne.s32.totalorder %s74, %s90
      %p92 = scmp.eq.s32.totalorder %s28, 0
      %p93 = por %p91, %p92
      %s94 = ssub.s32 %s30, %s37
      %p95 = scmp.eq.s32.totalorder %s94, 0
      %s97 = sadd.s32 %s96, 1
      %s98 = scalar_select %p95, %s96, %s97
      %p101 = pneg %p95
      %p102 = scmp.eq.s32.totalorder %s22, 1
      %p103 = por %p101, %p102
      %p104 = scmp.ne.s32.totalorder %s96, %s99
      %p105 = scmp.eq.s32.totalorder %s22, 0
      %p106 = por %p104, %p105
      %p107 = scmp.ne.s32.totalorder %s96, %s99
      %p108 = scmp.eq.s32.totalorder %s27, 1
      %p109 = por %p107, %p108
      %p110 = scmp.ne.s32.totalorder %s99, %s100
      %p111 = scmp.eq.s32.totalorder %s27, 0
      %p112 = por %p110, %p111
      %p113 = scmp.ne.s32.totalorder %s99, %s100
      %p114 = scmp.eq.s32.totalorder %s28, 1
      %p115 = por %p113, %p114
      %p117 = scmp.ne.s32.totalorder %s100, %s116
      %p118 = scmp.eq.s32.totalorder %s28, 0
      %p119 = por %p117, %p118
      %s120 = ssub.s32 %s30, %s37
      %p121 = scmp.eq.s32.totalorder %s120, 0
      %s123 = sadd.s32 %s122, 1
      %s124 = scalar_select %p121, %s122, %s123
      %p127 = pneg %p121
      %p128 = scmp.eq.s32.totalorder %s22, 1
      %p129 = por %p127, %p128
      %p130 = scmp.ne.s32.totalorder %s122, %s125
      %p131 = scmp.eq.s32.totalorder %s22, 0
      %p132 = por %p130, %p131
      %p133 = scmp.ne.s32.totalorder %s122, %s125
      %p134 = scmp.eq.s32.totalorder %s27, 1
      %p135 = por %p133, %p134
      %p136 = scmp.ne.s32.totalorder %s125, %s126
      %p137 = scmp.eq.s32.totalorder %s27, 0
      %p138 = por %p136, %p137
      %p139 = scmp.ne.s32.totalorder %s125, %s126
      %p140 = scmp.eq.s32.totalorder %s28, 1
      %p141 = por %p139, %p140
      %p143 = scmp.ne.s32.totalorder %s126, %s142
      %p144 = scmp.eq.s32.totalorder %s28, 0
      %p145 = por %p143, %p144
      %s146 = ssub.s32 %s30, %s37
      %p147 = scmp.eq.s32.totalorder %s146, 0
      %s149 = sadd.s32 %s148, 1
      %s150 = scalar_select %p147, %s148, %s149
      %p153 = pneg %p147
      %p154 = scmp.eq.s32.totalorder %s22, 1
      %p155 = por %p153, %p154
      %p156 = scmp.ne.s32.totalorder %s148, %s151
      %p157 = scmp.eq.s32.totalorder %s22, 0
      %p158 = por %p156, %p157
      %p159 = scmp.ne.s32.totalorder %s148, %s151
      %p160 = scmp.eq.s32.totalorder %s27, 1
      %p161 = por %p159, %p160
      %p162 = scmp.ne.s32.totalorder %s151, %s152
      %p163 = scmp.eq.s32.totalorder %s27, 0
      %p164 = por %p162, %p163
      %p165 = scmp.ne.s32.totalorder %s151, %s152
      %p166 = scmp.eq.s32.totalorder %s28, 1
      %p167 = por %p165, %p166
      %p169 = scmp.ne.s32.totalorder %s152, %s168
      %p170 = scmp.eq.s32.totalorder %s28, 0
      %p171 = por %p169, %p170
      %s172 = ssub.s32 %s30, %s37
      %p173 = scmp.eq.s32.totalorder %s172, 0
      %s175 = sadd.s32 %s174, 1
      %s176 = scalar_select %p173, %s174, %s175
      %p179 = pneg %p173
      %p180 = scmp.eq.s32.totalorder %s22, 1
      %p181 = por %p179, %p180
      %p182 = scmp.ne.s32.totalorder %s174, %s177
      %p183 = scmp.eq.s32.totalorder %s22, 0
      %p184 = por %p182, %p183
      %p185 = scmp.ne.s32.totalorder %s174, %s177
      %p186 = scmp.eq.s32.totalorder %s27, 1
      %p187 = por %p185, %p186
      %p188 = scmp.ne.s32.totalorder %s177, %s178
      %p189 = scmp.eq.s32.totalorder %s27, 0
      %p190 = por %p188, %p189
      %p191 = scmp.ne.s32.totalorder %s177, %s178
      %p192 = scmp.eq.s32.totalorder %s28, 1
      %p193 = por %p191, %p192
      %p195 = scmp.ne.s32.totalorder %s178, %s194
      %p196 = scmp.eq.s32.totalorder %s28, 0
      %p197 = por %p195, %p196
      %s198 = ssub.s32 %s30, %s37
      %p199 = scmp.eq.s32.totalorder %s198, 0
      %s201 = sadd.s32 %s200, 1
      %s202 = scalar_select %p199, %s200, %s201
      %p205 = pneg %p199
      %p206 = scmp.eq.s32.totalorder %s22, 1
      %p207 = por %p205, %p206
      %p208 = scmp.ne.s32.totalorder %s200, %s203
      %p209 = scmp.eq.s32.totalorder %s22, 0
      %p210 = por %p208, %p209
      %p211 = scmp.ne.s32.totalorder %s200, %s203
      %p212 = scmp.eq.s32.totalorder %s27, 1
      %p213 = por %p211, %p212
      %p214 = scmp.ne.s32.totalorder %s203, %s204
      %p215 = scmp.eq.s32.totalorder %s27, 0
      %p216 = por %p214, %p215
      %p217 = scmp.ne.s32.totalorder %s203, %s204
      %p218 = scmp.eq.s32.totalorder %s28, 1
      %p219 = por %p217, %p218
      %p221 = scmp.ne.s32.totalorder %s204, %s220
      %p222 = scmp.eq.s32.totalorder %s28, 0
      %p223 = por %p221, %p222
      %s224 = ssub.s32 %s29, %s41
      %p225 = scmp.eq.s32.totalorder %s224, 0
      %s227 = sadd.s32 %s226, 1
      %s228 = scalar_select %p225, %s226, %s227
      %p231 = pneg %p225
      %p232 = scmp.eq.s32.totalorder %s22, 1
      %p233 = por %p231, %p232
      %p234 = scmp.ne.s32.totalorder %s226, %s229
      %p235 = scmp.eq.s32.totalorder %s22, 0
      %p236 = por %p234, %p235
      %p237 = scmp.ne.s32.totalorder %s226, %s229
      %p238 = scmp.eq.s32.totalorder %s27, 1
      %p239 = por %p237, %p238
      %p240 = scmp.ne.s32.totalorder %s229, %s230
      %p241 = scmp.eq.s32.totalorder %s27, 0
      %p242 = por %p240, %p241
      %p243 = scmp.ne.s32.totalorder %s229, %s230
      %p244 = scmp.eq.s32.totalorder %s28, 1
      %p245 = por %p243, %p244
      %p247 = scmp.ne.s32.totalorder %s230, %s246
      %p248 = scmp.eq.s32.totalorder %s28, 0
      %p249 = por %p247, %p248
      %p250 = scmp.le.s32.totalorder 1, %s22
      %p251 = scmp.lt.s32.totalorder %s22, 3
      %p252 = pnand %p250, %p251
      %p253 = pneg %p252
      // Predicated region
      $region9: #{tpu_custom_call.1} parent=5 // pred_check
        _
      $region10: #{tpu_custom_call.1} parent=5 // pred_check_branch
        %255 = sbr.rel (%p252) target = $region12
      $region11: #{tpu_custom_call.1} parent=5 // pred_region
        %s256 = ssub.s32 %s22, 1
        // Predicated region
        $region13: #{tpu_custom_call.1} parent=11 // pred_check
          %p257 = pneg %p60
        $region14: #{tpu_custom_call.1} parent=11 // pred_check_branch
          %259 = sbr.rel (%p257) target = $region16
        $region15: #{tpu_custom_call.1} parent=11 // pred_region
          %s260 = smul.u32 2, %s31
          %s262 = ssub.s32 128, 128
          %263 = vsyncadd [#allocation6], %s262
          %s264 = smul.addr %s260, 64
          %s265 = scalar_lea.hbm %s1, %s264
          %s266 = sshll.u32 [#allocation5], 4
          %s267 = int_to_ptr.vmem [resolvable:$true] %s266
          %272 = dma.hbm_to_vmem [thread:$0]  %s265, 128, %s267, [#allocation6], 64, 64, 4
        $region16: #{tpu_custom_call.1} parent=11 // pred_fallthru
          _
      $region12: #{tpu_custom_call.1} parent=5 // pred_fallthru
        _
      %p273 = scmp.lt.s32.totalorder %s22, 2
      // Predicated region
      $region17: #{tpu_custom_call.1} parent=5 // pred_check
        %p274 = pneg %p273
      $region18: #{tpu_custom_call.1} parent=5 // pred_check_branch
        %276 = sbr.rel (%p274) target = $region20
      $region19: #{tpu_custom_call.1} parent=5 // pred_region
        // Predicated region
        $region21: #{tpu_custom_call.1} parent=19 // pred_check
          %p277 = pneg %p80
        $region22: #{tpu_custom_call.1} parent=19 // pred_check_branch
          %279 = sbr.rel (%p277) target = $region24
        $region23: #{tpu_custom_call.1} parent=19 // pred_region
          %p280 = scmp.lt.s32.totalorder %s30, 1
          %s281 = scalar_select %p280, %s30, 1
          %s282 = smul.addr %s281, 4
          %s283 = smul.addr %s282, 4
          %s284 = scalar_lea.vmem %s2, %s283
        $region24: #{tpu_custom_call.1} parent=19 // pred_fallthru
          _
        // Predicated region
        $region25: #{tpu_custom_call.1} parent=19 // pred_check
          %p285 = pneg %p106
        $region26: #{tpu_custom_call.1} parent=19 // pred_check_branch
          %287 = sbr.rel (%p285) target = $region28
        $region27: #{tpu_custom_call.1} parent=19 // pred_region
          %p288 = scmp.lt.s32.totalorder %s30, 1
          %s289 = scalar_select %p288, %s30, 1
          %s290 = smul.addr %s289, 4
          %s291 = smul.addr %s290, 4
          %s292 = scalar_lea.vmem %s3, %s291
        $region28: #{tpu_custom_call.1} parent=19 // pred_fallthru
          _
        // Predicated region
        $region29: #{tpu_custom_call.1} parent=19 // pred_check
          %p293 = pneg %p132
        $region30: #{tpu_custom_call.1} parent=19 // pred_check_branch
          %295 = sbr.rel (%p293) target = $region32
        $region31: #{tpu_custom_call.1} parent=19 // pred_region
          %p296 = scmp.lt.s32.totalorder %s30, 1
          %s297 = scalar_select %p296, %s30, 1
          %s298 = smul.addr %s297, 4
          %s299 = smul.addr %s298, 4
          %s300 = scalar_lea.vmem %s4, %s299
        $region32: #{tpu_custom_call.1} parent=19 // pred_fallthru
          _
        // Predicated region
        $region33: #{tpu_custom_call.1} parent=19 // pred_check
          %p301 = pneg %p158
        $region34: #{tpu_custom_call.1} parent=19 // pred_check_branch
          %303 = sbr.rel (%p301) target = $region36
        $region35: #{tpu_custom_call.1} parent=19 // pred_region
          %p304 = scmp.lt.s32.totalorder %s30, 1
          %s305 = scalar_select %p304, %s30, 1
          %s306 = smul.addr %s305, 8
          %s307 = smul.addr %s306, 4
          %s308 = scalar_lea.vmem %s5, %s307
        $region36: #{tpu_custom_call.1} parent=19 // pred_fallthru
          _
        // Predicated region
        $region37: #{tpu_custom_call.1} parent=19 // pred_check
          %p309 = pneg %p184
        $region38: #{tpu_custom_call.1} parent=19 // pred_check_branch
          %311 = sbr.rel (%p309) target = $region40
        $region39: #{tpu_custom_call.1} parent=19 // pred_region
          %p312 = scmp.lt.s32.totalorder %s30, 1
          %s313 = scalar_select %p312, %s30, 1
          %s314 = smul.addr %s313, 8
          %s315 = scalar_lea.vmem %s6, %s314
        $region40: #{tpu_custom_call.1} parent=19 // pred_fallthru
          _
        // Predicated region
        $region41: #{tpu_custom_call.1} parent=19 // pred_check
          %p316 = pneg %p210
        $region42: #{tpu_custom_call.1} parent=19 // pred_check_branch
          %318 = sbr.rel (%p316) target = $region44
        $region43: #{tpu_custom_call.1} parent=19 // pred_region
          %p319 = scmp.lt.s32.totalorder %s30, 1
          %s320 = scalar_select %p319, %s30, 1
          %s321 = scalar_lea.vmem %s7, %s320
        $region44: #{tpu_custom_call.1} parent=19 // pred_fallthru
          _
      $region20: #{tpu_custom_call.1} parent=5 // pred_fallthru
        _
      %p322 = scmp.le.s32.totalorder 1, %s22
      %p323 = scmp.lt.s32.totalorder %s22, 3
      %p324 = pnand %p322, %p323
      %p325 = pneg %p324
      // Predicated region
      $region45: #{tpu_custom_call.1} parent=5 // pred_check
        _
      $region46: #{tpu_custom_call.1} parent=5 // pred_check_branch
        %327 = sbr.rel (%p324) target = $region48
      $region47: #{tpu_custom_call.1} parent=5 // pred_region
        %s328 = ssub.s32 %s22, 1
        // Predicated region
        $region49: #{tpu_custom_call.1} parent=47 // pred_check
          %p329 = pneg %p60
        $region50: #{tpu_custom_call.1} parent=47 // pred_check_branch
          %331 = sbr.rel (%p329) target = $region52
        $region51: #{tpu_custom_call.1} parent=47 // pred_region
          %332 = dma.done [#allocation6], 128
        $region52: #{tpu_custom_call.1} parent=47 // pred_fallthru
          _
        %p333 = pneg %p60
        %p334 = pneg %p57
        %p335 = scmp.lt.s32.totalorder %s32, 1
        %s336 = scalar_select %p335, %s32, 1
        %s337 = smul.addr %s336, 4
        %s338 = smul.addr %s337, 4
        %s339 = scalar_lea.vmem %s2, %s338
        %p340 = pneg %p86
        %p341 = pneg %p83
        %p342 = scmp.lt.s32.totalorder %s32, 1
        %s343 = scalar_select %p342, %s32, 1
        %s344 = smul.addr %s343, 4
        %s345 = smul.addr %s344, 4
        %s346 = scalar_lea.vmem %s3, %s345
        %p347 = pneg %p112
        %p348 = pneg %p109
        %p349 = scmp.lt.s32.totalorder %s32, 1
        %s350 = scalar_select %p349, %s32, 1
        %s351 = smul.addr %s350, 4
        %s352 = smul.addr %s351, 4
        %s353 = scalar_lea.vmem %s4, %s352
        %p354 = pneg %p138
        %p355 = pneg %p135
        %p356 = scmp.lt.s32.totalorder %s32, 1
        %s357 = scalar_select %p356, %s32, 1
        %s358 = smul.addr %s357, 8
        %s359 = smul.addr %s358, 4
        %s360 = scalar_lea.vmem %s5, %s359
        %p361 = pneg %p164
        %p362 = pneg %p161
        %p363 = scmp.lt.s32.totalorder %s32, 1
        %s364 = scalar_select %p363, %s32, 1
        %s365 = smul.addr %s364, 8
        %s366 = scalar_lea.vmem %s6, %s365
        %p367 = pneg %p190
        %p368 = pneg %p187
        %p369 = scmp.lt.s32.totalorder %s32, 1
        %s370 = scalar_select %p369, %s32, 1
        %s371 = scalar_lea.vmem %s7, %s370
        %p372 = pneg %p216
        %p373 = pneg %p213
        %p374 = pneg %p242
        %p375 = pneg %p239
        %s376 = smul.u32 2, %s31
        %p377 = scmp.lt.s32.totalorder %s32, 1
        %s378 = scalar_select %p377, %s32, 1
        %s379 = smul.addr %s378, 4
        %s380 = smul.addr %s379, 4
        %s381 = scalar_lea.vmem %s2, %s380
        %p382 = scmp.lt.s32.totalorder %s32, 1
        %s383 = scalar_select %p382, %s32, 1
        %s384 = smul.addr %s383, 4
        %s385 = smul.addr %s384, 4
        %s386 = scalar_lea.vmem %s3, %s385
        %p387 = scmp.lt.s32.totalorder %s32, 1
        %s388 = scalar_select %p387, %s32, 1
        %s389 = smul.addr %s388, 4
        %s390 = smul.addr %s389, 4
        %s391 = scalar_lea.vmem %s4, %s390
        %p392 = scmp.lt.s32.totalorder %s32, 1
        %s393 = scalar_select %p392, %s32, 1
        %s394 = smul.addr %s393, 8
        %s395 = smul.addr %s394, 4
        %s396 = scalar_lea.vmem %s5, %s395
        %p397 = scmp.lt.s32.totalorder %s32, 1
        %s398 = scalar_select %p397, %s32, 1
        %s399 = smul.addr %s398, 8
        %s400 = scalar_lea.vmem %s6, %s399
        %p401 = scmp.lt.s32.totalorder %s32, 1
        %s402 = scalar_select %p401, %s32, 1
        %s403 = scalar_lea.vmem %s7, %s402
        %s404 = smul.u32 2, %s31
        %p406 = scmp.eq.s32.totalorder %s32, 0
        // Predicated region
        $region53: #{tpu_custom_call.1} parent=47 // pred_check
          %p407 = pneg %p406
        $region54: #{tpu_custom_call.1} parent=47 // pred_check_branch
          %409 = sbr.rel (%p407) target = $region56
        $region55: #{tpu_custom_call.1} parent=47 // pred_region
          %v410 = vld [vmem:[#allocation5] sm:$0xf]
          %v411 = vld [vmem:[#allocation5 + $0x4] sm:$0xf]
          %vm412 = vcmask 257024
          %413 = vst.msk [vmem:[#allocation8] sm:$0xf] %vm412, %v410
          %414 = vst.msk [vmem:[#allocation8 + $0x4] sm:$0xf] %vm412, %v411
        $region56: #{tpu_custom_call.1} parent=47 // pred_fallthru
          _
        %v415 = vld [vmem:[#allocation8] sm:$0xf]
        %v416 = vld [vmem:[#allocation8 + $0x4] sm:$0xf]
        %v417 = vunpack.c.l.bf16 %v415
        %v418 = vunpack.c.l.bf16 %v416
        %v419 = vld [vmem:[%s381] sm:$0xf]
        %v420 = vld [vmem:[%s381 + $0x4] sm:$0xf]
        %v421 = vld [vmem:[%s381 + $0x8] sm:$0xf]
        %v422 = vld [vmem:[%s381 + $0xc] sm:$0xf]
        %v423 = vld [vmem:[%s386] sm:$0xf]
        %v424 = vld [vmem:[%s386 + $0x4] sm:$0xf]
        %v425 = vld [vmem:[%s386 + $0x8] sm:$0xf]
        %v426 = vld [vmem:[%s386 + $0xc] sm:$0xf]
        %v427 = vld [vmem:[%s391] sm:$0xf]
        %v428 = vld [vmem:[%s391 + $0x4] sm:$0xf]
        %v429 = vld [vmem:[%s391 + $0x8] sm:$0xf]
        %v430 = vld [vmem:[%s391 + $0xc] sm:$0xf]
        %v431 = vld [vmem:[%s396] sm:$0xf]
        %v432 = vld [vmem:[%s396 + $0x4] sm:$0xf]
        %v433 = vld [vmem:[%s396 + $0x8] sm:$0xf]
        %v434 = vld [vmem:[%s396 + $0xc] sm:$0xf]
        %v435 = vld [vmem:[%s396 + $0x10] sm:$0xf]
        %v436 = vld [vmem:[%s396 + $0x14] sm:$0xf]
        %v437 = vld [vmem:[%s396 + $0x18] sm:$0xf]
        %v438 = vld [vmem:[%s396 + $0x1c] sm:$0xf]
        %v439 = vld [vmem:[%s400] sm:$0x1]
        %v440 = vld [vmem:[%s400 + $0x1] sm:$0x1]
        %v441 = vld [vmem:[%s400 + $0x2] sm:$0x1]
        %v442 = vld [vmem:[%s400 + $0x3] sm:$0x1]
        %v443 = vld [vmem:[%s400 + $0x4] sm:$0x1]
        %v444 = vld [vmem:[%s400 + $0x5] sm:$0x1]
        %v445 = vld [vmem:[%s400 + $0x6] sm:$0x1]
        %v446 = vld [vmem:[%s403] sm:$0x1]
        %v447 = vlaneseq
        %v448 = vshrl.u32 %v447, 7
        %v449 = vsub.s32 0, %v448
        %v450 = vrot.slane %v439, %v449
        %v453 = vunpack.c.l.b16 %v415
        %v454 = vunpack.c.l.b16 %v416
        %v455 = vpack.c.b16 %v454, %v453
        %v460 = vunpack.c.l.b16 %v419
        %v461 = vunpack.c.l.b16 %v420
        %v462 = vunpack.c.l.b16 %v421
        %v463 = vunpack.c.l.b16 %v422
        %v464 = vpack.c.b16 %v461, %v460
        %v465 = vpack.c.b16 %v463, %v462
        %vm468 = vcmask 261120
        %v470 = vsel %vm468, %v455, 0
        %472 = vmatprep.subr.bf16.mxu0 0
        %473 = vmatpush1.bf16.msra.mxu0 %v464
        %474 = vmatprep.subr.bf16.mxu0 0
        %475 = vmatpush1.bf16.msra.mxu0 %v465
        %476 = vmatprep.subr.bf16.mxu0 0
        %477 = vmatpush1.bf16.msra.mxu0 0
        %478 = vmatprep.subr.bf16.mxu0 0
        %479 = vmatpush1.bf16.msra.mxu0 0
        %480 = vmatprep.subr.bf16.mxu0 0
        %481 = vmatpush1.bf16.msra.mxu0 0
        %482 = vmatprep.subr.bf16.mxu0 0
        %483 = vmatpush1.bf16.msra.mxu0 0
        %484 = vmatprep.subr.bf16.mxu0 0
        %485 = vmatpush1.bf16.msra.mxu0 0
        %486 = vmatprep.subr.bf16.mxu0 0
        %487 = vmatpush1.bf16.msra.mxu0 0
        %488 = vmatprep.subr.bf16.mxu0 0
        %489 = vmatpush1.bf16.msra.mxu0 0
        %490 = vmatprep.subr.bf16.mxu0 0
        %491 = vmatpush1.bf16.msra.mxu0 0
        %492 = vmatprep.subr.bf16.mxu0 0
        %493 = vmatpush1.bf16.msra.mxu0 0
        %494 = vmatprep.subr.bf16.mxu0 0
        %495 = vmatpush1.bf16.msra.mxu0 0
        %496 = vmatprep.subr.bf16.mxu0 0
        %497 = vmatpush1.bf16.msra.mxu0 0
        %498 = vmatprep.subr.bf16.mxu0 0
        %499 = vmatpush1.bf16.msra.mxu0 0
        %500 = vmatprep.subr.bf16.mxu0 0
        %501 = vmatpush1.bf16.msra.mxu0 0
        %502 = vmatprep.subr.bf16.mxu0 0
        %503 = vmatpush1.bf16.msra.mxu0 0
        %504 = vmatprep.mubr.bf16.mxu0 0
        %505 = vmatmul.mubr.bf16.gmra.mrb[0].mxu0 %v470
        %v506 = vpop.f32.mrb[0].mxu0
        %v507 = vadd.f32 %v450, %v506
        %v508 = vpop.f32.mrb[0].mxu0
        %v509 = vpop.f32.mrb[0].mxu0
        %v510 = vadd.f32 %v450, %v509
        %v511 = vpop.f32.mrb[0].mxu0
        %512 = vdwg.mxu0
        %515 = vrot.lane.b32.xlu0 %v507, 112
        %v516 = vpop.permute.xlu0 %515
        %517 = vrot.lane.b32.xlu0 %v510, 112
        %v518 = vpop.permute.xlu0 %517
        %v521 = vpack.c.bf16 %v507, %v507
        %v522 = vpack.c.bf16 %v516, %v516
        %v523 = vpack.c.bf16 %v510, %v510
        %v524 = vpack.c.bf16 %v518, %v518
        %vm525 = vcmask 125952
        %526 = vst.msk [vmem:[#allocation2] sm:$0xf] %vm525, %v521
        %527 = vst.msk [vmem:[#allocation2 + $0x4] sm:$0xf] %vm525, %v522
        %528 = vst.msk [vmem:[#allocation2 + $0x8] sm:$0xf] %vm525, %v523
        %529 = vst.msk [vmem:[#allocation2 + $0xc] sm:$0xf] %vm525, %v524
        %s530 = smul.u32 %s31, 2
        %s531 = sld [smem:[#allocation4 + %s530]]
        %s532 = sadd.s32 %s530, 1
        %s533 = sld [smem:[#allocation4 + %s532]]
        %v534 = vld [vmem:[#allocation2] sm:$0xf]
        %v535 = vld [vmem:[#allocation2 + $0x4] sm:$0xf]
        %v536 = vld [vmem:[#allocation2 + $0x8] sm:$0xf]
        %v537 = vld [vmem:[#allocation2 + $0xc] sm:$0xf]
        %vm538 = vcmask 130048
        %v540 = vsel %vm538, %v521, 0
        %v543 = vsel %vm538, %v534, 0
        %545 = vmatprep.subr.bf16.mxu0 0
        %546 = vmatpush1.bf16.xpose.msra.mxu0 %v543
        %547 = vmatprep.subr.bf16.mxu0 0
        %548 = vmatpush1.bf16.xpose.msra.mxu0 0
        %549 = vmatprep.subr.bf16.mxu0 0
        %550 = vmatpush1.bf16.xpose.msra.mxu0 0
        %551 = vmatprep.subr.bf16.mxu0 0
        %552 = vmatpush1.bf16.xpose.msra.mxu0 0
        %553 = vmatprep.subr.bf16.mxu0 0
        %554 = vmatpush1.bf16.xpose.msra.mxu0 0
        %555 = vmatprep.subr.bf16.mxu0 0
        %556 = vmatpush1.bf16.xpose.msra.mxu0 0
        %557 = vmatprep.subr.bf16.mxu0 0
        %558 = vmatpush1.bf16.xpose.msra.mxu0 0
        %559 = vmatprep.subr.bf16.mxu0 0
        %560 = vmatpush1.bf16.xpose.msra.mxu0 0
        %561 = vmatprep.subr.bf16.mxu0 0
        %562 = vmatpush1.bf16.xpose.msra.mxu0 0
        %563 = vmatprep.subr.bf16.mxu0 0
        %564 = vmatpush1.bf16.xpose.msra.mxu0 0
        %565 = vmatprep.subr.bf16.mxu0 0
        %566 = vmatpush1.bf16.xpose.msra.mxu0 0
        %567 = vmatprep.subr.bf16.mxu0 0
        %568 = vmatpush1.bf16.xpose.msra.mxu0 0
        %569 = vmatprep.subr.bf16.mxu0 0
        %570 = vmatpush1.bf16.xpose.msra.mxu0 0
        %571 = vmatprep.subr.bf16.mxu0 0
        %572 = vmatpush1.bf16.xpose.msra.mxu0 0
        %573 = vmatprep.subr.bf16.mxu0 0
        %574 = vmatpush1.bf16.xpose.msra.mxu0 0
        %575 = vmatprep.subr.bf16.mxu0 0
        %576 = vmatpush1.bf16.xpose.msra.mxu0 0
        %577 = vmatprep.mubr.bf16.mxu0 0
        %578 = vmatmul.mubr.bf16.gmra.mrb[0].mxu0 %v540
        %v579 = vpop.f32.mrb[0].mxu0
        %v580 = vadd.f32 0.0, %v579
        %v581 = vpop.f32.mrb[0].mxu0
        %v582 = vpop.f32.mrb[0].mxu0
        %v583 = vpop.f32.mrb[0].mxu0
        %584 = vdwg.mxu0
        %v586 = vsel %vm538, %v522, 0
        %v589 = vsel %vm538, %v535, 0
        %591 = vmatprep.subr.bf16.mxu0 0
        %592 = vmatpush1.bf16.xpose.msra.mxu0 %v589
        %593 = vmatprep.subr.bf16.mxu0 0
        %594 = vmatpush1.bf16.xpose.msra.mxu0 0
        %595 = vmatprep.subr.bf16.mxu0 0
        %596 = vmatpush1.bf16.xpose.msra.mxu0 0
        %597 = vmatprep.subr.bf16.mxu0 0
        %598 = vmatpush1.bf16.xpose.msra.mxu0 0
        %599 = vmatprep.subr.bf16.mxu0 0
        %600 = vmatpush1.bf16.xpose.msra.mxu0 0
        %601 = vmatprep.subr.bf16.mxu0 0
        %602 = vmatpush1.bf16.xpose.msra.mxu0 0
        %603 = vmatprep.subr.bf16.mxu0 0
        %604 = vmatpush1.bf16.xpose.msra.mxu0 0
        %605 = vmatprep.subr.bf16.mxu0 0
        %606 = vmatpush1.bf16.xpose.msra.mxu0 0
        %607 = vmatprep.subr.bf16.mxu0 0
        %608 = vmatpush1.bf16.xpose.msra.mxu0 0
        %609 = vmatprep.subr.bf16.mxu0 0
        %610 = vmatpush1.bf16.xpose.msra.mxu0 0
        %611 = vmatprep.subr.bf16.mxu0 0
        %612 = vmatpush1.bf16.xpose.msra.mxu0 0
        %613 = vmatprep.subr.bf16.mxu0 0
        %614 = vmatpush1.bf16.xpose.msra.mxu0 0
        %615 = vmatprep.subr.bf16.mxu0 0
        %616 = vmatpush1.bf16.xpose.msra.mxu0 0
        %617 = vmatprep.subr.bf16.mxu0 0
        %618 = vmatpush1.bf16.xpose.msra.mxu0 0
        %619 = vmatprep.subr.bf16.mxu0 0
        %620 = vmatpush1.bf16.xpose.msra.mxu0 0
        %621 = vmatprep.subr.bf16.mxu0 0
        %622 = vmatpush1.bf16.xpose.msra.mxu0 0
        %623 = vmatprep.mubr.bf16.mxu0 0
        %624 = vmatmul.mubr.bf16.gmra.mrb[0].mxu0 %v586
        %v625 = vpop.f32.mrb[0].mxu0
        %v626 = vadd.f32 0.0, %v625
        %v627 = vpop.f32.mrb[0].mxu0
        %v628 = vpop.f32.mrb[0].mxu0
        %v629 = vpop.f32.mrb[0].mxu0
        %630 = vdwg.mxu0
        %v632 = vsel %vm538, %v523, 0
        %v635 = vsel %vm538, %v536, 0
        %637 = vmatprep.subr.bf16.mxu0 0
        %638 = vmatpush1.bf16.xpose.msra.mxu0 %v635
        %639 = vmatprep.subr.bf16.mxu0 0
        %640 = vmatpush1.bf16.xpose.msra.mxu0 0
        %641 = vmatprep.subr.bf16.mxu0 0
        %642 = vmatpush1.bf16.xpose.msra.mxu0 0
        %643 = vmatprep.subr.bf16.mxu0 0
        %644 = vmatpush1.bf16.xpose.msra.mxu0 0
        %645 = vmatprep.subr.bf16.mxu0 0
        %646 = vmatpush1.bf16.xpose.msra.mxu0 0
        %647 = vmatprep.subr.bf16.mxu0 0
        %648 = vmatpush1.bf16.xpose.msra.mxu0 0
        %649 = vmatprep.subr.bf16.mxu0 0
        %650 = vmatpush1.bf16.xpose.msra.mxu0 0
        %651 = vmatprep.subr.bf16.mxu0 0
        %652 = vmatpush1.bf16.xpose.msra.mxu0 0
        %653 = vmatprep.subr.bf16.mxu0 0
        %654 = vmatpush1.bf16.xpose.msra.mxu0 0
        %655 = vmatprep.subr.bf16.mxu0 0
        %656 = vmatpush1.bf16.xpose.msra.mxu0 0
        %657 = vmatprep.subr.bf16.mxu0 0
        %658 = vmatpush1.bf16.xpose.msra.mxu0 0
        %659 = vmatprep.subr.bf16.mxu0 0
        %660 = vmatpush1.bf16.xpose.msra.mxu0 0
        %661 = vmatprep.subr.bf16.mxu0 0
        %662 = vmatpush1.bf16.xpose.msra.mxu0 0
        %663 = vmatprep.subr.bf16.mxu0 0
        %664 = vmatpush1.bf16.xpose.msra.mxu0 0
        %665 = vmatprep.subr.bf16.mxu0 0
        %666 = vmatpush1.bf16.xpose.msra.mxu0 0
        %667 = vmatprep.subr.bf16.mxu0 0
        %668 = vmatpush1.bf16.xpose.msra.mxu0 0
        %669 = vmatprep.mubr.bf16.mxu0 0
        %670 = vmatmul.mubr.bf16.gmra.mrb[0].mxu0 %v632
        %v671 = vpop.f32.mrb[0].mxu0
        %v672 = vadd.f32 0.0, %v671
        %v673 = vpop.f32.mrb[0].mxu0
        %v674 = vpop.f32.mrb[0].mxu0
        %v675 = vpop.f32.mrb[0].mxu0
        %676 = vdwg.mxu0
        %v678 = vsel %vm538, %v524, 0
        %v681 = vsel %vm538, %v537, 0
        %683 = vmatprep.subr.bf16.mxu0 0
        %684 = vmatpush1.bf16.xpose.msra.mxu0 %v681
        %685 = vmatprep.subr.bf16.mxu0 0
        %686 = vmatpush1.bf16.xpose.msra.mxu0 0
        %687 = vmatprep.subr.bf16.mxu0 0
        %688 = vmatpush1.bf16.xpose.msra.mxu0 0
        %689 = vmatprep.subr.bf16.mxu0 0
        %690 = vmatpush1.bf16.xpose.msra.mxu0 0
        %691 = vmatprep.subr.bf16.mxu0 0
        %692 = vmatpush1.bf16.xpose.msra.mxu0 0
        %693 = vmatprep.subr.bf16.mxu0 0
        %694 = vmatpush1.bf16.xpose.msra.mxu0 0
        %695 = vmatprep.subr.bf16.mxu0 0
        %696 = vmatpush1.bf16.xpose.msra.mxu0 0
        %697 = vmatprep.subr.bf16.mxu0 0
        %698 = vmatpush1.bf16.xpose.msra.mxu0 0
        %699 = vmatprep.subr.bf16.mxu0 0
        %700 = vmatpush1.bf16.xpose.msra.mxu0 0
        %701 = vmatprep.subr.bf16.mxu0 0
        %702 = vmatpush1.bf16.xpose.msra.mxu0 0
        %703 = vmatprep.subr.bf16.mxu0 0
        %704 = vmatpush1.bf16.xpose.msra.mxu0 0
        %705 = vmatprep.subr.bf16.mxu0 0
        %706 = vmatpush1.bf16.xpose.msra.mxu0 0
        %707 = vmatprep.subr.bf16.mxu0 0
        %708 = vmatpush1.bf16.xpose.msra.mxu0 0
        %709 = vmatprep.subr.bf16.mxu0 0
        %710 = vmatpush1.bf16.xpose.msra.mxu0 0
        %711 = vmatprep.subr.bf16.mxu0 0
        %712 = vmatpush1.bf16.xpose.msra.mxu0 0
        %713 = vmatprep.subr.bf16.mxu0 0
        %714 = vmatpush1.bf16.xpose.msra.mxu0 0
        %715 = vmatprep.mubr.bf16.mxu0 0
        %716 = vmatmul.mubr.bf16.gmra.mrb[0].mxu0 %v678
        %v717 = vpop.f32.mrb[0].mxu0
        %v718 = vadd.f32 0.0, %v717
        %v719 = vpop.f32.mrb[0].mxu0
        %v720 = vpop.f32.mrb[0].mxu0
        %v721 = vpop.f32.mrb[0].mxu0
        %722 = vdwg.mxu0
        %v723 = vmul.f32 %v580, 0.25
        %v724 = vmul.f32 %v626, 0.25
        %v725 = vmul.f32 %v672, 0.25
        %v726 = vmul.f32 %v718, 0.25
        %v727 = vlaneseq
        %v728 = vand.u32 %v727, 127
        %v729 = vstv 0
        %v730 = vadd.s32 %v728, %v729
        %v731 = vstv %s531
        %vm732 = vcmp.lt.s32.totalorder %v730, %v731
        %v733 = vstv %s533
        %vm734 = vcmp.lt.s32.totalorder %v730, %v733
        %v735 = vsel %vm732, 1, 0
        %v736 = vsel %vm734, 1, 0
        %vm737 = vcmp.eq.s32.totalorder %v735, 1
        %vm738 = vcmp.eq.s32.totalorder %v736, 1
        %v739 = vsel %vm737, 1, 0
        %v740 = vsel %vm738, 1, 0
        %v741 = vlaneseq
        %v742 = vshrl.u32 %v741, 7
        %v743 = vsub.s32 0, %v742
        %v744 = vrot.slane %v739, %v743
        %v745 = vlaneseq
        %v746 = vshrl.u32 %v745, 7
        %v747 = vsub.s32 0, %v746
        %v748 = vrot.slane %v740, %v747
        %vm749 = vcmp.eq.s32.totalorder %v744, 1
        %vm750 = vcmp.eq.s32.totalorder %v748, 1
        %v751 = vsel %vm749, %v723, -1000000.0
        %v752 = vsel %vm749, %v724, -1000000.0
        %v753 = vsel %vm750, %v725, -1000000.0
        %v754 = vsel %vm750, %v726, -1000000.0
        %vm755 = vcmask 64512
        %v756 = vsel %vm755, %v751, -inf
        %757 = vmax.xlane.f32.xlu0 %v756
        %v758 = vpop.xlane.xlu0 %757
        %v759 = vsel %vm755, %v752, -inf
        %760 = vmax.xlane.f32.xlu0 %v759
        %v761 = vpop.xlane.xlu0 %760
        %v762 = vsel %vm755, %v753, -inf
        %763 = vmax.xlane.f32.xlu0 %v762
        %v764 = vpop.xlane.xlu0 %763
        %v765 = vsel %vm755, %v754, -inf
        %766 = vmax.xlane.f32.xlu0 %v765
        %v767 = vpop.xlane.xlu0 %766
        %v768 = vsub.f32 -inf, %v758
        %v769 = vsub.f32 -inf, %v761
        %v770 = vsub.f32 -inf, %v764
        %v771 = vsub.f32 -inf, %v767
        %v772 = vmul.f32 %v768, 1.442695
        %v773 = vpow.pop %v772
        %v774 = vmul.f32 %v769, 1.442695
        %v775 = vpow.pop %v774
        %v776 = vmul.f32 %v770, 1.442695
        %v777 = vpow.pop %v776
        %v778 = vmul.f32 %v771, 1.442695
        %v779 = vpow.pop %v778
        %v780 = vsub.f32 %v751, %v758
        %v781 = vsub.f32 %v752, %v761
        %v782 = vsub.f32 %v753, %v764
        %v783 = vsub.f32 %v754, %v767
        %v784 = vpack.c.bf16 %v780, %v780
        %v785 = vpack.c.bf16 %v781, %v781
        %v786 = vpack.c.bf16 %v782, %v782
        %v787 = vpack.c.bf16 %v783, %v783
        %v789 = vmul.bf16 %v784, 1069105081
        %v790 = vpow.bf16.pop %v789
        %v792 = vmul.bf16 %v785, 1069105081
        %v793 = vpow.bf16.pop %v792
        %v795 = vmul.bf16 %v786, 1069105081
        %v796 = vpow.bf16.pop %v795
        %v798 = vmul.bf16 %v787, 1069105081
        %v799 = vpow.bf16.pop %v798
        %v800 = vmul.f32 %v773, 0.0
        %v801 = vmul.f32 %v775, 0.0
        %v802 = vmul.f32 %v777, 0.0
        %v803 = vmul.f32 %v779, 0.0
        %v804 = vunpack.c.l.bf16 %v790
        %v805 = vunpack.c.l.bf16 %v793
        %v806 = vunpack.c.l.bf16 %v796
        %v807 = vunpack.c.l.bf16 %v799
        %v808 = vsel %vm755, %v804, 0.0
        %809 = vadd.xlane.f32.xlu0 %v808
        %v810 = vpop.xlane.xlu0 %809
        %v811 = vsel %vm755, %v805, 0.0
        %812 = vadd.xlane.f32.xlu0 %v811
        %v813 = vpop.xlane.xlu0 %812
        %v814 = vsel %vm755, %v806, 0.0
        %815 = vadd.xlane.f32.xlu0 %v814
        %v816 = vpop.xlane.xlu0 %815
        %v817 = vsel %vm755, %v807, 0.0
        %818 = vadd.xlane.f32.xlu0 %v817
        %v819 = vpop.xlane.xlu0 %818
        %v820 = vadd.f32 %v800, %v810
        %v821 = vadd.f32 %v801, %v813
        %v822 = vadd.f32 %v802, %v816
        %v823 = vadd.f32 %v803, %v819
        %v825 = vsel %vm755, %v790, 0
        %vm827 = vcmask 1043456
        %v828 = vsel %vm827, %v534, 0
        %830 = vmatprep.subr.bf16.mxu0 0
        %831 = vmatpush1.bf16.msra.mxu0 %v828
        %832 = vmatprep.subr.bf16.mxu0 0
        %833 = vmatpush1.bf16.msra.mxu0 0
        %834 = vmatprep.subr.bf16.mxu0 0
        %835 = vmatpush1.bf16.msra.mxu0 0
        %836 = vmatprep.subr.bf16.mxu0 0
        %837 = vmatpush1.bf16.msra.mxu0 0
        %838 = vmatprep.subr.bf16.mxu0 0
        %839 = vmatpush1.bf16.msra.mxu0 0
        %840 = vmatprep.subr.bf16.mxu0 0
        %841 = vmatpush1.bf16.msra.mxu0 0
        %842 = vmatprep.subr.bf16.mxu0 0
        %843 = vmatpush1.bf16.msra.mxu0 0
        %844 = vmatprep.subr.bf16.mxu0 0
        %845 = vmatpush1.bf16.msra.mxu0 0
        %846 = vmatprep.subr.bf16.mxu0 0
        %847 = vmatpush1.bf16.msra.mxu0 0
        %848 = vmatprep.subr.bf16.mxu0 0
        %849 = vmatpush1.bf16.msra.mxu0 0
        %850 = vmatprep.subr.bf16.mxu0 0
        %851 = vmatpush1.bf16.msra.mxu0 0
        %852 = vmatprep.subr.bf16.mxu0 0
        %853 = vmatpush1.bf16.msra.mxu0 0
        %854 = vmatprep.subr.bf16.mxu0 0
        %855 = vmatpush1.bf16.msra.mxu0 0
        %856 = vmatprep.subr.bf16.mxu0 0
        %857 = vmatpush1.bf16.msra.mxu0 0
        %858 = vmatprep.subr.bf16.mxu0 0
        %859 = vmatpush1.bf16.msra.mxu0 0
        %860 = vmatprep.subr.bf16.mxu0 0
        %861 = vmatpush1.bf16.msra.mxu0 0
        %862 = vmatprep.mubr.bf16.mxu0 0
        %863 = vmatmul.mubr.bf16.gmra.mrb[0].mxu0 %v825
        %v864 = vpop.f32.mrb[0].mxu0
        %v865 = vadd.f32 0.0, %v864
        %v866 = vpop.f32.mrb[0].mxu0
        %v867 = vpop.f32.mrb[0].mxu0
        %v868 = vpop.f32.mrb[0].mxu0
        %869 = vdwg.mxu0
        %v871 = vsel %vm755, %v793, 0
        %v873 = vsel %vm827, %v535, 0
        %875 = vmatprep.subr.bf16.mxu0 0
        %876 = vmatpush1.bf16.msra.mxu0 %v873
        %877 = vmatprep.subr.bf16.mxu0 0
        %878 = vmatpush1.bf16.msra.mxu0 0
        %879 = vmatprep.subr.bf16.mxu0 0
        %880 = vmatpush1.bf16.msra.mxu0 0
        %881 = vmatprep.subr.bf16.mxu0 0
        %882 = vmatpush1.bf16.msra.mxu0 0
        %883 = vmatprep.subr.bf16.mxu0 0
        %884 = vmatpush1.bf16.msra.mxu0 0
        %885 = vmatprep.subr.bf16.mxu0 0
        %886 = vmatpush1.bf16.msra.mxu0 0
        %887 = vmatprep.subr.bf16.mxu0 0
        %888 = vmatpush1.bf16.msra.mxu0 0
        %889 = vmatprep.subr.bf16.mxu0 0
        %890 = vmatpush1.bf16.msra.mxu0 0
        %891 = vmatprep.subr.bf16.mxu0 0
        %892 = vmatpush1.bf16.msra.mxu0 0
        %893 = vmatprep.subr.bf16.mxu0 0
        %894 = vmatpush1.bf16.msra.mxu0 0
        %895 = vmatprep.subr.bf16.mxu0 0
        %896 = vmatpush1.bf16.msra.mxu0 0
        %897 = vmatprep.subr.bf16.mxu0 0
        %898 = vmatpush1.bf16.msra.mxu0 0
        %899 = vmatprep.subr.bf16.mxu0 0
        %900 = vmatpush1.bf16.msra.mxu0 0
        %901 = vmatprep.subr.bf16.mxu0 0
        %902 = vmatpush1.bf16.msra.mxu0 0
        %903 = vmatprep.subr.bf16.mxu0 0
        %904 = vmatpush1.bf16.msra.mxu0 0
        %905 = vmatprep.subr.bf16.mxu0 0
        %906 = vmatpush1.bf16.msra.mxu0 0
        %907 = vmatprep.mubr.bf16.mxu0 0
        %908 = vmatmul.mubr.bf16.gmra.mrb[0].mxu0 %v871
        %v909 = vpop.f32.mrb[0].mxu0
        %v910 = vadd.f32 0.0, %v909
        %v911 = vpop.f32.mrb[0].mxu0
        %v912 = vpop.f32.mrb[0].mxu0
        %v913 = vpop.f32.mrb[0].mxu0
        %914 = vdwg.mxu0
        %v916 = vsel %vm755, %v796, 0
        %v918 = vsel %vm827, %v536, 0
        %920 = vmatprep.subr.bf16.mxu0 0
        %921 = vmatpush1.bf16.msra.mxu0 %v918
        %922 = vmatprep.subr.bf16.mxu0 0
        %923 = vmatpush1.bf16.msra.mxu0 0
        %924 = vmatprep.subr.bf16.mxu0 0
        %925 = vmatpush1.bf16.msra.mxu0 0
        %926 = vmatprep.subr.bf16.mxu0 0
        %927 = vmatpush1.bf16.msra.mxu0 0
        %928 = vmatprep.subr.bf16.mxu0 0
        %929 = vmatpush1.bf16.msra.mxu0 0
        %930 = vmatprep.subr.bf16.mxu0 0
        %931 = vmatpush1.bf16.msra.mxu0 0
        %932 = vmatprep.subr.bf16.mxu0 0
        %933 = vmatpush1.bf16.msra.mxu0 0
        %934 = vmatprep.subr.bf16.mxu0 0
        %935 = vmatpush1.bf16.msra.mxu0 0
        %936 = vmatprep.subr.bf16.mxu0 0
        %937 = vmatpush1.bf16.msra.mxu0 0
        %938 = vmatprep.subr.bf16.mxu0 0
        %939 = vmatpush1.bf16.msra.mxu0 0
        %940 = vmatprep.subr.bf16.mxu0 0
        %941 = vmatpush1.bf16.msra.mxu0 0
        %942 = vmatprep.subr.bf16.mxu0 0
        %943 = vmatpush1.bf16.msra.mxu0 0
        %944 = vmatprep.subr.bf16.mxu0 0
        %945 = vmatpush1.bf16.msra.mxu0 0
        %946 = vmatprep.subr.bf16.mxu0 0
        %947 = vmatpush1.bf16.msra.mxu0 0
        %948 = vmatprep.subr.bf16.mxu0 0
        %949 = vmatpush1.bf16.msra.mxu0 0
        %950 = vmatprep.subr.bf16.mxu0 0
        %951 = vmatpush1.bf16.msra.mxu0 0
        %952 = vmatprep.mubr.bf16.mxu0 0
        %953 = vmatmul.mubr.bf16.gmra.mrb[0].mxu0 %v916
        %v954 = vpop.f32.mrb[0].mxu0
        %v955 = vadd.f32 0.0, %v954
        %v956 = vpop.f32.mrb[0].mxu0
        %v957 = vpop.f32.mrb[0].mxu0
        %v958 = vpop.f32.mrb[0].mxu0
        %959 = vdwg.mxu0
        %v961 = vsel %vm755, %v799, 0
        %v963 = vsel %vm827, %v537, 0
        %965 = vmatprep.subr.bf16.mxu0 0
        %966 = vmatpush1.bf16.msra.mxu0 %v963
        %967 = vmatprep.subr.bf16.mxu0 0
        %968 = vmatpush1.bf16.msra.mxu0 0
        %969 = vmatprep.subr.bf16.mxu0 0
        %970 = vmatpush1.bf16.msra.mxu0 0
        %971 = vmatprep.subr.bf16.mxu0 0
        %972 = vmatpush1.bf16.msra.mxu0 0
        %973 = vmatprep.subr.bf16.mxu0 0
        %974 = vmatpush1.bf16.msra.mxu0 0
        %975 = vmatprep.subr.bf16.mxu0 0
        %976 = vmatpush1.bf16.msra.mxu0 0
        %977 = vmatprep.subr.bf16.mxu0 0
        %978 = vmatpush1.bf16.msra.mxu0 0
        %979 = vmatprep.subr.bf16.mxu0 0
        %980 = vmatpush1.bf16.msra.mxu0 0
        %981 = vmatprep.subr.bf16.mxu0 0
        %982 = vmatpush1.bf16.msra.mxu0 0
        %983 = vmatprep.subr.bf16.mxu0 0
        %984 = vmatpush1.bf16.msra.mxu0 0
        %985 = vmatprep.subr.bf16.mxu0 0
        %986 = vmatpush1.bf16.msra.mxu0 0
        %987 = vmatprep.subr.bf16.mxu0 0
        %988 = vmatpush1.bf16.msra.mxu0 0
        %989 = vmatprep.subr.bf16.mxu0 0
        %990 = vmatpush1.bf16.msra.mxu0 0
        %991 = vmatprep.subr.bf16.mxu0 0
        %992 = vmatpush1.bf16.msra.mxu0 0
        %993 = vmatprep.subr.bf16.mxu0 0
        %994 = vmatpush1.bf16.msra.mxu0 0
        %995 = vmatprep.subr.bf16.mxu0 0
        %996 = vmatpush1.bf16.msra.mxu0 0
        %997 = vmatprep.mubr.bf16.mxu0 0
        %998 = vmatmul.mubr.bf16.gmra.mrb[0].mxu0 %v961
        %v999 = vpop.f32.mrb[0].mxu0
        %v1000 = vadd.f32 0.0, %v999
        %v1001 = vpop.f32.mrb[0].mxu0
        %v1002 = vpop.f32.mrb[0].mxu0
        %v1003 = vpop.f32.mrb[0].mxu0
        %1004 = vdwg.mxu0
        %v1005 = vadd.f32 %v800, %v865
        %v1006 = vadd.f32 %v801, %v910
        %v1007 = vadd.f32 %v802, %v955
        %v1008 = vadd.f32 %v803, %v1000
        %v1009 = vrcp.pop %v820
        %v1010 = vrcp.pop %v821
        %v1011 = vrcp.pop %v822
        %v1012 = vrcp.pop %v823
        %v1013 = vmul.f32 %v1005, %v1009
        %v1014 = vmul.f32 %v1006, %v1010
        %v1015 = vmul.f32 %v1007, %v1011
        %v1016 = vmul.f32 %v1008, %v1012
        %1019 = vrot.lane.b32.xlu0 %v1014, 16
        %v1020 = vpop.permute.xlu0 %1019
        %1021 = vrot.lane.b32.xlu0 %v1016, 16
        %v1022 = vpop.permute.xlu0 %1021
        %v1025 = vsel %vm538, %v1013, %v1020
        %v1026 = vsel %vm538, %v1015, %v1022
        %v1027 = vpack.c.bf16 %v1026, %v1025
        %v1028 = vlaneseq
        %v1029 = vshrl.u32 %v1028, 7
        %v1030 = vsub.s32 0, %v1029
        %v1031 = vrot.slane %v440, %v1030
        %v1036 = vunpack.c.l.b16 %v423
        %v1037 = vunpack.c.l.b16 %v424
        %v1038 = vunpack.c.l.b16 %v425
        %v1039 = vunpack.c.l.b16 %v426
        %v1040 = vpack.c.b16 %v1037, %v1036
        %v1041 = vpack.c.b16 %v1039, %v1038
        %v1045 = vsel %vm468, %v1027, 0
        %1047 = vmatprep.subr.bf16.mxu0 0
        %1048 = vmatpush1.bf16.msra.mxu0 %v1040
        %1049 = vmatprep.subr.bf16.mxu0 0
        %1050 = vmatpush1.bf16.msra.mxu0 %v1041
        %1051 = vmatprep.subr.bf16.mxu0 0
        %1052 = vmatpush1.bf16.msra.mxu0 0
        %1053 = vmatprep.subr.bf16.mxu0 0
        %1054 = vmatpush1.bf16.msra.mxu0 0
        %1055 = vmatprep.subr.bf16.mxu0 0
        %1056 = vmatpush1.bf16.msra.mxu0 0
        %1057 = vmatprep.subr.bf16.mxu0 0
        %1058 = vmatpush1.bf16.msra.mxu0 0
        %1059 = vmatprep.subr.bf16.mxu0 0
        %1060 = vmatpush1.bf16.msra.mxu0 0
        %1061 = vmatprep.subr.bf16.mxu0 0
        %1062 = vmatpush1.bf16.msra.mxu0 0
        %1063 = vmatprep.subr.bf16.mxu0 0
        %1064 = vmatpush1.bf16.msra.mxu0 0
        %1065 = vmatprep.subr.bf16.mxu0 0
        %1066 = vmatpush1.bf16.msra.mxu0 0
        %1067 = vmatprep.subr.bf16.mxu0 0
        %1068 = vmatpush1.bf16.msra.mxu0 0
        %1069 = vmatprep.subr.bf16.mxu0 0
        %1070 = vmatpush1.bf16.msra.mxu0 0
        %1071 = vmatprep.subr.bf16.mxu0 0
        %1072 = vmatpush1.bf16.msra.mxu0 0
        %1073 = vmatprep.subr.bf16.mxu0 0
        %1074 = vmatpush1.bf16.msra.mxu0 0
        %1075 = vmatprep.subr.bf16.mxu0 0
        %1076 = vmatpush1.bf16.msra.mxu0 0
        %1077 = vmatprep.subr.bf16.mxu0 0
        %1078 = vmatpush1.bf16.msra.mxu0 0
        %1079 = vmatprep.mubr.bf16.mxu0 0
        %1080 = vmatmul.mubr.bf16.gmra.mrb[0].mxu0 %v1045
        %v1081 = vpop.f32.mrb[0].mxu0
        %v1082 = vadd.f32 %v1031, %v1081
        %v1083 = vpop.f32.mrb[0].mxu0
        %v1084 = vpop.f32.mrb[0].mxu0
        %v1085 = vadd.f32 %v1031, %v1084
        %v1086 = vpop.f32.mrb[0].mxu0
        %1087 = vdwg.mxu0
        %v1088 = vadd.f32 %v1082, %v417
        %v1089 = vadd.f32 %v1085, %v418
        %v1090 = vsel %vm468, %v1088, 0.0
        %1091 = vadd.xlane.f32.xlu0 %v1090
        %v1092 = vpop.xlane.xlu0 %1091
        %v1093 = vsel %vm468, %v1089, 0.0
        %1094 = vadd.xlane.f32.xlu0 %v1093
        %v1095 = vpop.xlane.xlu0 %1094
        %v1096 = vrcp.pop 32.0
        %v1097 = vmul.f32 %v1092, %v1096
        %v1098 = vmul.f32 %v1095, %v1096
        %v1099 = vsub.f32 %v1088, %v1097
        %v1100 = vsub.f32 %v1089, %v1098
        %v1101 = vmul.f32 %v1099, %v1099
        %v1102 = vmul.f32 %v1100, %v1100
        %v1103 = vsel %vm468, %v1101, 0.0
        %1104 = vadd.xlane.f32.xlu0 %v1103
        %v1105 = vpop.xlane.xlu0 %1104
        %v1106 = vsel %vm468, %v1102, 0.0
        %1107 = vadd.xlane.f32.xlu0 %v1106
        %v1108 = vpop.xlane.xlu0 %1107
        %v1109 = vmul.f32 %v1105, %v1096
        %v1110 = vmul.f32 %v1108, %v1096
        %v1111 = vadd.f32 %v1109, 1e-05
        %v1112 = vadd.f32 %v1110, 1e-05
        %v1113 = vrsqrt.pop %v1111
        %v1114 = vrsqrt.pop %v1112
        %v1115 = vmul.f32 %v1099, %v1113
        %v1116 = vmul.f32 %v1100, %v1114
        %v1117 = vlaneseq
        %v1118 = vshrl.u32 %v1117, 7
        %v1119 = vsub.s32 0, %v1118
        %v1120 = vrot.slane %v441, %v1119
        %v1121 = vmul.f32 %v1115, %v1120
        %v1122 = vmul.f32 %v1116, %v1120
        %v1123 = vlaneseq
        %v1124 = vshrl.u32 %v1123, 7
        %v1125 = vsub.s32 0, %v1124
        %v1126 = vrot.slane %v442, %v1125
        %v1127 = vadd.f32 %v1121, %v1126
        %v1128 = vadd.f32 %v1122, %v1126
        %v1129 = vpack.c.bf16 %v1127, %v1127
        %v1130 = vpack.c.bf16 %v1128, %v1128
        %v1132 = vlaneseq
        %v1133 = vshrl.u32 %v1132, 7
        %v1134 = vsub.s32 0, %v1133
        %v1135 = vrot.slane %v446, %v1134
        %v1139 = vunpack.c.l.b16 %v1129
        %v1140 = vunpack.c.l.b16 %v1130
        %v1141 = vpack.c.b16 %v1140, %v1139
        %v1146 = vunpack.c.l.b16 %v427
        %v1147 = vunpack.c.l.b16 %v428
        %v1148 = vunpack.c.l.b16 %v429
        %v1149 = vunpack.c.l.b16 %v430
        %v1150 = vpack.c.b16 %v1147, %v1146
        %v1151 = vpack.c.b16 %v1149, %v1148
        %v1155 = vsel %vm468, %v1141, 0
        %1157 = vmatprep.subr.bf16.mxu0 0
        %1158 = vmatpush1.bf16.msra.mxu0 %v1150
        %1159 = vmatprep.subr.bf16.mxu0 0
        %1160 = vmatpush1.bf16.msra.mxu0 %v1151
        %1161 = vmatprep.subr.bf16.mxu0 0
        %1162 = vmatpush1.bf16.msra.mxu0 0
        %1163 = vmatprep.subr.bf16.mxu0 0
        %1164 = vmatpush1.bf16.msra.mxu0 0
        %1165 = vmatprep.subr.bf16.mxu0 0
        %1166 = vmatpush1.bf16.msra.mxu0 0
        %1167 = vmatprep.subr.bf16.mxu0 0
        %1168 = vmatpush1.bf16.msra.mxu0 0
        %1169 = vmatprep.subr.bf16.mxu0 0
        %1170 = vmatpush1.bf16.msra.mxu0 0
        %1171 = vmatprep.subr.bf16.mxu0 0
        %1172 = vmatpush1.bf16.msra.mxu0 0
        %1173 = vmatprep.subr.bf16.mxu0 0
        %1174 = vmatpush1.bf16.msra.mxu0 0
        %1175 = vmatprep.subr.bf16.mxu0 0
        %1176 = vmatpush1.bf16.msra.mxu0 0
        %1177 = vmatprep.subr.bf16.mxu0 0
        %1178 = vmatpush1.bf16.msra.mxu0 0
        %1179 = vmatprep.subr.bf16.mxu0 0
        %1180 = vmatpush1.bf16.msra.mxu0 0
        %1181 = vmatprep.subr.bf16.mxu0 0
        %1182 = vmatpush1.bf16.msra.mxu0 0
        %1183 = vmatprep.subr.bf16.mxu0 0
        %1184 = vmatpush1.bf16.msra.mxu0 0
        %1185 = vmatprep.subr.bf16.mxu0 0
        %1186 = vmatpush1.bf16.msra.mxu0 0
        %1187 = vmatprep.subr.bf16.mxu0 0
        %1188 = vmatpush1.bf16.msra.mxu0 0
        %1189 = vmatprep.mubr.bf16.mxu0 0
        %1190 = vmatmul.mubr.bf16.gmra.mrb[0].mxu0 %v1155
        %v1191 = vpop.f32.mrb[0].mxu0
        %v1192 = vadd.f32 %v1135, %v1191
        %v1193 = vpop.f32.mrb[0].mxu0
        %v1194 = vpop.f32.mrb[0].mxu0
        %v1195 = vadd.f32 %v1135, %v1194
        %v1196 = vpop.f32.mrb[0].mxu0
        %1197 = vdwg.mxu0
        %v1198 = vmax.f32 %v1192, 0.0
        %v1199 = vmax.f32 %v1195, 0.0
        %v1200 = vpack.c.bf16 %v1199, %v1198
        %v1201 = vlaneseq
        %v1202 = vshrl.u32 %v1201, 7
        %v1203 = vsub.s32 0, %v1202
        %v1204 = vrot.slane %v443, %v1203
        %v1213 = vunpack.c.l.b16 %v431
        %v1214 = vunpack.c.l.b16 %v432
        %v1215 = vunpack.c.l.b16 %v433
        %v1216 = vunpack.c.l.b16 %v434
        %v1217 = vunpack.c.l.b16 %v435
        %v1218 = vunpack.c.l.b16 %v436
        %v1219 = vunpack.c.l.b16 %v437
        %v1220 = vunpack.c.l.b16 %v438
        %v1221 = vpack.c.b16 %v1214, %v1213
        %v1222 = vpack.c.b16 %v1216, %v1215
        %v1223 = vpack.c.b16 %v1218, %v1217
        %v1224 = vpack.c.b16 %v1220, %v1219
        %vm1229 = vcmask 523264
        %v1231 = vsel %vm1229, %v1200, 0
        %1233 = vmatprep.subr.bf16.mxu0 0
        %1234 = vmatpush1.bf16.msra.mxu0 %v1221
        %1235 = vmatprep.subr.bf16.mxu0 0
        %1236 = vmatpush1.bf16.msra.mxu0 %v1222
        %1237 = vmatprep.subr.bf16.mxu0 0
        %1238 = vmatpush1.bf16.msra.mxu0 %v1223
        %1239 = vmatprep.subr.bf16.mxu0 0
        %1240 = vmatpush1.bf16.msra.mxu0 %v1224
        %1241 = vmatprep.subr.bf16.mxu0 0
        %1242 = vmatpush1.bf16.msra.mxu0 0
        %1243 = vmatprep.subr.bf16.mxu0 0
        %1244 = vmatpush1.bf16.msra.mxu0 0
        %1245 = vmatprep.subr.bf16.mxu0 0
        %1246 = vmatpush1.bf16.msra.mxu0 0
        %1247 = vmatprep.subr.bf16.mxu0 0
        %1248 = vmatpush1.bf16.msra.mxu0 0
        %1249 = vmatprep.subr.bf16.mxu0 0
        %1250 = vmatpush1.bf16.msra.mxu0 0
        %1251 = vmatprep.subr.bf16.mxu0 0
        %1252 = vmatpush1.bf16.msra.mxu0 0
        %1253 = vmatprep.subr.bf16.mxu0 0
        %1254 = vmatpush1.bf16.msra.mxu0 0
        %1255 = vmatprep.subr.bf16.mxu0 0
        %1256 = vmatpush1.bf16.msra.mxu0 0
        %1257 = vmatprep.subr.bf16.mxu0 0
        %1258 = vmatpush1.bf16.msra.mxu0 0
        %1259 = vmatprep.subr.bf16.mxu0 0
        %1260 = vmatpush1.bf16.msra.mxu0 0
        %1261 = vmatprep.subr.bf16.mxu0 0
        %1262 = vmatpush1.bf16.msra.mxu0 0
        %1263 = vmatprep.subr.bf16.mxu0 0
        %1264 = vmatpush1.bf16.msra.mxu0 0
        %1265 = vmatprep.mubr.bf16.mxu0 0
        %1266 = vmatmul.mubr.bf16.gmra.mrb[0].mxu0 %v1231
        %v1267 = vpop.f32.mrb[0].mxu0
        %v1268 = vadd.f32 %v1204, %v1267
        %v1269 = vpop.f32.mrb[0].mxu0
        %v1270 = vpop.f32.mrb[0].mxu0
        %v1271 = vadd.f32 %v1204, %v1270
        %v1272 = vpop.f32.mrb[0].mxu0
        %1273 = vdwg.mxu0
        %v1274 = vadd.f32 %v1268, %v1127
        %v1275 = vadd.f32 %v1271, %v1128
        %v1276 = vsel %vm468, %v1274, 0.0
        %1277 = vadd.xlane.f32.xlu0 %v1276
        %v1278 = vpop.xlane.xlu0 %1277
        %v1279 = vsel %vm468, %v1275, 0.0
        %1280 = vadd.xlane.f32.xlu0 %v1279
        %v1281 = vpop.xlane.xlu0 %1280
        %v1282 = vmul.f32 %v1278, %v1096
        %v1283 = vmul.f32 %v1281, %v1096
        %v1284 = vsub.f32 %v1274, %v1282
        %v1285 = vsub.f32 %v1275, %v1283
        %v1286 = vmul.f32 %v1284, %v1284
        %v1287 = vmul.f32 %v1285, %v1285
        %v1288 = vsel %vm468, %v1286, 0.0
        %1289 = vadd.xlane.f32.xlu0 %v1288
        %v1290 = vpop.xlane.xlu0 %1289
        %v1291 = vsel %vm468, %v1287, 0.0
        %1292 = vadd.xlane.f32.xlu0 %v1291
        %v1293 = vpop.xlane.xlu0 %1292
        %v1294 = vmul.f32 %v1290, %v1096
        %v1295 = vmul.f32 %v1293, %v1096
        %v1296 = vadd.f32 %v1294, 1e-05
        %v1297 = vadd.f32 %v1295, 1e-05
        %v1298 = vrsqrt.pop %v1296
        %v1299 = vrsqrt.pop %v1297
        %v1300 = vmul.f32 %v1284, %v1298
        %v1301 = vmul.f32 %v1285, %v1299
        %v1302 = vlaneseq
        %v1303 = vshrl.u32 %v1302, 7
        %v1304 = vsub.s32 0, %v1303
        %v1305 = vrot.slane %v444, %v1304
        %v1306 = vmul.f32 %v1300, %v1305
        %v1307 = vmul.f32 %v1301, %v1305
        %v1308 = vlaneseq
        %v1309 = vshrl.u32 %v1308, 7
        %v1310 = vsub.s32 0, %v1309
        %v1311 = vrot.slane %v445, %v1310
        %v1312 = vadd.f32 %v1306, %v1311
        %v1313 = vadd.f32 %v1307, %v1311
        %v1314 = vpack.c.bf16 %v1312, %v1312
        %v1315 = vpack.c.bf16 %v1313, %v1313
        %vm1316 = vcmask 257024
        %1317 = vst.msk [vmem:[#allocation8] sm:$0xf] %vm1316, %v1314
        %1318 = vst.msk [vmem:[#allocation8 + $0x4] sm:$0xf] %vm1316, %v1315
        // Predicated region
        $region57: #{tpu_custom_call.1} parent=47 // pred_check
          %p1319 = pneg %p239
        $region58: #{tpu_custom_call.1} parent=47 // pred_check_branch
          %1321 = sbr.rel (%p1319) target = $region60
        $region59: #{tpu_custom_call.1} parent=47 // pred_region
          %s1322 = smul.u32 2, %s31
          %s1324 = ssub.s32 128, 128
          %1325 = vsyncadd [#allocation7], %s1324
          %s1326 = smul.addr %s1322, 64
          %s1327 = scalar_lea.hbm %s8, %s1326
          %s1328 = sshll.u32 [#allocation8], 4
          %s1329 = int_to_ptr.vmem [resolvable:$true] %s1328
          %1334 = dma.vmem_to_hbm [thread:$0]  %s1329, 128, %s1327, [#allocation7], 64, 64, 4
        $region60: #{tpu_custom_call.1} parent=47 // pred_fallthru
          _
        // Predicated region
        $region61: #{tpu_custom_call.1} parent=47 // pred_check
          %p1335 = pneg %p239
        $region62: #{tpu_custom_call.1} parent=47 // pred_check_branch
          %1337 = sbr.rel (%p1335) target = $region64
        $region63: #{tpu_custom_call.1} parent=47 // pred_region
          %1338 = dma.done [#allocation7], 128
        $region64: #{tpu_custom_call.1} parent=47 // pred_fallthru
          _
      $region48: #{tpu_custom_call.1} parent=5 // pred_fallthru
        _
      %p1339 = scmp.le.s32.totalorder 2, %s22
      // Predicated region
      $region65: #{tpu_custom_call.1} parent=5 // pred_check
        %p1340 = pneg %p1339
      $region66: #{tpu_custom_call.1} parent=5 // pred_check_branch
        %1342 = sbr.rel (%p1340) target = $region68
      $region67: #{tpu_custom_call.1} parent=5 // pred_region
        %s1343 = ssub.s32 %s22, 2
      $region68: #{tpu_custom_call.1} parent=5 // pred_fallthru
        _
    $region6: #{tpu_custom_call.1} parent=1 // loop_footer
      %s26 = sadd.s32 1, %s22
    $region7: #{tpu_custom_call.1} parent=1 // loop_footer_branch
      %21 = sbr.rel target = $region3
    $region8: #{tpu_custom_call.1} parent=1 // loop_exit
      _
    %1344 = vsyncpa [#allocation6], 1
    %s1345 = scalar_lea.sflag [#allocation6], 1
    %1346 = vsyncpa %s1345, 1
    %1347 = vsyncpa [#allocation7], 1
    %s1348 = scalar_lea.sflag [#allocation7], 1
    %1349 = vsyncpa %s1348, 1

</llo_original>
